<compile_context>
chip_gen: v5e
topology: v5e:2x2
jax: 0.10.0
libtpu: 0.0.40
codegen_flags: <defaults>
</compile_context>

<pallas_src>
import functools
import math

import numpy as np
import jax
import jax.numpy as jnp
from jax.experimental import pallas as pl
from jax.experimental.pallas import tpu as pltpu


# ----------------------------- Pallas kernels ------------------------------

def _linear_kernel(x_ref, w_ref, b_ref, o_ref):
    o_ref[...] = (jnp.dot(x_ref[...], w_ref[...],
                          preferred_element_type=jnp.float32) + b_ref[...])


def pallas_linear(x2d, w_in_out, b_row):
    """y = x @ W + b.  x2d: (M, in), w_in_out: (in, out), b_row: (1, out)."""
    M, K = x2d.shape
    N = w_in_out.shape[1]
    return pl.pallas_call(
        _linear_kernel,
        grid=(1,),
        in_specs=[pl.BlockSpec((M, K), lambda i: (0, 0)),
                  pl.BlockSpec((K, N), lambda i: (0, 0)),
                  pl.BlockSpec((1, N), lambda i: (0, 0))],
        out_specs=pl.BlockSpec((M, N), lambda i: (0, 0)),
        out_shape=jax.ShapeDtypeStruct((M, N), jnp.float32),
    )(x2d.astype(jnp.float32), w_in_out.astype(jnp.float32),
      b_row.astype(jnp.float32))


def _full_spec(shape):
    zeros = (0,) * len(shape)
    return pl.BlockSpec(shape, lambda b: zeros)


def _level_decomp_kernel(xeo_ref, wds_ref, fr_ref, fi_ref, wm_ref,
                         crt_ref, cit_ref, udus_ref, ds_ref):
    """Fused per-level: filter -> shared rDFT -> complex mode mix -> folded iDFT.

    xeo_ref : (1, n, 2CK)  [x_even | x_odd] flattened features
    wds_ref : (2CK, 2CK)   -> [d | s]
    fr/fi   : (l_n, n)     forward rDFT (retained modes only)
    wm_ref  : (l_n, 4CK, 4CK) stacked real complex-mix weight (A,B,C fused)
    crt/cit : (n, l_n)     Hermitian-folded inverse DFT
    outputs : udus (1, n, 2CK) = [Ud | Us],  ds (1, n, 2CK) = [d | s]
    """
    xeo = xeo_ref[0]                                                    # (n, 2CK)
    ds = jnp.dot(xeo, wds_ref[...], preferred_element_type=jnp.float32)  # [d | s]
    ds_ref[0] = ds

    # shared forward rDFT of d and s (modes in rows, features in lanes)
    xr = jnp.dot(fr_ref[...], ds, preferred_element_type=jnp.float32)   # (l_n, 2CK) = [Dr|Sr]
    xi = jnp.dot(fi_ref[...], ds, preferred_element_type=jnp.float32)   # (l_n, 2CK) = [Di|Si]
    xin = jnp.concatenate([xr, xi], axis=-1)                            # (l_n, 4CK)

    # per-mode stacked-real mix: one matmul per retained mode (static unroll, in-VMEM)
    l_n = wm_ref.shape[0]
    rows = [jnp.dot(xin[m:m + 1, :], wm_ref[m],
                    preferred_element_type=jnp.float32) for m in range(l_n)]
    oc = jnp.concatenate(rows, axis=0)            # (l_n, 4CK) = [UdRe|UsRe | UdIm|UsIm]

    h = ds.shape[-1]                              # 2CK
    udus_ref[0] = (jnp.dot(crt_ref[...], oc[:, :h], preferred_element_type=jnp.float32)
                   + jnp.dot(cit_ref[...], oc[:, h:], preferred_element_type=jnp.float32))


def level_decompose(xeo, wds, wmode, fr, fi, crt, cit):
    B, n, two_ck = xeo.shape
    l_n = fr.shape[0]
    four_ck = wmode.shape[-1]
    io_spec = pl.BlockSpec((1, n, two_ck), lambda b: (b, 0, 0))
    return pl.pallas_call(
        _level_decomp_kernel,
        grid=(B,),
        in_specs=[io_spec,
                  _full_spec((two_ck, two_ck)),
                  _full_spec((l_n, n)),
                  _full_spec((l_n, n)),
                  _full_spec((l_n, four_ck, four_ck)),
                  _full_spec((n, l_n)),
                  _full_spec((n, l_n))],
        out_specs=(io_spec, io_spec),
        out_shape=(jax.ShapeDtypeStruct((B, n, two_ck), jnp.float32),
                   jax.ShapeDtypeStruct((B, n, two_ck), jnp.float32)),
        compiler_params=pltpu.CompilerParams(dimension_semantics=("parallel",)),
    )(xeo, wds, fr, fi, wmode, crt, cit)


def _level_recon_kernel(x_ref, us_ref, ud_ref, wrec_ref, eo_ref):
    """Fused per-level reconstruction: (x + Us, Ud) -> [x_even | x_odd]."""
    xin = jnp.concatenate([x_ref[0] + us_ref[0], ud_ref[0]], axis=-1)   # (n, 2CK)
    eo_ref[0] = jnp.dot(xin, wrec_ref[...], preferred_element_type=jnp.float32)


def level_reconstruct(x, us, ud, wrec):
    B, n, ck = x.shape
    in_spec = pl.BlockSpec((1, n, ck), lambda b: (b, 0, 0))
    out_spec = pl.BlockSpec((1, n, 2 * ck), lambda b: (b, 0, 0))
    return pl.pallas_call(
        _level_recon_kernel,
        grid=(B,),
        in_specs=[in_spec, in_spec, in_spec, _full_spec((2 * ck, 2 * ck))],
        out_specs=out_spec,
        out_shape=jax.ShapeDtypeStruct((B, n, 2 * ck), jnp.float32),
        compiler_params=pltpu.CompilerParams(dimension_semantics=("parallel",)),
    )(x, us, ud, wrec)


# --------------------------- spectral constants -----------------------------

_SPEC_CACHE = {}


def spectral_consts(n, modes):
    """Forward rDFT (l_n, n) and Hermitian-folded inverse DFT (n, l_n) matrices.

    x_rec = Crt @ out_re + Cit @ out_im reproduces naive_irfft(zero-padded spectrum)
    exactly: interior modes are doubled, DC / Nyquist contribute once (their imaginary
    parts are multiplied by sin terms that vanish, matching the Re(.) of the reference).
    """
    l_n = min(modes, n // 2 + 1)
    key = (n, l_n)
    if key not in _SPEC_CACHE:
        m = np.arange(l_n, dtype=np.float64).reshape(-1, 1)
        t = np.arange(n, dtype=np.float64).reshape(1, -1)
        ang = 2.0 * np.pi * m * t / n
        fr = np.cos(ang)                  # X_re = Fr @ x
        fi = -np.sin(ang)                 # X_im = Fi @ x
        scale = np.where(
            np.logical_or(np.arange(l_n) == 0,
                          np.logical_and(n % 2 == 0, np.arange(l_n) == n // 2)),
            1.0, 2.0).reshape(-1, 1)
        crt = (np.cos(ang) * scale / n).T
        cit = (-np.sin(ang) * scale / n).T
        _SPEC_CACHE[key] = (jnp.asarray(fr, jnp.float32),
                            jnp.asarray(fi, jnp.float32),
                            jnp.asarray(crt, jnp.float32),
                            jnp.asarray(cit, jnp.float32),
                            l_n)
    return _SPEC_CACHE[key]


# ----------------------------- module forward ------------------------------

def mwt_cz_1d(x, layer, L_level, alpha):
    """MWT_CZ1d.forward on the flat layout.  x: (B, N, c*k)."""
    B, N, CK = x.shape
    ns = int(math.floor(math.log2(N)))
    nl = 2 ** int(math.ceil(math.log2(N)))
    if nl > N:
        x = jnp.concatenate([x, x[:, :nl - N]], axis=1)

    ud_us = []
    n_cur = nl
    for _ in range(ns - L_level):
        n_half = n_cur // 2
        xeo = x.reshape(B, n_half, 2 * CK)              # [x_even | x_odd], free reshape
        fr, fi, crt, cit, l_n = spectral_consts(n_half, alpha)
        udus, ds = level_decompose(xeo, layer["Wds"], layer["Wmode"][:l_n],
                                   fr, fi, crt, cit)
        ud_us.append(udus)                              # [Ud | Us]
        x = ds[:, :, CK:]                               # carried smooth coefficients s
        n_cur = n_half

    # coarsest-scale linear T0 (lifted to the flat c*k feature layout)
    x = pallas_linear(x.reshape(B * n_cur, CK),
                      layer["T0_wT"], layer["T0_b"]).reshape(B, n_cur, CK)

    for i in range(ns - 1 - L_level, -1, -1):
        udus = ud_us[i]
        eo = level_reconstruct(x, udus[:, :, CK:], udus[:, :, :CK], layer["Wrec"])
        # even/odd interleave as a contiguous reshape (no stride-2 scatter)
        x = eo.reshape(B, n_cur, 2, CK).reshape(B, 2 * n_cur, CK)
        n_cur *= 2
    return x[:, :N]


@functools.partial(jax.jit, static_argnums=(5, 6, 7, 8, 9))
def multi_wavelet_transform(queries, keys, values, attn_mask, params,
                            k, c, nCZ, L_level, alpha):
    B, L, H, E = queries.shape
    _, S, _, D = values.shape
    if L > S:
        # NOTE: mirrors the PyTorch reference quirk; only valid when E == D.
        zeros = jnp.zeros_like(queries[:, :L - S, :])
        values = jnp.concatenate([values, zeros], axis=1)
        keys = jnp.concatenate([keys, zeros], axis=1)
    else:
        values = values[:, :L]
        keys = keys[:, :L]
    values = values.reshape(B, L, -1)

    V = pallas_linear(values.reshape(B * L, -1),
                      params["Lk0_wT"], params["Lk0_b"]).reshape(B, L, c * k)
    for i in range(nCZ):
        V = mwt_cz_1d(V, params["cz"][i], L_level, alpha)
        if i < nCZ - 1:
            V = jax.nn.relu(V)
    V = pallas_linear(V.reshape(B * L, -1),
                      params["Lk1_wT"], params["Lk1_b"]).reshape(B, L, -1)
    V = V.reshape(B, L, -1, D)
    return V, None


# ------------------------------- parameters --------------------------------

def _build_mode_weight(A_re, A_im, B_re, B_im, C_re, C_im):
    """Pack the complex A/B/C mode weights into one stacked real matrix per mode.

    Input row  [Dr | Sr | Di | Si] (4CK) @ W  ->  [UdRe | UsRe | UdIm | UsIm] (4CK),
    where Ud = A(d)+B(s) spectrum and Us = C(d) spectrum (complex products expanded).
    """
    tr = lambda w: jnp.transpose(w, (2, 0, 1))          # (alpha, CK, CK)
    Ar, Ai = tr(A_re), tr(A_im)
    Br, Bi = tr(B_re), tr(B_im)
    Cr, Ci = tr(C_re), tr(C_im)
    Z = jnp.zeros_like(Ar)
    row_dr = jnp.concatenate([Ar, Cr, Ai, Ci], axis=2)
    row_sr = jnp.concatenate([Br, Z, Bi, Z], axis=2)
    row_di = jnp.concatenate([-Ai, -Ci, Ar, Cr], axis=2)
    row_si = jnp.concatenate([-Bi, Z, Br, Z], axis=2)
    return jnp.concatenate([row_dr, row_sr, row_di, row_si], axis=1)  # (alpha, 4CK, 4CK)


def init_params(key, ich, k, c, alpha, nCZ):
    ck = c * k
    keys = jax.random.split(key, 8)

    def lin(kw, kb, fan_out, fan_in):
        bound = 1.0 / math.sqrt(fan_in)
        W = jax.random.uniform(kw, (fan_out, fan_in), jnp.float32, -bound, bound)
        b = jax.random.uniform(kb, (fan_out,), jnp.float32, -bound, bound)
        return W, b

    Lk0_w, Lk0_b = lin(keys[0], keys[1], ck, ich)
    Lk1_w, Lk1_b = lin(keys[2], keys[3], ich, ck)

    eye_c = jnp.eye(c, dtype=jnp.float32)
    cz_list = []
    for i in range(nCZ):
        ks = jax.random.split(jax.random.fold_in(keys[4], i), 12)
        scale = 1.0 / (ck * ck)
        A_re = scale * jax.random.normal(ks[0], (ck, ck, alpha), jnp.float32)
        A_im = scale * jax.random.normal(ks[1], (ck, ck, alpha), jnp.float32)
        B_re = scale * jax.random.normal(ks[2], (ck, ck, alpha), jnp.float32)
        B_im = scale * jax.random.normal(ks[3], (ck, ck, alpha), jnp.float32)
        C_re = scale * jax.random.normal(ks[4], (ck, ck, alpha), jnp.float32)
        C_im = scale * jax.random.normal(ks[5], (ck, ck, alpha), jnp.float32)
        T0_w, T0_b = lin(ks[6], ks[7], k, k)

        # TODO(synk): exact Legendre multiwavelet filters (get_filter) need sympy/scipy
        # symbolic quadrature; deterministic random stand-ins with identical shapes are
        # used here (PHI0 = PHI1 = I, as for base='legendre').
        H0 = jax.random.normal(ks[8], (k, k), jnp.float32) / math.sqrt(k)
        H1 = jax.random.normal(ks[9], (k, k), jnp.float32) / math.sqrt(k)
        G0 = jax.random.normal(ks[10], (k, k), jnp.float32) / math.sqrt(k)
        G1 = jax.random.normal(ks[11], (k, k), jnp.float32) / math.sqrt(k)
        PHI0 = jnp.eye(k, dtype=jnp.float32)
        PHI1 = jnp.eye(k, dtype=jnp.float32)
        H0r, G0r = H0 @ PHI0, G0 @ PHI0
        H1r, G1r = H1 @ PHI1, G1 @ PHI1
        thr = lambda m: jnp.where(jnp.abs(m) < 1e-8, 0.0, m)
        H0r, H1r, G0r, G1r = thr(H0r), thr(H1r), thr(G0r), thr(G1r)

        # fused decomposition filter: [x_even | x_odd] (2CK) -> [d | s] (2CK)
        Wd = jnp.concatenate([jnp.kron(eye_c, H0.T), jnp.kron(eye_c, H1.T)], axis=0)
        Gd = jnp.concatenate([jnp.kron(eye_c, G0.T), jnp.kron(eye_c, G1.T)], axis=0)
        Wds = jnp.concatenate([Gd, Wd], axis=1)                       # cols = [d | s]

        # fused reconstruction filter: [x | Ud] (2CK) -> [x_even | x_odd] (2CK)
        top = jnp.concatenate([jnp.kron(eye_c, H0r), jnp.kron(eye_c, H1r)], axis=1)
        bot = jnp.concatenate([jnp.kron(eye_c, G0r), jnp.kron(eye_c, G1r)], axis=1)
        Wrec = jnp.concatenate([top, bot], axis=0)

        cz_list.append(dict(
            Wds=Wds, Wrec=Wrec,
            Wmode=_build_mode_weight(A_re, A_im, B_re, B_im, C_re, C_im),
            T0_wT=jnp.kron(eye_c, T0_w.T),
            T0_b=jnp.tile(T0_b, c).reshape(1, ck),
        ))
    return dict(Lk0_wT=Lk0_w.T, Lk0_b=Lk0_b.reshape(1, ck),
                Lk1_wT=Lk1_w.T, Lk1_b=Lk1_b.reshape(1, ich), cz=cz_list)


# ---------------------------------- main ------------------------------------

if __name__ == "__main__":
    # queries (B, L, H, E), values (B, S, H, D)
    B, L, H, E = 2, 16, 2, 4
    S, D = 16, 4
    ich = H * D
    k, c, alpha, nCZ, L_level = 4, 4, 4, 1, 0

    key = jax.random.PRNGKey(0)
    kq, kk_, kv, kp = jax.random.split(key, 4)
    queries = jax.random.normal(kq, (B, L, H, E), jnp.float32)
    keys_ = jax.random.normal(kk_, (B, S, H, E), jnp.float32)
    values = jax.random.normal(kv, (B, S, H, D), jnp.float32)

    params = init_params(kp, ich, k, c, alpha, nCZ)
    out, _ = multi_wavelet_transform(queries, keys_, values, None, params,
                                     k, c, nCZ, L_level, alpha)
    out = jax.block_until_ready(out)
    assert out.shape == (B, L, H, D), out.shape
    assert bool(jnp.all(jnp.isfinite(out)))
    print("KERNEL_OK")
</pallas_src>

<mosaic_0001>
module attributes {stable_mosaic.version = 11 : i64} {
  func.func @_linear_kernel(%arg0: i32, %arg1: memref<32x8xf32, #tpu.memory_space<vmem>>, %arg2: memref<8x16xf32, #tpu.memory_space<vmem>>, %arg3: memref<1x16xf32, #tpu.memory_space<vmem>>, %arg4: memref<32x16xf32, #tpu.memory_space<vmem>>) attributes {dimension_semantics = [#tpu.dimension_semantics<arbitrary>], iteration_bounds = array<i64: 1>, scalar_prefetch = 0 : i64, scratch_operands = 0 : i64, tpu.core_type = #tpu.core_type<tc>, window_params = [{pipeline_mode = #tpu.pipeline_mode<synchronous>, transform_indices = @transform_0, window_bounds = array<i64: 32, 8>}, {pipeline_mode = #tpu.pipeline_mode<synchronous>, transform_indices = @transform_1, window_bounds = array<i64: 8, 16>}, {pipeline_mode = #tpu.pipeline_mode<synchronous>, transform_indices = @transform_2, window_bounds = array<i64: 1, 16>}, {pipeline_mode = #tpu.pipeline_mode<synchronous>, transform_indices = @transform_3, window_bounds = array<i64: 32, 16>}]} {
    %c0 = arith.constant 0 : index
    %c0_0 = arith.constant 0 : index
    %0 = vector.load %arg1[%c0, %c0_0] : memref<32x8xf32, #tpu.memory_space<vmem>>, vector<32x8xf32>
    %c0_1 = arith.constant 0 : index
    %c0_2 = arith.constant 0 : index
    %1 = vector.load %arg2[%c0_1, %c0_2] : memref<8x16xf32, #tpu.memory_space<vmem>>, vector<8x16xf32>
    %cst = arith.constant dense<0.000000e+00> : vector<32x16xf32>
    %2 = tpu.matmul %0, %1, %cst {dimension_numbers = #tpu.dot_dimension_numbers<[1], [0], [0], [1], [0, 0, 1, 1], [], []>} : vector<32x8xf32>, vector<8x16xf32>, vector<32x16xf32> -> vector<32x16xf32>
    %c0_3 = arith.constant 0 : index
    %c0_4 = arith.constant 0 : index
    %3 = vector.load %arg3[%c0_3, %c0_4] : memref<1x16xf32, #tpu.memory_space<vmem>>, vector<1x16xf32>
    %4 = vector.broadcast %3 : vector<1x16xf32> to vector<32x16xf32>
    %5 = arith.addf %2, %4 : vector<32x16xf32>
    %c0_5 = arith.constant 0 : index
    %c0_6 = arith.constant 0 : index
    %6 = vector.load %arg4[%c0_5, %c0_6] : memref<32x16xf32, #tpu.memory_space<vmem>>, vector<32x16xf32>
    tpu.vector_store %arg4[%c0_5, %c0_6], %5 {strides = array<i32>} : memref<32x16xf32, #tpu.memory_space<vmem>>, vector<32x16xf32>,
    return
  }
  func.func @transform_0(%arg0: i32) -> (i32, i32) {
    %c0_i32 = arith.constant 0 : i32
    %c0_i32_0 = arith.constant 0 : i32
    %c0_i32_1 = arith.constant 0 : i32
    return %c0_i32, %c0_i32_0 : i32, i32
  }
  func.func @transform_1(%arg0: i32) -> (i32, i32) {
    %c0_i32 = arith.constant 0 : i32
    %c0_i32_0 = arith.constant 0 : i32
    %c0_i32_1 = arith.constant 0 : i32
    return %c0_i32, %c0_i32_0 : i32, i32
  }
  func.func @transform_2(%arg0: i32) -> (i32, i32) {
    %c0_i32 = arith.constant 0 : i32
    %c0_i32_0 = arith.constant 0 : i32
    %c0_i32_1 = arith.constant 0 : i32
    return %c0_i32, %c0_i32_0 : i32, i32
  }
  func.func @transform_3(%arg0: i32) -> (i32, i32) {
    %c0_i32 = arith.constant 0 : i32
    %c0_i32_0 = arith.constant 0 : i32
    %c0_i32_1 = arith.constant 0 : i32
    return %c0_i32, %c0_i32_0 : i32, i32
  }
}

module attributes {stable_mosaic.version = 11 : i64} {
  func.func @_level_decomp_kernel(%arg0: i32, %arg1: memref<1x8x32xf32, #tpu.memory_space<vmem>>, %arg2: memref<32x32xf32, #tpu.memory_space<vmem>>, %arg3: memref<4x8xf32, #tpu.memory_space<vmem>>, %arg4: memref<4x8xf32, #tpu.memory_space<vmem>>, %arg5: memref<4x64x64xf32, #tpu.memory_space<vmem>>, %arg6: memref<8x4xf32, #tpu.memory_space<vmem>>, %arg7: memref<8x4xf32, #tpu.memory_space<vmem>>, %arg8: memref<1x8x32xf32, #tpu.memory_space<vmem>>, %arg9: memref<1x8x32xf32, #tpu.memory_space<vmem>>) attributes {dimension_semantics = [#tpu.dimension_semantics<parallel>], iteration_bounds = array<i64: 2>, scalar_prefetch = 0 : i64, scratch_operands = 0 : i64, tpu.core_type = #tpu.core_type<tc>, window_params = [{transform_indices = @transform_0, window_bounds = array<i64: 1, 8, 32>}, {pipeline_mode = #tpu.pipeline_mode<synchronous>, transform_indices = @transform_1, window_bounds = array<i64: 32, 32>}, {pipeline_mode = #tpu.pipeline_mode<synchronous>, transform_indices = @transform_2, window_bounds = array<i64: 4, 8>}, {pipeline_mode = #tpu.pipeline_mode<synchronous>, transform_indices = @transform_3, window_bounds = array<i64: 4, 8>}, {pipeline_mode = #tpu.pipeline_mode<synchronous>, transform_indices = @transform_4, window_bounds = array<i64: 4, 64, 64>}, {pipeline_mode = #tpu.pipeline_mode<synchronous>, transform_indices = @transform_5, window_bounds = array<i64: 8, 4>}, {pipeline_mode = #tpu.pipeline_mode<synchronous>, transform_indices = @transform_6, window_bounds = array<i64: 8, 4>}, {transform_indices = @transform_7, window_bounds = array<i64: 1, 8, 32>}, {transform_indices = @transform_8, window_bounds = array<i64: 1, 8, 32>}]} {
    %c0 = arith.constant 0 : index
    %c0_0 = arith.constant 0 : index
    %c0_1 = arith.constant 0 : index
    %0 = vector.load %arg1[%c0, %c0_0, %c0_1] : memref<1x8x32xf32, #tpu.memory_space<vmem>>, vector<1x8x32xf32>
    %1 = vector.shape_cast %0 : vector<1x8x32xf32> to vector<8x32xf32>
    %c0_2 = arith.constant 0 : index
    %c0_3 = arith.constant 0 : index
    %2 = vector.load %arg2[%c0_2, %c0_3] : memref<32x32xf32, #tpu.memory_space<vmem>>, vector<32x32xf32>
    %cst = arith.constant dense<0.000000e+00> : vector<8x32xf32>
    %3 = tpu.matmul %1, %2, %cst {dimension_numbers = #tpu.dot_dimension_numbers<[1], [0], [0], [1], [0, 0, 1, 1], [], []>} : vector<8x32xf32>, vector<32x32xf32>, vector<8x32xf32> -> vector<8x32xf32>
    %c0_4 = arith.constant 0 : index
    %c0_5 = arith.constant 0 : index
    %c0_6 = arith.constant 0 : index
    %4 = vector.load %arg9[%c0_4, %c0_5, %c0_6] : memref<1x8x32xf32, #tpu.memory_space<vmem>>, vector<1x8x32xf32>
    %5 = vector.shape_cast %4 : vector<1x8x32xf32> to vector<8x32xf32>
    %6 = vector.shape_cast %3 : vector<8x32xf32> to vector<1x8x32xf32>
    tpu.vector_store %arg9[%c0_4, %c0_5, %c0_6], %6 {strides = array<i32>} : memref<1x8x32xf32, #tpu.memory_space<vmem>>, vector<1x8x32xf32>,
    %c0_7 = arith.constant 0 : index
    %c0_8 = arith.constant 0 : index
    %7 = vector.load %arg3[%c0_7, %c0_8] : memref<4x8xf32, #tpu.memory_space<vmem>>, vector<4x8xf32>
    %cst_9 = arith.constant dense<0.000000e+00> : vector<4x32xf32>
    %8 = tpu.matmul %7, %3, %cst_9 {dimension_numbers = #tpu.dot_dimension_numbers<[1], [0], [0], [1], [0, 0, 1, 1], [], []>} : vector<4x8xf32>, vector<8x32xf32>, vector<4x32xf32> -> vector<4x32xf32>
    %c0_10 = arith.constant 0 : index
    %c0_11 = arith.constant 0 : index
    %9 = vector.load %arg4[%c0_10, %c0_11] : memref<4x8xf32, #tpu.memory_space<vmem>>, vector<4x8xf32>
    %cst_12 = arith.constant dense<0.000000e+00> : vector<4x32xf32>
    %10 = tpu.matmul %9, %3, %cst_12 {dimension_numbers = #tpu.dot_dimension_numbers<[1], [0], [0], [1], [0, 0, 1, 1], [], []>} : vector<4x8xf32>, vector<8x32xf32>, vector<4x32xf32> -> vector<4x32xf32>
    %11 = tpu.concatenate %8, %10 in 1 : vector<4x32xf32>, vector<4x32xf32> -> vector<4x64xf32>
    %12 = vector.extract_strided_slice %11 {offsets = [0, 0], sizes = [1, 64], strides = [1, 1]} : vector<4x64xf32> to vector<1x64xf32>
    %c0_13 = arith.constant 0 : index
    %c0_14 = arith.constant 0 : index
    %c0_15 = arith.constant 0 : index
    %13 = vector.load %arg5[%c0_13, %c0_14, %c0_15] : memref<4x64x64xf32, #tpu.memory_space<vmem>>, vector<1x64x64xf32>
    %14 = vector.shape_cast %13 : vector<1x64x64xf32> to vector<64x64xf32>
    %cst_16 = arith.constant dense<0.000000e+00> : vector<1x64xf32>
    %15 = tpu.matmul %12, %14, %cst_16 {dimension_numbers = #tpu.dot_dimension_numbers<[1], [0], [0], [1], [0, 0, 1, 1], [], []>} : vector<1x64xf32>, vector<64x64xf32>, vector<1x64xf32> -> vector<1x64xf32>
    %16 = vector.extract_strided_slice %11 {offsets = [1, 0], sizes = [1, 64], strides = [1, 1]} : vector<4x64xf32> to vector<1x64xf32>
    %c1 = arith.constant 1 : index
    %c0_17 = arith.constant 0 : index
    %c0_18 = arith.constant 0 : index
    %17 = vector.load %arg5[%c1, %c0_17, %c0_18] : memref<4x64x64xf32, #tpu.memory_space<vmem>>, vector<1x64x64xf32>
    %18 = vector.shape_cast %17 : vector<1x64x64xf32> to vector<64x64xf32>
    %cst_19 = arith.constant dense<0.000000e+00> : vector<1x64xf32>
    %19 = tpu.matmul %16, %18, %cst_19 {dimension_numbers = #tpu.dot_dimension_numbers<[1], [0], [0], [1], [0, 0, 1, 1], [], []>} : vector<1x64xf32>, vector<64x64xf32>, vector<1x64xf32> -> vector<1x64xf32>
    %20 = vector.extract_strided_slice %11 {offsets = [2, 0], sizes = [1, 64], strides = [1, 1]} : vector<4x64xf32> to vector<1x64xf32>
    %c2 = arith.constant 2 : index
    %c0_20 = arith.constant 0 : index
    %c0_21 = arith.constant 0 : index
    %21 = vector.load %arg5[%c2, %c0_20, %c0_21] : memref<4x64x64xf32, #tpu.memory_space<vmem>>, vector<1x64x64xf32>
    %22 = vector.shape_cast %21 : vector<1x64x64xf32> to vector<64x64xf32>
    %cst_22 = arith.constant dense<0.000000e+00> : vector<1x64xf32>
    %23 = tpu.matmul %20, %22, %cst_22 {dimension_numbers = #tpu.dot_dimension_numbers<[1], [0], [0], [1], [0, 0, 1, 1], [], []>} : vector<1x64xf32>, vector<64x64xf32>, vector<1x64xf32> -> vector<1x64xf32>
    %24 = vector.extract_strided_slice %11 {offsets = [3, 0], sizes = [1, 64], strides = [1, 1]} : vector<4x64xf32> to vector<1x64xf32>
    %c3 = arith.constant 3 : index
    %c0_23 = arith.constant 0 : index
    %c0_24 = arith.constant 0 : index
    %25 = vector.load %arg5[%c3, %c0_23, %c0_24] : memref<4x64x64xf32, #tpu.memory_space<vmem>>, vector<1x64x64xf32>
    %26 = vector.shape_cast %25 : vector<1x64x64xf32> to vector<64x64xf32>
    %cst_25 = arith.constant dense<0.000000e+00> : vector<1x64xf32>
    %27 = tpu.matmul %24, %26, %cst_25 {dimension_numbers = #tpu.dot_dimension_numbers<[1], [0], [0], [1], [0, 0, 1, 1], [], []>} : vector<1x64xf32>, vector<64x64xf32>, vector<1x64xf32> -> vector<1x64xf32>
    %28 = tpu.concatenate %15, %19, %23, %27 in 0 : vector<1x64xf32>, vector<1x64xf32>, vector<1x64xf32>, vector<1x64xf32> -> vector<4x64xf32>
    %c0_26 = arith.constant 0 : index
    %c0_27 = arith.constant 0 : index
    %29 = vector.load %arg6[%c0_26, %c0_27] : memref<8x4xf32, #tpu.memory_space<vmem>>, vector<8x4xf32>
    %30 = vector.extract_strided_slice %28 {offsets = [0, 0], sizes = [4, 32], strides = [1, 1]} : vector<4x64xf32> to vector<4x32xf32>
    %cst_28 = arith.constant dense<0.000000e+00> : vector<8x32xf32>
    %31 = tpu.matmul %29, %30, %cst_28 {dimension_numbers = #tpu.dot_dimension_numbers<[1], [0], [0], [1], [0, 0, 1, 1], [], []>} : vector<8x4xf32>, vector<4x32xf32>, vector<8x32xf32> -> vector<8x32xf32>
    %c0_29 = arith.constant 0 : index
    %c0_30 = arith.constant 0 : index
    %32 = vector.load %arg7[%c0_29, %c0_30] : memref<8x4xf32, #tpu.memory_space<vmem>>, vector<8x4xf32>
    %33 = vector.extract_strided_slice %28 {offsets = [0, 32], sizes = [4, 32], strides = [1, 1]} : vector<4x64xf32> to vector<4x32xf32>
    %cst_31 = arith.constant dense<0.000000e+00> : vector<8x32xf32>
    %34 = tpu.matmul %32, %33, %cst_31 {dimension_numbers = #tpu.dot_dimension_numbers<[1], [0], [0], [1], [0, 0, 1, 1], [], []>} : vector<8x4xf32>, vector<4x32xf32>, vector<8x32xf32> -> vector<8x32xf32>
    %35 = arith.addf %31, %34 : vector<8x32xf32>
    %c0_32 = arith.constant 0 : index
    %c0_33 = arith.constant 0 : index
    %c0_34 = arith.constant 0 : index
    %36 = vector.load %arg8[%c0_32, %c0_33, %c0_34] : memref<1x8x32xf32, #tpu.memory_space<vmem>>, vector<1x8x32xf32>
    %37 = vector.shape_cast %36 : vector<1x8x32xf32> to vector<8x32xf32>
    %38 = vector.shape_cast %35 : vector<8x32xf32> to vector<1x8x32xf32>
    tpu.vector_store %arg8[%c0_32, %c0_33, %c0_34], %38 {strides = array<i32>} : memref<1x8x32xf32, #tpu.memory_space<vmem>>, vector<1x8x32xf32>,
    return
  }
  func.func @transform_0(%arg0: i32) -> (i32, i32, i32) {
    %c0_i32 = arith.constant 0 : i32
    %c0_i32_0 = arith.constant 0 : i32
    %c0_i32_1 = arith.constant 0 : i32
    return %arg0, %c0_i32, %c0_i32_0 : i32, i32, i32
  }
  func.func @transform_1(%arg0: i32) -> (i32, i32) {
    %c0_i32 = arith.constant 0 : i32
    %c0_i32_0 = arith.constant 0 : i32
    %c0_i32_1 = arith.constant 0 : i32
    return %c0_i32, %c0_i32_0 : i32, i32
  }
  func.func @transform_2(%arg0: i32) -> (i32, i32) {
    %c0_i32 = arith.constant 0 : i32
    %c0_i32_0 = arith.constant 0 : i32
    %c0_i32_1 = arith.constant 0 : i32
    return %c0_i32, %c0_i32_0 : i32, i32
  }
  func.func @transform_3(%arg0: i32) -> (i32, i32) {
    %c0_i32 = arith.constant 0 : i32
    %c0_i32_0 = arith.constant 0 : i32
    %c0_i32_1 = arith.constant 0 : i32
    return %c0_i32, %c0_i32_0 : i32, i32
  }
  func.func @transform_4(%arg0: i32) -> (i32, i32, i32) {
    %c0_i32 = arith.constant 0 : i32
    %c0_i32_0 = arith.constant 0 : i32
    %c0_i32_1 = arith.constant 0 : i32
    %c0_i32_2 = arith.constant 0 : i32
    return %c0_i32, %c0_i32_0, %c0_i32_1 : i32, i32, i32
  }
  func.func @transform_5(%arg0: i32) -> (i32, i32) {
    %c0_i32 = arith.constant 0 : i32
    %c0_i32_0 = arith.constant 0 : i32
    %c0_i32_1 = arith.constant 0 : i32
    return %c0_i32, %c0_i32_0 : i32, i32
  }
  func.func @transform_6(%arg0: i32) -> (i32, i32) {
    %c0_i32 = arith.constant 0 : i32
    %c0_i32_0 = arith.constant 0 : i32
    %c0_i32_1 = arith.constant 0 : i32
    return %c0_i32, %c0_i32_0 : i32, i32
  }
  func.func @transform_7(%arg0: i32) -> (i32, i32, i32) {
    %c0_i32 = arith.constant 0 : i32
    %c0_i32_0 = arith.constant 0 : i32
    %c0_i32_1 = arith.constant 0 : i32
    return %arg0, %c0_i32, %c0_i32_0 : i32, i32, i32
  }
  func.func @transform_8(%arg0: i32) -> (i32, i32, i32) {
    %c0_i32 = arith.constant 0 : i32
    %c0_i32_0 = arith.constant 0 : i32
    %c0_i32_1 = arith.constant 0 : i32
    return %arg0, %c0_i32, %c0_i32_0 : i32, i32, i32
  }
}

module attributes {stable_mosaic.version = 11 : i64} {
  func.func @_level_decomp_kernel(%arg0: i32, %arg1: memref<1x4x32xf32, #tpu.memory_space<vmem>>, %arg2: memref<32x32xf32, #tpu.memory_space<vmem>>, %arg3: memref<3x4xf32, #tpu.memory_space<vmem>>, %arg4: memref<3x4xf32, #tpu.memory_space<vmem>>, %arg5: memref<3x64x64xf32, #tpu.memory_space<vmem>>, %arg6: memref<4x3xf32, #tpu.memory_space<vmem>>, %arg7: memref<4x3xf32, #tpu.memory_space<vmem>>, %arg8: memref<1x4x32xf32, #tpu.memory_space<vmem>>, %arg9: memref<1x4x32xf32, #tpu.memory_space<vmem>>) attributes {dimension_semantics = [#tpu.dimension_semantics<parallel>], iteration_bounds = array<i64: 2>, scalar_prefetch = 0 : i64, scratch_operands = 0 : i64, tpu.core_type = #tpu.core_type<tc>, window_params = [{transform_indices = @transform_0, window_bounds = array<i64: 1, 4, 32>}, {pipeline_mode = #tpu.pipeline_mode<synchronous>, transform_indices = @transform_1, window_bounds = array<i64: 32, 32>}, {pipeline_mode = #tpu.pipeline_mode<synchronous>, transform_indices = @transform_2, window_bounds = array<i64: 3, 4>}, {pipeline_mode = #tpu.pipeline_mode<synchronous>, transform_indices = @transform_3, window_bounds = array<i64: 3, 4>}, {pipeline_mode = #tpu.pipeline_mode<synchronous>, transform_indices = @transform_4, window_bounds = array<i64: 3, 64, 64>}, {pipeline_mode = #tpu.pipeline_mode<synchronous>, transform_indices = @transform_5, window_bounds = array<i64: 4, 3>}, {pipeline_mode = #tpu.pipeline_mode<synchronous>, transform_indices = @transform_6, window_bounds = array<i64: 4, 3>}, {transform_indices = @transform_7, window_bounds = array<i64: 1, 4, 32>}, {transform_indices = @transform_8, window_bounds = array<i64: 1, 4, 32>}]} {
    %c0 = arith.constant 0 : index
    %c0_0 = arith.constant 0 : index
    %c0_1 = arith.constant 0 : index
    %0 = vector.load %arg1[%c0, %c0_0, %c0_1] : memref<1x4x32xf32, #tpu.memory_space<vmem>>, vector<1x4x32xf32>
    %1 = vector.shape_cast %0 : vector<1x4x32xf32> to vector<4x32xf32>
    %c0_2 = arith.constant 0 : index
    %c0_3 = arith.constant 0 : index
    %2 = vector.load %arg2[%c0_2, %c0_3] : memref<32x32xf32, #tpu.memory_space<vmem>>, vector<32x32xf32>
    %cst = arith.constant dense<0.000000e+00> : vector<4x32xf32>
    %3 = tpu.matmul %1, %2, %cst {dimension_numbers = #tpu.dot_dimension_numbers<[1], [0], [0], [1], [0, 0, 1, 1], [], []>} : vector<4x32xf32>, vector<32x32xf32>, vector<4x32xf32> -> vector<4x32xf32>
    %c0_4 = arith.constant 0 : index
    %c0_5 = arith.constant 0 : index
    %c0_6 = arith.constant 0 : index
    %4 = vector.load %arg9[%c0_4, %c0_5, %c0_6] : memref<1x4x32xf32, #tpu.memory_space<vmem>>, vector<1x4x32xf32>
    %5 = vector.shape_cast %4 : vector<1x4x32xf32> to vector<4x32xf32>
    %6 = vector.shape_cast %3 : vector<4x32xf32> to vector<1x4x32xf32>
    tpu.vector_store %arg9[%c0_4, %c0_5, %c0_6], %6 {strides = array<i32>} : memref<1x4x32xf32, #tpu.memory_space<vmem>>, vector<1x4x32xf32>,
    %c0_7 = arith.constant 0 : index
    %c0_8 = arith.constant 0 : index
    %7 = vector.load %arg3[%c0_7, %c0_8] : memref<3x4xf32, #tpu.memory_space<vmem>>, vector<3x4xf32>
    %cst_9 = arith.constant dense<0.000000e+00> : vector<3x32xf32>
    %8 = tpu.matmul %7, %3, %cst_9 {dimension_numbers = #tpu.dot_dimension_numbers<[1], [0], [0], [1], [0, 0, 1, 1], [], []>} : vector<3x4xf32>, vector<4x32xf32>, vector<3x32xf32> -> vector<3x32xf32>
    %c0_10 = arith.constant 0 : index
    %c0_11 = arith.constant 0 : index
    %9 = vector.load %arg4[%c0_10, %c0_11] : memref<3x4xf32, #tpu.memory_space<vmem>>, vector<3x4xf32>
    %cst_12 = arith.constant dense<0.000000e+00> : vector<3x32xf32>
    %10 = tpu.matmul %9, %3, %cst_12 {dimension_numbers = #tpu.dot_dimension_numbers<[1], [0], [0], [1], [0, 0, 1, 1], [], []>} : vector<3x4xf32>, vector<4x32xf32>, vector<3x32xf32> -> vector<3x32xf32>
    %11 = tpu.concatenate %8, %10 in 1 : vector<3x32xf32>, vector<3x32xf32> -> vector<3x64xf32>
    %12 = vector.extract_strided_slice %11 {offsets = [0, 0], sizes = [1, 64], strides = [1, 1]} : vector<3x64xf32> to vector<1x64xf32>
    %c0_13 = arith.constant 0 : index
    %c0_14 = arith.constant 0 : index
    %c0_15 = arith.constant 0 : index
    %13 = vector.load %arg5[%c0_13, %c0_14, %c0_15] : memref<3x64x64xf32, #tpu.memory_space<vmem>>, vector<1x64x64xf32>
    %14 = vector.shape_cast %13 : vector<1x64x64xf32> to vector<64x64xf32>
    %cst_16 = arith.constant dense<0.000000e+00> : vector<1x64xf32>
    %15 = tpu.matmul %12, %14, %cst_16 {dimension_numbers = #tpu.dot_dimension_numbers<[1], [0], [0], [1], [0, 0, 1, 1], [], []>} : vector<1x64xf32>, vector<64x64xf32>, vector<1x64xf32> -> vector<1x64xf32>
    %16 = vector.extract_strided_slice %11 {offsets = [1, 0], sizes = [1, 64], strides = [1, 1]} : vector<3x64xf32> to vector<1x64xf32>
    %c1 = arith.constant 1 : index
    %c0_17 = arith.constant 0 : index
    %c0_18 = arith.constant 0 : index
    %17 = vector.load %arg5[%c1, %c0_17, %c0_18] : memref<3x64x64xf32, #tpu.memory_space<vmem>>, vector<1x64x64xf32>
    %18 = vector.shape_cast %17 : vector<1x64x64xf32> to vector<64x64xf32>
    %cst_19 = arith.constant dense<0.000000e+00> : vector<1x64xf32>
    %19 = tpu.matmul %16, %18, %cst_19 {dimension_numbers = #tpu.dot_dimension_numbers<[1], [0], [0], [1], [0, 0, 1, 1], [], []>} : vector<1x64xf32>, vector<64x64xf32>, vector<1x64xf32> -> vector<1x64xf32>
    %20 = vector.extract_strided_slice %11 {offsets = [2, 0], sizes = [1, 64], strides = [1, 1]} : vector<3x64xf32> to vector<1x64xf32>
    %c2 = arith.constant 2 : index
    %c0_20 = arith.constant 0 : index
    %c0_21 = arith.constant 0 : index
    %21 = vector.load %arg5[%c2, %c0_20, %c0_21] : memref<3x64x64xf32, #tpu.memory_space<vmem>>, vector<1x64x64xf32>
    %22 = vector.shape_cast %21 : vector<1x64x64xf32> to vector<64x64xf32>
    %cst_22 = arith.constant dense<0.000000e+00> : vector<1x64xf32>
    %23 = tpu.matmul %20, %22, %cst_22 {dimension_numbers = #tpu.dot_dimension_numbers<[1], [0], [0], [1], [0, 0, 1, 1], [], []>} : vector<1x64xf32>, vector<64x64xf32>, vector<1x64xf32> -> vector<1x64xf32>
    %24 = tpu.concatenate %15, %19, %23 in 0 : vector<1x64xf32>, vector<1x64xf32>, vector<1x64xf32> -> vector<3x64xf32>
    %c0_23 = arith.constant 0 : index
    %c0_24 = arith.constant 0 : index
    %25 = vector.load %arg6[%c0_23, %c0_24] : memref<4x3xf32, #tpu.memory_space<vmem>>, vector<4x3xf32>
    %26 = vector.extract_strided_slice %24 {offsets = [0, 0], sizes = [3, 32], strides = [1, 1]} : vector<3x64xf32> to vector<3x32xf32>
    %cst_25 = arith.constant dense<0.000000e+00> : vector<4x32xf32>
    %27 = tpu.matmul %25, %26, %cst_25 {dimension_numbers = #tpu.dot_dimension_numbers<[1], [0], [0], [1], [0, 0, 1, 1], [], []>} : vector<4x3xf32>, vector<3x32xf32>, vector<4x32xf32> -> vector<4x32xf32>
    %c0_26 = arith.constant 0 : index
    %c0_27 = arith.constant 0 : index
    %28 = vector.load %arg7[%c0_26, %c0_27] : memref<4x3xf32, #tpu.memory_space<vmem>>, vector<4x3xf32>
    %29 = vector.extract_strided_slice %24 {offsets = [0, 32], sizes = [3, 32], strides = [1, 1]} : vector<3x64xf32> to vector<3x32xf32>
    %cst_28 = arith.constant dense<0.000000e+00> : vector<4x32xf32>
    %30 = tpu.matmul %28, %29, %cst_28 {dimension_numbers = #tpu.dot_dimension_numbers<[1], [0], [0], [1], [0, 0, 1, 1], [], []>} : vector<4x3xf32>, vector<3x32xf32>, vector<4x32xf32> -> vector<4x32xf32>
    %31 = arith.addf %27, %30 : vector<4x32xf32>
    %c0_29 = arith.constant 0 : index
    %c0_30 = arith.constant 0 : index
    %c0_31 = arith.constant 0 : index
    %32 = vector.load %arg8[%c0_29, %c0_30, %c0_31] : memref<1x4x32xf32, #tpu.memory_space<vmem>>, vector<1x4x32xf32>
    %33 = vector.shape_cast %32 : vector<1x4x32xf32> to vector<4x32xf32>
    %34 = vector.shape_cast %31 : vector<4x32xf32> to vector<1x4x32xf32>
    tpu.vector_store %arg8[%c0_29, %c0_30, %c0_31], %34 {strides = array<i32>} : memref<1x4x32xf32, #tpu.memory_space<vmem>>, vector<1x4x32xf32>,
    return
  }
  func.func @transform_0(%arg0: i32) -> (i32, i32, i32) {
    %c0_i32 = arith.constant 0 : i32
    %c0_i32_0 = arith.constant 0 : i32
    %c0_i32_1 = arith.constant 0 : i32
    return %arg0, %c0_i32, %c0_i32_0 : i32, i32, i32
  }
  func.func @transform_1(%arg0: i32) -> (i32, i32) {
    %c0_i32 = arith.constant 0 : i32
    %c0_i32_0 = arith.constant 0 : i32
    %c0_i32_1 = arith.constant 0 : i32
    return %c0_i32, %c0_i32_0 : i32, i32
  }
  func.func @transform_2(%arg0: i32) -> (i32, i32) {
    %c0_i32 = arith.constant 0 : i32
    %c0_i32_0 = arith.constant 0 : i32
    %c0_i32_1 = arith.constant 0 : i32
    return %c0_i32, %c0_i32_0 : i32, i32
  }
  func.func @transform_3(%arg0: i32) -> (i32, i32) {
    %c0_i32 = arith.constant 0 : i32
    %c0_i32_0 = arith.constant 0 : i32
    %c0_i32_1 = arith.constant 0 : i32
    return %c0_i32, %c0_i32_0 : i32, i32
  }
  func.func @transform_4(%arg0: i32) -> (i32, i32, i32) {
    %c0_i32 = arith.constant 0 : i32
    %c0_i32_0 = arith.constant 0 : i32
    %c0_i32_1 = arith.constant 0 : i32
    %c0_i32_2 = arith.constant 0 : i32
    return %c0_i32, %c0_i32_0, %c0_i32_1 : i32, i32, i32
  }
  func.func @transform_5(%arg0: i32) -> (i32, i32) {
    %c0_i32 = arith.constant 0 : i32
    %c0_i32_0 = arith.constant 0 : i32
    %c0_i32_1 = arith.constant 0 : i32
    return %c0_i32, %c0_i32_0 : i32, i32
  }
  func.func @transform_6(%arg0: i32) -> (i32, i32) {
    %c0_i32 = arith.constant 0 : i32
    %c0_i32_0 = arith.constant 0 : i32
    %c0_i32_1 = arith.constant 0 : i32
    return %c0_i32, %c0_i32_0 : i32, i32
  }
  func.func @transform_7(%arg0: i32) -> (i32, i32, i32) {
    %c0_i32 = arith.constant 0 : i32
    %c0_i32_0 = arith.constant 0 : i32
    %c0_i32_1 = arith.constant 0 : i32
    return %arg0, %c0_i32, %c0_i32_0 : i32, i32, i32
  }
  func.func @transform_8(%arg0: i32) -> (i32, i32, i32) {
    %c0_i32 = arith.constant 0 : i32
    %c0_i32_0 = arith.constant 0 : i32
    %c0_i32_1 = arith.constant 0 : i32
    return %arg0, %c0_i32, %c0_i32_0 : i32, i32, i32
  }
}

module attributes {stable_mosaic.version = 11 : i64} {
  func.func @_level_decomp_kernel(%arg0: i32, %arg1: memref<1x2x32xf32, #tpu.memory_space<vmem>>, %arg2: memref<32x32xf32, #tpu.memory_space<vmem>>, %arg3: memref<2x2xf32, #tpu.memory_space<vmem>>, %arg4: memref<2x2xf32, #tpu.memory_space<vmem>>, %arg5: memref<2x64x64xf32, #tpu.memory_space<vmem>>, %arg6: memref<2x2xf32, #tpu.memory_space<vmem>>, %arg7: memref<2x2xf32, #tpu.memory_space<vmem>>, %arg8: memref<1x2x32xf32, #tpu.memory_space<vmem>>, %arg9: memref<1x2x32xf32, #tpu.memory_space<vmem>>) attributes {dimension_semantics = [#tpu.dimension_semantics<parallel>], iteration_bounds = array<i64: 2>, scalar_prefetch = 0 : i64, scratch_operands = 0 : i64, tpu.core_type = #tpu.core_type<tc>, window_params = [{transform_indices = @transform_0, window_bounds = array<i64: 1, 2, 32>}, {pipeline_mode = #tpu.pipeline_mode<synchronous>, transform_indices = @transform_1, window_bounds = array<i64: 32, 32>}, {pipeline_mode = #tpu.pipeline_mode<synchronous>, transform_indices = @transform_2, window_bounds = array<i64: 2, 2>}, {pipeline_mode = #tpu.pipeline_mode<synchronous>, transform_indices = @transform_3, window_bounds = array<i64: 2, 2>}, {pipeline_mode = #tpu.pipeline_mode<synchronous>, transform_indices = @transform_4, window_bounds = array<i64: 2, 64, 64>}, {pipeline_mode = #tpu.pipeline_mode<synchronous>, transform_indices = @transform_5, window_bounds = array<i64: 2, 2>}, {pipeline_mode = #tpu.pipeline_mode<synchronous>, transform_indices = @transform_6, window_bounds = array<i64: 2, 2>}, {transform_indices = @transform_7, window_bounds = array<i64: 1, 2, 32>}, {transform_indices = @transform_8, window_bounds = array<i64: 1, 2, 32>}]} {
    %c0 = arith.constant 0 : index
    %c0_0 = arith.constant 0 : index
    %c0_1 = arith.constant 0 : index
    %0 = vector.load %arg1[%c0, %c0_0, %c0_1] : memref<1x2x32xf32, #tpu.memory_space<vmem>>, vector<1x2x32xf32>
    %1 = vector.shape_cast %0 : vector<1x2x32xf32> to vector<2x32xf32>
    %c0_2 = arith.constant 0 : index
    %c0_3 = arith.constant 0 : index
    %2 = vector.load %arg2[%c0_2, %c0_3] : memref<32x32xf32, #tpu.memory_space<vmem>>, vector<32x32xf32>
    %cst = arith.constant dense<0.000000e+00> : vector<2x32xf32>
    %3 = tpu.matmul %1, %2, %cst {dimension_numbers = #tpu.dot_dimension_numbers<[1], [0], [0], [1], [0, 0, 1, 1], [], []>} : vector<2x32xf32>, vector<32x32xf32>, vector<2x32xf32> -> vector<2x32xf32>
    %c0_4 = arith.constant 0 : index
    %c0_5 = arith.constant 0 : index
    %c0_6 = arith.constant 0 : index
    %4 = vector.load %arg9[%c0_4, %c0_5, %c0_6] : memref<1x2x32xf32, #tpu.memory_space<vmem>>, vector<1x2x32xf32>
    %5 = vector.shape_cast %4 : vector<1x2x32xf32> to vector<2x32xf32>
    %6 = vector.shape_cast %3 : vector<2x32xf32> to vector<1x2x32xf32>
    tpu.vector_store %arg9[%c0_4, %c0_5, %c0_6], %6 {strides = array<i32>} : memref<1x2x32xf32, #tpu.memory_space<vmem>>, vector<1x2x32xf32>,
    %c0_7 = arith.constant 0 : index
    %c0_8 = arith.constant 0 : index
    %7 = vector.load %arg3[%c0_7, %c0_8] : memref<2x2xf32, #tpu.memory_space<vmem>>, vector<2x2xf32>
    %cst_9 = arith.constant dense<0.000000e+00> : vector<2x32xf32>
    %8 = tpu.matmul %7, %3, %cst_9 {dimension_numbers = #tpu.dot_dimension_numbers<[1], [0], [0], [1], [0, 0, 1, 1], [], []>} : vector<2x2xf32>, vector<2x32xf32>, vector<2x32xf32> -> vector<2x32xf32>
    %c0_10 = arith.constant 0 : index
    %c0_11 = arith.constant 0 : index
    %9 = vector.load %arg4[%c0_10, %c0_11] : memref<2x2xf32, #tpu.memory_space<vmem>>, vector<2x2xf32>
    %cst_12 = arith.constant dense<0.000000e+00> : vector<2x32xf32>
    %10 = tpu.matmul %9, %3, %cst_12 {dimension_numbers = #tpu.dot_dimension_numbers<[1], [0], [0], [1], [0, 0, 1, 1], [], []>} : vector<2x2xf32>, vector<2x32xf32>, vector<2x32xf32> -> vector<2x32xf32>
    %11 = tpu.concatenate %8, %10 in 1 : vector<2x32xf32>, vector<2x32xf32> -> vector<2x64xf32>
    %12 = vector.extract_strided_slice %11 {offsets = [0, 0], sizes = [1, 64], strides = [1, 1]} : vector<2x64xf32> to vector<1x64xf32>
    %c0_13 = arith.constant 0 : index
    %c0_14 = arith.constant 0 : index
    %c0_15 = arith.constant 0 : index
    %13 = vector.load %arg5[%c0_13, %c0_14, %c0_15] : memref<2x64x64xf32, #tpu.memory_space<vmem>>, vector<1x64x64xf32>
    %14 = vector.shape_cast %13 : vector<1x64x64xf32> to vector<64x64xf32>
    %cst_16 = arith.constant dense<0.000000e+00> : vector<1x64xf32>
    %15 = tpu.matmul %12, %14, %cst_16 {dimension_numbers = #tpu.dot_dimension_numbers<[1], [0], [0], [1], [0, 0, 1, 1], [], []>} : vector<1x64xf32>, vector<64x64xf32>, vector<1x64xf32> -> vector<1x64xf32>
    %16 = vector.extract_strided_slice %11 {offsets = [1, 0], sizes = [1, 64], strides = [1, 1]} : vector<2x64xf32> to vector<1x64xf32>
    %c1 = arith.constant 1 : index
    %c0_17 = arith.constant 0 : index
    %c0_18 = arith.constant 0 : index
    %17 = vector.load %arg5[%c1, %c0_17, %c0_18] : memref<2x64x64xf32, #tpu.memory_space<vmem>>, vector<1x64x64xf32>
    %18 = vector.shape_cast %17 : vector<1x64x64xf32> to vector<64x64xf32>
    %cst_19 = arith.constant dense<0.000000e+00> : vector<1x64xf32>
    %19 = tpu.matmul %16, %18, %cst_19 {dimension_numbers = #tpu.dot_dimension_numbers<[1], [0], [0], [1], [0, 0, 1, 1], [], []>} : vector<1x64xf32>, vector<64x64xf32>, vector<1x64xf32> -> vector<1x64xf32>
    %20 = tpu.concatenate %15, %19 in 0 : vector<1x64xf32>, vector<1x64xf32> -> vector<2x64xf32>
    %c0_20 = arith.constant 0 : index
    %c0_21 = arith.constant 0 : index
    %21 = vector.load %arg6[%c0_20, %c0_21] : memref<2x2xf32, #tpu.memory_space<vmem>>, vector<2x2xf32>
    %22 = vector.extract_strided_slice %20 {offsets = [0, 0], sizes = [2, 32], strides = [1, 1]} : vector<2x64xf32> to vector<2x32xf32>
    %cst_22 = arith.constant dense<0.000000e+00> : vector<2x32xf32>
    %23 = tpu.matmul %21, %22, %cst_22 {dimension_numbers = #tpu.dot_dimension_numbers<[1], [0], [0], [1], [0, 0, 1, 1], [], []>} : vector<2x2xf32>, vector<2x32xf32>, vector<2x32xf32> -> vector<2x32xf32>
    %c0_23 = arith.constant 0 : index
    %c0_24 = arith.constant 0 : index
    %24 = vector.load %arg7[%c0_23, %c0_24] : memref<2x2xf32, #tpu.memory_space<vmem>>, vector<2x2xf32>
    %25 = vector.extract_strided_slice %20 {offsets = [0, 32], sizes = [2, 32], strides = [1, 1]} : vector<2x64xf32> to vector<2x32xf32>
    %cst_25 = arith.constant dense<0.000000e+00> : vector<2x32xf32>
    %26 = tpu.matmul %24, %25, %cst_25 {dimension_numbers = #tpu.dot_dimension_numbers<[1], [0], [0], [1], [0, 0, 1, 1], [], []>} : vector<2x2xf32>, vector<2x32xf32>, vector<2x32xf32> -> vector<2x32xf32>
    %27 = arith.addf %23, %26 : vector<2x32xf32>
    %c0_26 = arith.constant 0 : index
    %c0_27 = arith.constant 0 : index
    %c0_28 = arith.constant 0 : index
    %28 = vector.load %arg8[%c0_26, %c0_27, %c0_28] : memref<1x2x32xf32, #tpu.memory_space<vmem>>, vector<1x2x32xf32>
    %29 = vector.shape_cast %28 : vector<1x2x32xf32> to vector<2x32xf32>
    %30 = vector.shape_cast %27 : vector<2x32xf32> to vector<1x2x32xf32>
    tpu.vector_store %arg8[%c0_26, %c0_27, %c0_28], %30 {strides = array<i32>} : memref<1x2x32xf32, #tpu.memory_space<vmem>>, vector<1x2x32xf32>,
    return
  }
  func.func @transform_0(%arg0: i32) -> (i32, i32, i32) {
    %c0_i32 = arith.constant 0 : i32
    %c0_i32_0 = arith.constant 0 : i32
    %c0_i32_1 = arith.constant 0 : i32
    return %arg0, %c0_i32, %c0_i32_0 : i32, i32, i32
  }
  func.func @transform_1(%arg0: i32) -> (i32, i32) {
    %c0_i32 = arith.constant 0 : i32
    %c0_i32_0 = arith.constant 0 : i32
    %c0_i32_1 = arith.constant 0 : i32
    return %c0_i32, %c0_i32_0 : i32, i32
  }
  func.func @transform_2(%arg0: i32) -> (i32, i32) {
    %c0_i32 = arith.constant 0 : i32
    %c0_i32_0 = arith.constant 0 : i32
    %c0_i32_1 = arith.constant 0 : i32
    return %c0_i32, %c0_i32_0 : i32, i32
  }
  func.func @transform_3(%arg0: i32) -> (i32, i32) {
    %c0_i32 = arith.constant 0 : i32
    %c0_i32_0 = arith.constant 0 : i32
    %c0_i32_1 = arith.constant 0 : i32
    return %c0_i32, %c0_i32_0 : i32, i32
  }
  func.func @transform_4(%arg0: i32) -> (i32, i32, i32) {
    %c0_i32 = arith.constant 0 : i32
    %c0_i32_0 = arith.constant 0 : i32
    %c0_i32_1 = arith.constant 0 : i32
    %c0_i32_2 = arith.constant 0 : i32
    return %c0_i32, %c0_i32_0, %c0_i32_1 : i32, i32, i32
  }
  func.func @transform_5(%arg0: i32) -> (i32, i32) {
    %c0_i32 = arith.constant 0 : i32
    %c0_i32_0 = arith.constant 0 : i32
    %c0_i32_1 = arith.constant 0 : i32
    return %c0_i32, %c0_i32_0 : i32, i32
  }
  func.func @transform_6(%arg0: i32) -> (i32, i32) {
    %c0_i32 = arith.constant 0 : i32
    %c0_i32_0 = arith.constant 0 : i32
    %c0_i32_1 = arith.constant 0 : i32
    return %c0_i32, %c0_i32_0 : i32, i32
  }
  func.func @transform_7(%arg0: i32) -> (i32, i32, i32) {
    %c0_i32 = arith.constant 0 : i32
    %c0_i32_0 = arith.constant 0 : i32
    %c0_i32_1 = arith.constant 0 : i32
    return %arg0, %c0_i32, %c0_i32_0 : i32, i32, i32
  }
  func.func @transform_8(%arg0: i32) -> (i32, i32, i32) {
    %c0_i32 = arith.constant 0 : i32
    %c0_i32_0 = arith.constant 0 : i32
    %c0_i32_1 = arith.constant 0 : i32
    return %arg0, %c0_i32, %c0_i32_0 : i32, i32, i32
  }
}

module attributes {stable_mosaic.version = 11 : i64} {
  func.func @_level_decomp_kernel(%arg0: i32, %arg1: memref<1x1x32xf32, #tpu.memory_space<vmem>>, %arg2: memref<32x32xf32, #tpu.memory_space<vmem>>, %arg3: memref<1x1xf32, #tpu.memory_space<vmem>>, %arg4: memref<1x1xf32, #tpu.memory_space<vmem>>, %arg5: memref<1x64x64xf32, #tpu.memory_space<vmem>>, %arg6: memref<1x1xf32, #tpu.memory_space<vmem>>, %arg7: memref<1x1xf32, #tpu.memory_space<vmem>>, %arg8: memref<1x1x32xf32, #tpu.memory_space<vmem>>, %arg9: memref<1x1x32xf32, #tpu.memory_space<vmem>>) attributes {dimension_semantics = [#tpu.dimension_semantics<parallel>], iteration_bounds = array<i64: 2>, scalar_prefetch = 0 : i64, scratch_operands = 0 : i64, tpu.core_type = #tpu.core_type<tc>, window_params = [{transform_indices = @transform_0, window_bounds = array<i64: 1, 1, 32>}, {pipeline_mode = #tpu.pipeline_mode<synchronous>, transform_indices = @transform_1, window_bounds = array<i64: 32, 32>}, {pipeline_mode = #tpu.pipeline_mode<synchronous>, transform_indices = @transform_2, window_bounds = array<i64: 1, 1>}, {pipeline_mode = #tpu.pipeline_mode<synchronous>, transform_indices = @transform_3, window_bounds = array<i64: 1, 1>}, {pipeline_mode = #tpu.pipeline_mode<synchronous>, transform_indices = @transform_4, window_bounds = array<i64: 1, 64, 64>}, {pipeline_mode = #tpu.pipeline_mode<synchronous>, transform_indices = @transform_5, window_bounds = array<i64: 1, 1>}, {pipeline_mode = #tpu.pipeline_mode<synchronous>, transform_indices = @transform_6, window_bounds = array<i64: 1, 1>}, {transform_indices = @transform_7, window_bounds = array<i64: 1, 1, 32>}, {transform_indices = @transform_8, window_bounds = array<i64: 1, 1, 32>}]} {
    %c0 = arith.constant 0 : index
    %c0_0 = arith.constant 0 : index
    %c0_1 = arith.constant 0 : index
    %0 = vector.load %arg1[%c0, %c0_0, %c0_1] : memref<1x1x32xf32, #tpu.memory_space<vmem>>, vector<1x1x32xf32>
    %1 = vector.shape_cast %0 : vector<1x1x32xf32> to vector<1x32xf32>
    %c0_2 = arith.constant 0 : index
    %c0_3 = arith.constant 0 : index
    %2 = vector.load %arg2[%c0_2, %c0_3] : memref<32x32xf32, #tpu.memory_space<vmem>>, vector<32x32xf32>
    %cst = arith.constant dense<0.000000e+00> : vector<1x32xf32>
    %3 = tpu.matmul %1, %2, %cst {dimension_numbers = #tpu.dot_dimension_numbers<[1], [0], [0], [1], [0, 0, 1, 1], [], []>} : vector<1x32xf32>, vector<32x32xf32>, vector<1x32xf32> -> vector<1x32xf32>
    %c0_4 = arith.constant 0 : index
    %c0_5 = arith.constant 0 : index
    %c0_6 = arith.constant 0 : index
    %4 = vector.load %arg9[%c0_4, %c0_5, %c0_6] : memref<1x1x32xf32, #tpu.memory_space<vmem>>, vector<1x1x32xf32>
    %5 = vector.shape_cast %4 : vector<1x1x32xf32> to vector<1x32xf32>
    %6 = vector.shape_cast %3 : vector<1x32xf32> to vector<1x1x32xf32>
    tpu.vector_store %arg9[%c0_4, %c0_5, %c0_6], %6 {strides = array<i32>} : memref<1x1x32xf32, #tpu.memory_space<vmem>>, vector<1x1x32xf32>,
    %c0_7 = arith.constant 0 : index
    %c0_8 = arith.constant 0 : index
    %7 = vector.load %arg3[%c0_7, %c0_8] : memref<1x1xf32, #tpu.memory_space<vmem>>, vector<1x1xf32>
    %cst_9 = arith.constant dense<0.000000e+00> : vector<1x32xf32>
    %8 = tpu.matmul %7, %3, %cst_9 {dimension_numbers = #tpu.dot_dimension_numbers<[1], [0], [0], [1], [0, 0, 1, 1], [], []>} : vector<1x1xf32>, vector<1x32xf32>, vector<1x32xf32> -> vector<1x32xf32>
    %c0_10 = arith.constant 0 : index
    %c0_11 = arith.constant 0 : index
    %9 = vector.load %arg4[%c0_10, %c0_11] : memref<1x1xf32, #tpu.memory_space<vmem>>, vector<1x1xf32>
    %cst_12 = arith.constant dense<0.000000e+00> : vector<1x32xf32>
    %10 = tpu.matmul %9, %3, %cst_12 {dimension_numbers = #tpu.dot_dimension_numbers<[1], [0], [0], [1], [0, 0, 1, 1], [], []>} : vector<1x1xf32>, vector<1x32xf32>, vector<1x32xf32> -> vector<1x32xf32>
    %11 = tpu.concatenate %8, %10 in 1 : vector<1x32xf32>, vector<1x32xf32> -> vector<1x64xf32>
    %c0_13 = arith.constant 0 : index
    %c0_14 = arith.constant 0 : index
    %c0_15 = arith.constant 0 : index
    %12 = vector.load %arg5[%c0_13, %c0_14, %c0_15] : memref<1x64x64xf32, #tpu.memory_space<vmem>>, vector<1x64x64xf32>
    %13 = vector.shape_cast %12 : vector<1x64x64xf32> to vector<64x64xf32>
    %cst_16 = arith.constant dense<0.000000e+00> : vector<1x64xf32>
    %14 = tpu.matmul %11, %13, %cst_16 {dimension_numbers = #tpu.dot_dimension_numbers<[1], [0], [0], [1], [0, 0, 1, 1], [], []>} : vector<1x64xf32>, vector<64x64xf32>, vector<1x64xf32> -> vector<1x64xf32>
    %c0_17 = arith.constant 0 : index
    %c0_18 = arith.constant 0 : index
    %15 = vector.load %arg6[%c0_17, %c0_18] : memref<1x1xf32, #tpu.memory_space<vmem>>, vector<1x1xf32>
    %16 = vector.extract_strided_slice %14 {offsets = [0, 0], sizes = [1, 32], strides = [1, 1]} : vector<1x64xf32> to vector<1x32xf32>
    %cst_19 = arith.constant dense<0.000000e+00> : vector<1x32xf32>
    %17 = tpu.matmul %15, %16, %cst_19 {dimension_numbers = #tpu.dot_dimension_numbers<[1], [0], [0], [1], [0, 0, 1, 1], [], []>} : vector<1x1xf32>, vector<1x32xf32>, vector<1x32xf32> -> vector<1x32xf32>
    %c0_20 = arith.constant 0 : index
    %c0_21 = arith.constant 0 : index
    %18 = vector.load %arg7[%c0_20, %c0_21] : memref<1x1xf32, #tpu.memory_space<vmem>>, vector<1x1xf32>
    %19 = vector.extract_strided_slice %14 {offsets = [0, 32], sizes = [1, 32], strides = [1, 1]} : vector<1x64xf32> to vector<1x32xf32>
    %cst_22 = arith.constant dense<0.000000e+00> : vector<1x32xf32>
    %20 = tpu.matmul %18, %19, %cst_22 {dimension_numbers = #tpu.dot_dimension_numbers<[1], [0], [0], [1], [0, 0, 1, 1], [], []>} : vector<1x1xf32>, vector<1x32xf32>, vector<1x32xf32> -> vector<1x32xf32>
    %21 = arith.addf %17, %20 : vector<1x32xf32>
    %c0_23 = arith.constant 0 : index
    %c0_24 = arith.constant 0 : index
    %c0_25 = arith.constant 0 : index
    %22 = vector.load %arg8[%c0_23, %c0_24, %c0_25] : memref<1x1x32xf32, #tpu.memory_space<vmem>>, vector<1x1x32xf32>
    %23 = vector.shape_cast %22 : vector<1x1x32xf32> to vector<1x32xf32>
    %24 = vector.shape_cast %21 : vector<1x32xf32> to vector<1x1x32xf32>
    tpu.vector_store %arg8[%c0_23, %c0_24, %c0_25], %24 {strides = array<i32>} : memref<1x1x32xf32, #tpu.memory_space<vmem>>, vector<1x1x32xf32>,
    return
  }
  func.func @transform_0(%arg0: i32) -> (i32, i32, i32) {
    %c0_i32 = arith.constant 0 : i32
    %c0_i32_0 = arith.constant 0 : i32
    %c0_i32_1 = arith.constant 0 : i32
    return %arg0, %c0_i32, %c0_i32_0 : i32, i32, i32
  }
  func.func @transform_1(%arg0: i32) -> (i32, i32) {
    %c0_i32 = arith.constant 0 : i32
    %c0_i32_0 = arith.constant 0 : i32
    %c0_i32_1 = arith.constant 0 : i32
    return %c0_i32, %c0_i32_0 : i32, i32
  }
  func.func @transform_2(%arg0: i32) -> (i32, i32) {
    %c0_i32 = arith.constant 0 : i32
    %c0_i32_0 = arith.constant 0 : i32
    %c0_i32_1 = arith.constant 0 : i32
    return %c0_i32, %c0_i32_0 : i32, i32
  }
  func.func @transform_3(%arg0: i32) -> (i32, i32) {
    %c0_i32 = arith.constant 0 : i32
    %c0_i32_0 = arith.constant 0 : i32
    %c0_i32_1 = arith.constant 0 : i32
    return %c0_i32, %c0_i32_0 : i32, i32
  }
  func.func @transform_4(%arg0: i32) -> (i32, i32, i32) {
    %c0_i32 = arith.constant 0 : i32
    %c0_i32_0 = arith.constant 0 : i32
    %c0_i32_1 = arith.constant 0 : i32
    %c0_i32_2 = arith.constant 0 : i32
    return %c0_i32, %c0_i32_0, %c0_i32_1 : i32, i32, i32
  }
  func.func @transform_5(%arg0: i32) -> (i32, i32) {
    %c0_i32 = arith.constant 0 : i32
    %c0_i32_0 = arith.constant 0 : i32
    %c0_i32_1 = arith.constant 0 : i32
    return %c0_i32, %c0_i32_0 : i32, i32
  }
  func.func @transform_6(%arg0: i32) -> (i32, i32) {
    %c0_i32 = arith.constant 0 : i32
    %c0_i32_0 = arith.constant 0 : i32
    %c0_i32_1 = arith.constant 0 : i32
    return %c0_i32, %c0_i32_0 : i32, i32
  }
  func.func @transform_7(%arg0: i32) -> (i32, i32, i32) {
    %c0_i32 = arith.constant 0 : i32
    %c0_i32_0 = arith.constant 0 : i32
    %c0_i32_1 = arith.constant 0 : i32
    return %arg0, %c0_i32, %c0_i32_0 : i32, i32, i32
  }
  func.func @transform_8(%arg0: i32) -> (i32, i32, i32) {
    %c0_i32 = arith.constant 0 : i32
    %c0_i32_0 = arith.constant 0 : i32
    %c0_i32_1 = arith.constant 0 : i32
    return %arg0, %c0_i32, %c0_i32_0 : i32, i32, i32
  }
}

module attributes {stable_mosaic.version = 11 : i64} {
  func.func @_linear_kernel(%arg0: i32, %arg1: memref<2x16xf32, #tpu.memory_space<vmem>>, %arg2: memref<16x16xf32, #tpu.memory_space<vmem>>, %arg3: memref<1x16xf32, #tpu.memory_space<vmem>>, %arg4: memref<2x16xf32, #tpu.memory_space<vmem>>) attributes {dimension_semantics = [#tpu.dimension_semantics<arbitrary>], iteration_bounds = array<i64: 1>, scalar_prefetch = 0 : i64, scratch_operands = 0 : i64, tpu.core_type = #tpu.core_type<tc>, window_params = [{pipeline_mode = #tpu.pipeline_mode<synchronous>, transform_indices = @transform_0, window_bounds = array<i64: 2, 16>}, {pipeline_mode = #tpu.pipeline_mode<synchronous>, transform_indices = @transform_1, window_bounds = array<i64: 16, 16>}, {pipeline_mode = #tpu.pipeline_mode<synchronous>, transform_indices = @transform_2, window_bounds = array<i64: 1, 16>}, {pipeline_mode = #tpu.pipeline_mode<synchronous>, transform_indices = @transform_3, window_bounds = array<i64: 2, 16>}]} {
    %c0 = arith.constant 0 : index
    %c0_0 = arith.constant 0 : index
    %0 = vector.load %arg1[%c0, %c0_0] : memref<2x16xf32, #tpu.memory_space<vmem>>, vector<2x16xf32>
    %c0_1 = arith.constant 0 : index
    %c0_2 = arith.constant 0 : index
    %1 = vector.load %arg2[%c0_1, %c0_2] : memref<16x16xf32, #tpu.memory_space<vmem>>, vector<16x16xf32>
    %cst = arith.constant dense<0.000000e+00> : vector<2x16xf32>
    %2 = tpu.matmul %0, %1, %cst {dimension_numbers = #tpu.dot_dimension_numbers<[1], [0], [0], [1], [0, 0, 1, 1], [], []>} : vector<2x16xf32>, vector<16x16xf32>, vector<2x16xf32> -> vector<2x16xf32>
    %c0_3 = arith.constant 0 : index
    %c0_4 = arith.constant 0 : index
    %3 = vector.load %arg3[%c0_3, %c0_4] : memref<1x16xf32, #tpu.memory_space<vmem>>, vector<1x16xf32>
    %4 = vector.broadcast %3 : vector<1x16xf32> to vector<2x16xf32>
    %5 = arith.addf %2, %4 : vector<2x16xf32>
    %c0_5 = arith.constant 0 : index
    %c0_6 = arith.constant 0 : index
    %6 = vector.load %arg4[%c0_5, %c0_6] : memref<2x16xf32, #tpu.memory_space<vmem>>, vector<2x16xf32>
    tpu.vector_store %arg4[%c0_5, %c0_6], %5 {strides = array<i32>} : memref<2x16xf32, #tpu.memory_space<vmem>>, vector<2x16xf32>,
    return
  }
  func.func @transform_0(%arg0: i32) -> (i32, i32) {
    %c0_i32 = arith.constant 0 : i32
    %c0_i32_0 = arith.constant 0 : i32
    %c0_i32_1 = arith.constant 0 : i32
    return %c0_i32, %c0_i32_0 : i32, i32
  }
  func.func @transform_1(%arg0: i32) -> (i32, i32) {
    %c0_i32 = arith.constant 0 : i32
    %c0_i32_0 = arith.constant 0 : i32
    %c0_i32_1 = arith.constant 0 : i32
    return %c0_i32, %c0_i32_0 : i32, i32
  }
  func.func @transform_2(%arg0: i32) -> (i32, i32) {
    %c0_i32 = arith.constant 0 : i32
    %c0_i32_0 = arith.constant 0 : i32
    %c0_i32_1 = arith.constant 0 : i32
    return %c0_i32, %c0_i32_0 : i32, i32
  }
  func.func @transform_3(%arg0: i32) -> (i32, i32) {
    %c0_i32 = arith.constant 0 : i32
    %c0_i32_0 = arith.constant 0 : i32
    %c0_i32_1 = arith.constant 0 : i32
    return %c0_i32, %c0_i32_0 : i32, i32
  }
}

module attributes {stable_mosaic.version = 11 : i64} {
  func.func @_level_recon_kernel(%arg0: i32, %arg1: memref<1x1x16xf32, #tpu.memory_space<vmem>>, %arg2: memref<1x1x16xf32, #tpu.memory_space<vmem>>, %arg3: memref<1x1x16xf32, #tpu.memory_space<vmem>>, %arg4: memref<32x32xf32, #tpu.memory_space<vmem>>, %arg5: memref<1x1x32xf32, #tpu.memory_space<vmem>>) attributes {dimension_semantics = [#tpu.dimension_semantics<parallel>], iteration_bounds = array<i64: 2>, scalar_prefetch = 0 : i64, scratch_operands = 0 : i64, tpu.core_type = #tpu.core_type<tc>, window_params = [{transform_indices = @transform_0, window_bounds = array<i64: 1, 1, 16>}, {transform_indices = @transform_1, window_bounds = array<i64: 1, 1, 16>}, {transform_indices = @transform_2, window_bounds = array<i64: 1, 1, 16>}, {pipeline_mode = #tpu.pipeline_mode<synchronous>, transform_indices = @transform_3, window_bounds = array<i64: 32, 32>}, {transform_indices = @transform_4, window_bounds = array<i64: 1, 1, 32>}]} {
    %c0 = arith.constant 0 : index
    %c0_0 = arith.constant 0 : index
    %c0_1 = arith.constant 0 : index
    %0 = vector.load %arg1[%c0, %c0_0, %c0_1] : memref<1x1x16xf32, #tpu.memory_space<vmem>>, vector<1x1x16xf32>
    %1 = vector.shape_cast %0 : vector<1x1x16xf32> to vector<1x16xf32>
    %c0_2 = arith.constant 0 : index
    %c0_3 = arith.constant 0 : index
    %c0_4 = arith.constant 0 : index
    %2 = vector.load %arg2[%c0_2, %c0_3, %c0_4] : memref<1x1x16xf32, #tpu.memory_space<vmem>>, vector<1x1x16xf32>
    %3 = vector.shape_cast %2 : vector<1x1x16xf32> to vector<1x16xf32>
    %4 = arith.addf %1, %3 : vector<1x16xf32>
    %c0_5 = arith.constant 0 : index
    %c0_6 = arith.constant 0 : index
    %c0_7 = arith.constant 0 : index
    %5 = vector.load %arg3[%c0_5, %c0_6, %c0_7] : memref<1x1x16xf32, #tpu.memory_space<vmem>>, vector<1x1x16xf32>
    %6 = vector.shape_cast %5 : vector<1x1x16xf32> to vector<1x16xf32>
    %7 = tpu.concatenate %4, %6 in 1 : vector<1x16xf32>, vector<1x16xf32> -> vector<1x32xf32>
    %c0_8 = arith.constant 0 : index
    %c0_9 = arith.constant 0 : index
    %8 = vector.load %arg4[%c0_8, %c0_9] : memref<32x32xf32, #tpu.memory_space<vmem>>, vector<32x32xf32>
    %cst = arith.constant dense<0.000000e+00> : vector<1x32xf32>
    %9 = tpu.matmul %7, %8, %cst {dimension_numbers = #tpu.dot_dimension_numbers<[1], [0], [0], [1], [0, 0, 1, 1], [], []>} : vector<1x32xf32>, vector<32x32xf32>, vector<1x32xf32> -> vector<1x32xf32>
    %c0_10 = arith.constant 0 : index
    %c0_11 = arith.constant 0 : index
    %c0_12 = arith.constant 0 : index
    %10 = vector.load %arg5[%c0_10, %c0_11, %c0_12] : memref<1x1x32xf32, #tpu.memory_space<vmem>>, vector<1x1x32xf32>
    %11 = vector.shape_cast %10 : vector<1x1x32xf32> to vector<1x32xf32>
    %12 = vector.shape_cast %9 : vector<1x32xf32> to vector<1x1x32xf32>
    tpu.vector_store %arg5[%c0_10, %c0_11, %c0_12], %12 {strides = array<i32>} : memref<1x1x32xf32, #tpu.memory_space<vmem>>, vector<1x1x32xf32>,
    return
  }
  func.func @transform_0(%arg0: i32) -> (i32, i32, i32) {
    %c0_i32 = arith.constant 0 : i32
    %c0_i32_0 = arith.constant 0 : i32
    %c0_i32_1 = arith.constant 0 : i32
    return %arg0, %c0_i32, %c0_i32_0 : i32, i32, i32
  }
  func.func @transform_1(%arg0: i32) -> (i32, i32, i32) {
    %c0_i32 = arith.constant 0 : i32
    %c0_i32_0 = arith.constant 0 : i32
    %c0_i32_1 = arith.constant 0 : i32
    return %arg0, %c0_i32, %c0_i32_0 : i32, i32, i32
  }
  func.func @transform_2(%arg0: i32) -> (i32, i32, i32) {
    %c0_i32 = arith.constant 0 : i32
    %c0_i32_0 = arith.constant 0 : i32
    %c0_i32_1 = arith.constant 0 : i32
    return %arg0, %c0_i32, %c0_i32_0 : i32, i32, i32
  }
  func.func @transform_3(%arg0: i32) -> (i32, i32) {
    %c0_i32 = arith.constant 0 : i32
    %c0_i32_0 = arith.constant 0 : i32
    %c0_i32_1 = arith.constant 0 : i32
    return %c0_i32, %c0_i32_0 : i32, i32
  }
  func.func @transform_4(%arg0: i32) -> (i32, i32, i32) {
    %c0_i32 = arith.constant 0 : i32
    %c0_i32_0 = arith.constant 0 : i32
    %c0_i32_1 = arith.constant 0 : i32
    return %arg0, %c0_i32, %c0_i32_0 : i32, i32, i32
  }
}

module attributes {stable_mosaic.version = 11 : i64} {
  func.func @_level_recon_kernel(%arg0: i32, %arg1: memref<1x2x16xf32, #tpu.memory_space<vmem>>, %arg2: memref<1x2x16xf32, #tpu.memory_space<vmem>>, %arg3: memref<1x2x16xf32, #tpu.memory_space<vmem>>, %arg4: memref<32x32xf32, #tpu.memory_space<vmem>>, %arg5: memref<1x2x32xf32, #tpu.memory_space<vmem>>) attributes {dimension_semantics = [#tpu.dimension_semantics<parallel>], iteration_bounds = array<i64: 2>, scalar_prefetch = 0 : i64, scratch_operands = 0 : i64, tpu.core_type = #tpu.core_type<tc>, window_params = [{transform_indices = @transform_0, window_bounds = array<i64: 1, 2, 16>}, {transform_indices = @transform_1, window_bounds = array<i64: 1, 2, 16>}, {transform_indices = @transform_2, window_bounds = array<i64: 1, 2, 16>}, {pipeline_mode = #tpu.pipeline_mode<synchronous>, transform_indices = @transform_3, window_bounds = array<i64: 32, 32>}, {transform_indices = @transform_4, window_bounds = array<i64: 1, 2, 32>}]} {
    %c0 = arith.constant 0 : index
    %c0_0 = arith.constant 0 : index
    %c0_1 = arith.constant 0 : index
    %0 = vector.load %arg1[%c0, %c0_0, %c0_1] : memref<1x2x16xf32, #tpu.memory_space<vmem>>, vector<1x2x16xf32>
    %1 = vector.shape_cast %0 : vector<1x2x16xf32> to vector<2x16xf32>
    %c0_2 = arith.constant 0 : index
    %c0_3 = arith.constant 0 : index
    %c0_4 = arith.constant 0 : index
    %2 = vector.load %arg2[%c0_2, %c0_3, %c0_4] : memref<1x2x16xf32, #tpu.memory_space<vmem>>, vector<1x2x16xf32>
    %3 = vector.shape_cast %2 : vector<1x2x16xf32> to vector<2x16xf32>
    %4 = arith.addf %1, %3 : vector<2x16xf32>
    %c0_5 = arith.constant 0 : index
    %c0_6 = arith.constant 0 : index
    %c0_7 = arith.constant 0 : index
    %5 = vector.load %arg3[%c0_5, %c0_6, %c0_7] : memref<1x2x16xf32, #tpu.memory_space<vmem>>, vector<1x2x16xf32>
    %6 = vector.shape_cast %5 : vector<1x2x16xf32> to vector<2x16xf32>
    %7 = tpu.concatenate %4, %6 in 1 : vector<2x16xf32>, vector<2x16xf32> -> vector<2x32xf32>
    %c0_8 = arith.constant 0 : index
    %c0_9 = arith.constant 0 : index
    %8 = vector.load %arg4[%c0_8, %c0_9] : memref<32x32xf32, #tpu.memory_space<vmem>>, vector<32x32xf32>
    %cst = arith.constant dense<0.000000e+00> : vector<2x32xf32>
    %9 = tpu.matmul %7, %8, %cst {dimension_numbers = #tpu.dot_dimension_numbers<[1], [0], [0], [1], [0, 0, 1, 1], [], []>} : vector<2x32xf32>, vector<32x32xf32>, vector<2x32xf32> -> vector<2x32xf32>
    %c0_10 = arith.constant 0 : index
    %c0_11 = arith.constant 0 : index
    %c0_12 = arith.constant 0 : index
    %10 = vector.load %arg5[%c0_10, %c0_11, %c0_12] : memref<1x2x32xf32, #tpu.memory_space<vmem>>, vector<1x2x32xf32>
    %11 = vector.shape_cast %10 : vector<1x2x32xf32> to vector<2x32xf32>
    %12 = vector.shape_cast %9 : vector<2x32xf32> to vector<1x2x32xf32>
    tpu.vector_store %arg5[%c0_10, %c0_11, %c0_12], %12 {strides = array<i32>} : memref<1x2x32xf32, #tpu.memory_space<vmem>>, vector<1x2x32xf32>,
    return
  }
  func.func @transform_0(%arg0: i32) -> (i32, i32, i32) {
    %c0_i32 = arith.constant 0 : i32
    %c0_i32_0 = arith.constant 0 : i32
    %c0_i32_1 = arith.constant 0 : i32
    return %arg0, %c0_i32, %c0_i32_0 : i32, i32, i32
  }
  func.func @transform_1(%arg0: i32) -> (i32, i32, i32) {
    %c0_i32 = arith.constant 0 : i32
    %c0_i32_0 = arith.constant 0 : i32
    %c0_i32_1 = arith.constant 0 : i32
    return %arg0, %c0_i32, %c0_i32_0 : i32, i32, i32
  }
  func.func @transform_2(%arg0: i32) -> (i32, i32, i32) {
    %c0_i32 = arith.constant 0 : i32
    %c0_i32_0 = arith.constant 0 : i32
    %c0_i32_1 = arith.constant 0 : i32
    return %arg0, %c0_i32, %c0_i32_0 : i32, i32, i32
  }
  func.func @transform_3(%arg0: i32) -> (i32, i32) {
    %c0_i32 = arith.constant 0 : i32
    %c0_i32_0 = arith.constant 0 : i32
    %c0_i32_1 = arith.constant 0 : i32
    return %c0_i32, %c0_i32_0 : i32, i32
  }
  func.func @transform_4(%arg0: i32) -> (i32, i32, i32) {
    %c0_i32 = arith.constant 0 : i32
    %c0_i32_0 = arith.constant 0 : i32
    %c0_i32_1 = arith.constant 0 : i32
    return %arg0, %c0_i32, %c0_i32_0 : i32, i32, i32
  }
}

module attributes {stable_mosaic.version = 11 : i64} {
  func.func @_level_recon_kernel(%arg0: i32, %arg1: memref<1x4x16xf32, #tpu.memory_space<vmem>>, %arg2: memref<1x4x16xf32, #tpu.memory_space<vmem>>, %arg3: memref<1x4x16xf32, #tpu.memory_space<vmem>>, %arg4: memref<32x32xf32, #tpu.memory_space<vmem>>, %arg5: memref<1x4x32xf32, #tpu.memory_space<vmem>>) attributes {dimension_semantics = [#tpu.dimension_semantics<parallel>], iteration_bounds = array<i64: 2>, scalar_prefetch = 0 : i64, scratch_operands = 0 : i64, tpu.core_type = #tpu.core_type<tc>, window_params = [{transform_indices = @transform_0, window_bounds = array<i64: 1, 4, 16>}, {transform_indices = @transform_1, window_bounds = array<i64: 1, 4, 16>}, {transform_indices = @transform_2, window_bounds = array<i64: 1, 4, 16>}, {pipeline_mode = #tpu.pipeline_mode<synchronous>, transform_indices = @transform_3, window_bounds = array<i64: 32, 32>}, {transform_indices = @transform_4, window_bounds = array<i64: 1, 4, 32>}]} {
    %c0 = arith.constant 0 : index
    %c0_0 = arith.constant 0 : index
    %c0_1 = arith.constant 0 : index
    %0 = vector.load %arg1[%c0, %c0_0, %c0_1] : memref<1x4x16xf32, #tpu.memory_space<vmem>>, vector<1x4x16xf32>
    %1 = vector.shape_cast %0 : vector<1x4x16xf32> to vector<4x16xf32>
    %c0_2 = arith.constant 0 : index
    %c0_3 = arith.constant 0 : index
    %c0_4 = arith.constant 0 : index
    %2 = vector.load %arg2[%c0_2, %c0_3, %c0_4] : memref<1x4x16xf32, #tpu.memory_space<vmem>>, vector<1x4x16xf32>
    %3 = vector.shape_cast %2 : vector<1x4x16xf32> to vector<4x16xf32>
    %4 = arith.addf %1, %3 : vector<4x16xf32>
    %c0_5 = arith.constant 0 : index
    %c0_6 = arith.constant 0 : index
    %c0_7 = arith.constant 0 : index
    %5 = vector.load %arg3[%c0_5, %c0_6, %c0_7] : memref<1x4x16xf32, #tpu.memory_space<vmem>>, vector<1x4x16xf32>
    %6 = vector.shape_cast %5 : vector<1x4x16xf32> to vector<4x16xf32>
    %7 = tpu.concatenate %4, %6 in 1 : vector<4x16xf32>, vector<4x16xf32> -> vector<4x32xf32>
    %c0_8 = arith.constant 0 : index
    %c0_9 = arith.constant 0 : index
    %8 = vector.load %arg4[%c0_8, %c0_9] : memref<32x32xf32, #tpu.memory_space<vmem>>, vector<32x32xf32>
    %cst = arith.constant dense<0.000000e+00> : vector<4x32xf32>
    %9 = tpu.matmul %7, %8, %cst {dimension_numbers = #tpu.dot_dimension_numbers<[1], [0], [0], [1], [0, 0, 1, 1], [], []>} : vector<4x32xf32>, vector<32x32xf32>, vector<4x32xf32> -> vector<4x32xf32>
    %c0_10 = arith.constant 0 : index
    %c0_11 = arith.constant 0 : index
    %c0_12 = arith.constant 0 : index
    %10 = vector.load %arg5[%c0_10, %c0_11, %c0_12] : memref<1x4x32xf32, #tpu.memory_space<vmem>>, vector<1x4x32xf32>
    %11 = vector.shape_cast %10 : vector<1x4x32xf32> to vector<4x32xf32>
    %12 = vector.shape_cast %9 : vector<4x32xf32> to vector<1x4x32xf32>
    tpu.vector_store %arg5[%c0_10, %c0_11, %c0_12], %12 {strides = array<i32>} : memref<1x4x32xf32, #tpu.memory_space<vmem>>, vector<1x4x32xf32>,
    return
  }
  func.func @transform_0(%arg0: i32) -> (i32, i32, i32) {
    %c0_i32 = arith.constant 0 : i32
    %c0_i32_0 = arith.constant 0 : i32
    %c0_i32_1 = arith.constant 0 : i32
    return %arg0, %c0_i32, %c0_i32_0 : i32, i32, i32
  }
  func.func @transform_1(%arg0: i32) -> (i32, i32, i32) {
    %c0_i32 = arith.constant 0 : i32
    %c0_i32_0 = arith.constant 0 : i32
    %c0_i32_1 = arith.constant 0 : i32
    return %arg0, %c0_i32, %c0_i32_0 : i32, i32, i32
  }
  func.func @transform_2(%arg0: i32) -> (i32, i32, i32) {
    %c0_i32 = arith.constant 0 : i32
    %c0_i32_0 = arith.constant 0 : i32
    %c0_i32_1 = arith.constant 0 : i32
    return %arg0, %c0_i32, %c0_i32_0 : i32, i32, i32
  }
  func.func @transform_3(%arg0: i32) -> (i32, i32) {
    %c0_i32 = arith.constant 0 : i32
    %c0_i32_0 = arith.constant 0 : i32
    %c0_i32_1 = arith.constant 0 : i32
    return %c0_i32, %c0_i32_0 : i32, i32
  }
  func.func @transform_4(%arg0: i32) -> (i32, i32, i32) {
    %c0_i32 = arith.constant 0 : i32
    %c0_i32_0 = arith.constant 0 : i32
    %c0_i32_1 = arith.constant 0 : i32
    return %arg0, %c0_i32, %c0_i32_0 : i32, i32, i32
  }
}

module attributes {stable_mosaic.version = 11 : i64} {
  func.func @_level_recon_kernel(%arg0: i32, %arg1: memref<1x8x16xf32, #tpu.memory_space<vmem>>, %arg2: memref<1x8x16xf32, #tpu.memory_space<vmem>>, %arg3: memref<1x8x16xf32, #tpu.memory_space<vmem>>, %arg4: memref<32x32xf32, #tpu.memory_space<vmem>>, %arg5: memref<1x8x32xf32, #tpu.memory_space<vmem>>) attributes {dimension_semantics = [#tpu.dimension_semantics<parallel>], iteration_bounds = array<i64: 2>, scalar_prefetch = 0 : i64, scratch_operands = 0 : i64, tpu.core_type = #tpu.core_type<tc>, window_params = [{transform_indices = @transform_0, window_bounds = array<i64: 1, 8, 16>}, {transform_indices = @transform_1, window_bounds = array<i64: 1, 8, 16>}, {transform_indices = @transform_2, window_bounds = array<i64: 1, 8, 16>}, {pipeline_mode = #tpu.pipeline_mode<synchronous>, transform_indices = @transform_3, window_bounds = array<i64: 32, 32>}, {transform_indices = @transform_4, window_bounds = array<i64: 1, 8, 32>}]} {
    %c0 = arith.constant 0 : index
    %c0_0 = arith.constant 0 : index
    %c0_1 = arith.constant 0 : index
    %0 = vector.load %arg1[%c0, %c0_0, %c0_1] : memref<1x8x16xf32, #tpu.memory_space<vmem>>, vector<1x8x16xf32>
    %1 = vector.shape_cast %0 : vector<1x8x16xf32> to vector<8x16xf32>
    %c0_2 = arith.constant 0 : index
    %c0_3 = arith.constant 0 : index
    %c0_4 = arith.constant 0 : index
    %2 = vector.load %arg2[%c0_2, %c0_3, %c0_4] : memref<1x8x16xf32, #tpu.memory_space<vmem>>, vector<1x8x16xf32>
    %3 = vector.shape_cast %2 : vector<1x8x16xf32> to vector<8x16xf32>
    %4 = arith.addf %1, %3 : vector<8x16xf32>
    %c0_5 = arith.constant 0 : index
    %c0_6 = arith.constant 0 : index
    %c0_7 = arith.constant 0 : index
    %5 = vector.load %arg3[%c0_5, %c0_6, %c0_7] : memref<1x8x16xf32, #tpu.memory_space<vmem>>, vector<1x8x16xf32>
    %6 = vector.shape_cast %5 : vector<1x8x16xf32> to vector<8x16xf32>
    %7 = tpu.concatenate %4, %6 in 1 : vector<8x16xf32>, vector<8x16xf32> -> vector<8x32xf32>
    %c0_8 = arith.constant 0 : index
    %c0_9 = arith.constant 0 : index
    %8 = vector.load %arg4[%c0_8, %c0_9] : memref<32x32xf32, #tpu.memory_space<vmem>>, vector<32x32xf32>
    %cst = arith.constant dense<0.000000e+00> : vector<8x32xf32>
    %9 = tpu.matmul %7, %8, %cst {dimension_numbers = #tpu.dot_dimension_numbers<[1], [0], [0], [1], [0, 0, 1, 1], [], []>} : vector<8x32xf32>, vector<32x32xf32>, vector<8x32xf32> -> vector<8x32xf32>
    %c0_10 = arith.constant 0 : index
    %c0_11 = arith.constant 0 : index
    %c0_12 = arith.constant 0 : index
    %10 = vector.load %arg5[%c0_10, %c0_11, %c0_12] : memref<1x8x32xf32, #tpu.memory_space<vmem>>, vector<1x8x32xf32>
    %11 = vector.shape_cast %10 : vector<1x8x32xf32> to vector<8x32xf32>
    %12 = vector.shape_cast %9 : vector<8x32xf32> to vector<1x8x32xf32>
    tpu.vector_store %arg5[%c0_10, %c0_11, %c0_12], %12 {strides = array<i32>} : memref<1x8x32xf32, #tpu.memory_space<vmem>>, vector<1x8x32xf32>,
    return
  }
  func.func @transform_0(%arg0: i32) -> (i32, i32, i32) {
    %c0_i32 = arith.constant 0 : i32
    %c0_i32_0 = arith.constant 0 : i32
    %c0_i32_1 = arith.constant 0 : i32
    return %arg0, %c0_i32, %c0_i32_0 : i32, i32, i32
  }
  func.func @transform_1(%arg0: i32) -> (i32, i32, i32) {
    %c0_i32 = arith.constant 0 : i32
    %c0_i32_0 = arith.constant 0 : i32
    %c0_i32_1 = arith.constant 0 : i32
    return %arg0, %c0_i32, %c0_i32_0 : i32, i32, i32
  }
  func.func @transform_2(%arg0: i32) -> (i32, i32, i32) {
    %c0_i32 = arith.constant 0 : i32
    %c0_i32_0 = arith.constant 0 : i32
    %c0_i32_1 = arith.constant 0 : i32
    return %arg0, %c0_i32, %c0_i32_0 : i32, i32, i32
  }
  func.func @transform_3(%arg0: i32) -> (i32, i32) {
    %c0_i32 = arith.constant 0 : i32
    %c0_i32_0 = arith.constant 0 : i32
    %c0_i32_1 = arith.constant 0 : i32
    return %c0_i32, %c0_i32_0 : i32, i32
  }
  func.func @transform_4(%arg0: i32) -> (i32, i32, i32) {
    %c0_i32 = arith.constant 0 : i32
    %c0_i32_0 = arith.constant 0 : i32
    %c0_i32_1 = arith.constant 0 : i32
    return %arg0, %c0_i32, %c0_i32_0 : i32, i32, i32
  }
}

module attributes {stable_mosaic.version = 11 : i64} {
  func.func @_linear_kernel(%arg0: i32, %arg1: memref<32x16xf32, #tpu.memory_space<vmem>>, %arg2: memref<16x8xf32, #tpu.memory_space<vmem>>, %arg3: memref<1x8xf32, #tpu.memory_space<vmem>>, %arg4: memref<32x8xf32, #tpu.memory_space<vmem>>) attributes {dimension_semantics = [#tpu.dimension_semantics<arbitrary>], iteration_bounds = array<i64: 1>, scalar_prefetch = 0 : i64, scratch_operands = 0 : i64, tpu.core_type = #tpu.core_type<tc>, window_params = [{pipeline_mode = #tpu.pipeline_mode<synchronous>, transform_indices = @transform_0, window_bounds = array<i64: 32, 16>}, {pipeline_mode = #tpu.pipeline_mode<synchronous>, transform_indices = @transform_1, window_bounds = array<i64: 16, 8>}, {pipeline_mode = #tpu.pipeline_mode<synchronous>, transform_indices = @transform_2, window_bounds = array<i64: 1, 8>}, {pipeline_mode = #tpu.pipeline_mode<synchronous>, transform_indices = @transform_3, window_bounds = array<i64: 32, 8>}]} {
    %c0 = arith.constant 0 : index
    %c0_0 = arith.constant 0 : index
    %0 = vector.load %arg1[%c0, %c0_0] : memref<32x16xf32, #tpu.memory_space<vmem>>, vector<32x16xf32>
    %c0_1 = arith.constant 0 : index
    %c0_2 = arith.constant 0 : index
    %1 = vector.load %arg2[%c0_1, %c0_2] : memref<16x8xf32, #tpu.memory_space<vmem>>, vector<16x8xf32>
    %cst = arith.constant dense<0.000000e+00> : vector<32x8xf32>
    %2 = tpu.matmul %0, %1, %cst {dimension_numbers = #tpu.dot_dimension_numbers<[1], [0], [0], [1], [0, 0, 1, 1], [], []>} : vector<32x16xf32>, vector<16x8xf32>, vector<32x8xf32> -> vector<32x8xf32>
    %c0_3 = arith.constant 0 : index
    %c0_4 = arith.constant 0 : index
    %3 = vector.load %arg3[%c0_3, %c0_4] : memref<1x8xf32, #tpu.memory_space<vmem>>, vector<1x8xf32>
    %4 = vector.broadcast %3 : vector<1x8xf32> to vector<32x8xf32>
    %5 = arith.addf %2, %4 : vector<32x8xf32>
    %c0_5 = arith.constant 0 : index
    %c0_6 = arith.constant 0 : index
    %6 = vector.load %arg4[%c0_5, %c0_6] : memref<32x8xf32, #tpu.memory_space<vmem>>, vector<32x8xf32>
    tpu.vector_store %arg4[%c0_5, %c0_6], %5 {strides = array<i32>} : memref<32x8xf32, #tpu.memory_space<vmem>>, vector<32x8xf32>,
    return
  }
  func.func @transform_0(%arg0: i32) -> (i32, i32) {
    %c0_i32 = arith.constant 0 : i32
    %c0_i32_0 = arith.constant 0 : i32
    %c0_i32_1 = arith.constant 0 : i32
    return %c0_i32, %c0_i32_0 : i32, i32
  }
  func.func @transform_1(%arg0: i32) -> (i32, i32) {
    %c0_i32 = arith.constant 0 : i32
    %c0_i32_0 = arith.constant 0 : i32
    %c0_i32_1 = arith.constant 0 : i32
    return %c0_i32, %c0_i32_0 : i32, i32
  }
  func.func @transform_2(%arg0: i32) -> (i32, i32) {
    %c0_i32 = arith.constant 0 : i32
    %c0_i32_0 = arith.constant 0 : i32
    %c0_i32_1 = arith.constant 0 : i32
    return %c0_i32, %c0_i32_0 : i32, i32
  }
  func.func @transform_3(%arg0: i32) -> (i32, i32) {
    %c0_i32 = arith.constant 0 : i32
    %c0_i32_0 = arith.constant 0 : i32
    %c0_i32_1 = arith.constant 0 : i32
    return %c0_i32, %c0_i32_0 : i32, i32
  }
}

</mosaic_0001>

<llo_original>
// kernel: multi_wavelet_transform.11
$region0: #{multi_wavelet_transform.11}
  #allocation0 [shape = 'u32[]', space=smem, size = 0x4, offset = 0x4, fixed_abs, tag = 'smem constant byte address 0x4 - core index']
  #allocation1 [shape = 'u32[72,128]{1,0:T(1,128)}', space=vmem, size = 0x9000, scoped, tag = 'internal scratch']
  %s0 = inlined_call_operand.vmem [shape: f32[32,8], index: 0, kind: input, shape index: {}]
  %s1 = inlined_call_operand.vmem [shape: f32[8,16], index: 1, kind: input, shape index: {}]
  %s2 = inlined_call_operand.vmem [shape: f32[1,16], index: 2, kind: input, shape index: {}]
  %s3 = inlined_call_operand.vmem [shape: f32[32,16], index: 3, kind: output, shape index: {}]
  %s4 = sld [smem:[#allocation0]]
  $region22: #{multi_wavelet_transform.11} parent=0
    _
  %s6 = ssub.s32 1, %s4
  %s7 = scalar_select 0, %s6, %s4
  // Predicated region
  $region2: #{multi_wavelet_transform.11} parent=0 // pred_check
    _
  $region3: #{multi_wavelet_transform.11} parent=0 // pred_check_branch
    %9 = sbr.rel (0) target = $region5
  $region4: #{multi_wavelet_transform.11} parent=0 // pred_region
    _
  $region5: #{multi_wavelet_transform.11} parent=0 // pred_fallthru
    _
  // Predicated region
  $region6: #{multi_wavelet_transform.11} parent=0 // pred_check
    _
  $region7: #{multi_wavelet_transform.11} parent=0 // pred_check_branch
    %11 = sbr.rel (0) target = $region9
  $region8: #{multi_wavelet_transform.11} parent=0 // pred_region
    _
  $region9: #{multi_wavelet_transform.11} parent=0 // pred_fallthru
    _
  // Predicated region
  $region10: #{multi_wavelet_transform.11} parent=0 // pred_check
    _
  $region11: #{multi_wavelet_transform.11} parent=0 // pred_check_branch
    %13 = sbr.rel (0) target = $region13
  $region12: #{multi_wavelet_transform.11} parent=0 // pred_region
    _
  $region13: #{multi_wavelet_transform.11} parent=0 // pred_fallthru
    _
  %v14 = vld [vmem:[%s0] sm:$0xff]
  %v15 = vld [vmem:[%s0 + $0x8] sm:$0xff]
  %v16 = vld [vmem:[%s0 + $0x10] sm:$0xff]
  %v17 = vld [vmem:[%s0 + $0x18] sm:$0xff]
  %v18 = vld [vmem:[%s1] sm:$0xff]
  %v19 = vld [vmem:[%s2] sm:$0x1]
  %v21 = vperm.slane %v19, 0
  %vm23 = vcmask 64512
  %v25 = vsel %vm23, %v14, 0
  %v28 = vsel %vm23, %v15, 0
  %v31 = vsel %vm23, %v16, 0
  %v34 = vsel %vm23, %v17, 0
  %36 = vmatpush.msra.mxu0 0.0
  %37 = vmatpush.msra.mxu0 0.0
  %38 = vmatpush.msra.mxu0 0.0
  %39 = vmatpush.msra.mxu0 0.0
  %40 = vmatpush.msra.mxu0 0.0
  %41 = vmatpush.msra.mxu0 0.0
  %42 = vmatpush.msra.mxu0 0.0
  %43 = vmatpush.msra.mxu0 0.0
  %44 = vmatpush.msra.mxu0 0.0
  %45 = vmatpush.msra.mxu0 0.0
  %46 = vmatpush.msra.mxu0 0.0
  %47 = vmatpush.msra.mxu0 0.0
  %48 = vmatpush.msra.mxu0 0.0
  %49 = vmatpush.msra.mxu0 0.0
  %50 = vmatpush.msra.mxu0 0.0
  %51 = vmatpush.msra.mxu0 %v18
  %52 = vmatmul.f32.gmra.mxu0 %v25
  %v53 = vpop.f32.mrf.mxu0
  %v54 = vadd.f32 %v21, %v53
  %55 = vmatmul.f32.gmra.mxu0 %v28
  %v56 = vpop.f32.mrf.mxu0
  %v57 = vadd.f32 %v21, %v56
  %58 = vmatmul.f32.gmra.mxu0 %v31
  %v59 = vpop.f32.mrf.mxu0
  %v60 = vadd.f32 %v21, %v59
  %61 = vmatmul.f32.gmra.mxu0 %v34
  %v62 = vpop.f32.mrf.mxu0
  %v63 = vadd.f32 %v21, %v62
  %64 = vdwg.mxu0
  %vm65 = vcmask 130048
  %66 = vst.msk [vmem:[%s3] sm:$0xff] %vm65, %v54
  %67 = vst.msk [vmem:[%s3 + $0x8] sm:$0xff] %vm65, %v57
  %68 = vst.msk [vmem:[%s3 + $0x10] sm:$0xff] %vm65, %v60
  %69 = vst.msk [vmem:[%s3 + $0x18] sm:$0xff] %vm65, %v63
  // Predicated region
  $region14: #{multi_wavelet_transform.11} parent=0 // pred_check
    _
  $region15: #{multi_wavelet_transform.11} parent=0 // pred_check_branch
    %71 = sbr.rel (0) target = $region17
  $region16: #{multi_wavelet_transform.11} parent=0 // pred_region
    _
  $region17: #{multi_wavelet_transform.11} parent=0 // pred_fallthru
    _
  // Predicated region
  $region18: #{multi_wavelet_transform.11} parent=0 // pred_check
    _
  $region19: #{multi_wavelet_transform.11} parent=0 // pred_check_branch
    %73 = sbr.rel (0) target = $region21
  $region20: #{multi_wavelet_transform.11} parent=0 // pred_region
    _
  $region21: #{multi_wavelet_transform.11} parent=0 // pred_fallthru
    _

// kernel: multi_wavelet_transform.13
$region0: #{multi_wavelet_transform.13}
  #allocation0 [shape = 'u32[]', space=smem, size = 0x4, offset = 0x4, fixed_abs, tag = 'smem constant byte address 0x4 - core index']
  #allocation1 [shape = 'u32[72,128]{1,0:T(1,128)}', space=vmem, size = 0x9000, scoped, tag = 'internal scratch']
  %s0 = inlined_call_operand.vmem [shape: f32[2,4,32], index: 0, kind: input, shape index: {}]
  %s1 = inlined_call_operand.vmem [shape: f32[32,32], index: 1, kind: input, shape index: {}]
  %s2 = inlined_call_operand.vmem [shape: f32[3,4], index: 2, kind: input, shape index: {}]
  %s3 = inlined_call_operand.vmem [shape: f32[3,4], index: 3, kind: input, shape index: {}]
  %s4 = inlined_call_operand.vmem [shape: f32[3,64,64], index: 4, kind: input, shape index: {}]
  %s5 = inlined_call_operand.vmem [shape: f32[4,3], index: 5, kind: input, shape index: {}]
  %s6 = inlined_call_operand.vmem [shape: f32[4,3], index: 6, kind: input, shape index: {}]
  %s7 = inlined_call_operand.vmem [shape: f32[2,4,32], index: 7, kind: output, shape index: {0}]
  %s8 = inlined_call_operand.vmem [shape: f32[2,4,32], index: 8, kind: output, shape index: {1}]
  %9 = xla_tuple %s7, %s8
  %s10 = sld [smem:[#allocation0]]
  $region69: #{multi_wavelet_transform.13} parent=0
    _
  %s12 = ssub.s32 1, %s10
  %s13 = scalar_select 0, %s12, %s10
  loop: start=0, step=1, limit=4
  $region2: #{multi_wavelet_transform.13} parent=0 // loop_pre_header
    _
  $region3: #{multi_wavelet_transform.13} parent=0 // loop_header
    %s15 = sphi 0, %s19
    %p16 = scmp.ge.s32.totalorder %s15, 4
    %s25 = sphi 0, %s27
    %s28 = sphi 0, %s25
    %s29 = sphi 0, %s28
    %s45 = sphi 0, %s29
    %s49 = sphi 0, %s49
    %s51 = sphi 0, %s49
    %s52 = sphi 0, %s51
    %s66 = sphi 0, %s52
    %s70 = sphi 0, %s70
    %s72 = sphi 0, %s70
    %s73 = sphi 0, %s72
    %s87 = sphi 0, %s73
    %s91 = sphi 0, %s91
    %s93 = sphi 0, %s91
    %s94 = sphi 0, %s93
    %s108 = sphi 0, %s94
    %s112 = sphi 0, %s112
    %s114 = sphi 0, %s112
    %s115 = sphi 0, %s114
    %s129 = sphi 0, %s115
    %s133 = sphi 0, %s133
    %s135 = sphi 0, %s133
    %s136 = sphi 0, %s135
    %s150 = sphi 0, %s136
    %s154 = sphi 0, %s154
    %s156 = sphi 0, %s154
    %s157 = sphi 0, %s156
    %s171 = sphi 0, %s157
    %s177 = sphi 0, %s179
    %s180 = sphi 0, %s177
    %s181 = sphi 0, %s180
    %s197 = sphi 0, %s181
    %s203 = sphi 0, %s205
    %s206 = sphi 0, %s203
    %s207 = sphi 0, %s206
    %s223 = sphi 0, %s207
  $region4: #{multi_wavelet_transform.13} parent=0 // loop_header_branch
    %18 = sbr.rel (%p16) target = $region8
  $region5: #{multi_wavelet_transform.13} parent=0 // loop_body
    %s20 = ssub.s32 %s15, 1
    %s21 = ssub.s32 %s15, 2
    %s22 = sadd.s32 %s15, 1
    %s23 = ssub.s32 %s15, %s22
    %p24 = scmp.eq.s32.totalorder %s23, 0
    %s26 = sadd.s32 %s25, 1
    %s27 = scalar_select %p24, %s25, %s26
    %p30 = pneg %p24
    %p31 = scmp.eq.s32.totalorder %s15, 1
    %p32 = por %p30, %p31
    %p33 = scmp.ne.s32.totalorder %s25, %s28
    %p34 = scmp.eq.s32.totalorder %s15, 0
    %p35 = por %p33, %p34
    %p36 = scmp.ne.s32.totalorder %s25, %s28
    %p37 = scmp.eq.s32.totalorder %s20, 1
    %p38 = por %p36, %p37
    %p39 = scmp.ne.s32.totalorder %s28, %s29
    %p40 = scmp.eq.s32.totalorder %s20, 0
    %p41 = por %p39, %p40
    %p42 = scmp.ne.s32.totalorder %s28, %s29
    %p43 = scmp.eq.s32.totalorder %s21, 1
    %p44 = por %p42, %p43
    %p46 = scmp.ne.s32.totalorder %s29, %s45
    %p47 = scmp.eq.s32.totalorder %s21, 0
    %p48 = por %p46, %p47
    %s50 = sadd.s32 %s49, 1
    %p53 = scmp.eq.s32.totalorder %s15, 1
    %p54 = scmp.ne.s32.totalorder %s49, %s51
    %p55 = scmp.eq.s32.totalorder %s15, 0
    %p56 = por %p54, %p55
    %p57 = scmp.ne.s32.totalorder %s49, %s51
    %p58 = scmp.eq.s32.totalorder %s20, 1
    %p59 = por %p57, %p58
    %p60 = scmp.ne.s32.totalorder %s51, %s52
    %p61 = scmp.eq.s32.totalorder %s20, 0
    %p62 = por %p60, %p61
    %p63 = scmp.ne.s32.totalorder %s51, %s52
    %p64 = scmp.eq.s32.totalorder %s21, 1
    %p65 = por %p63, %p64
    %p67 = scmp.ne.s32.totalorder %s52, %s66
    %p68 = scmp.eq.s32.totalorder %s21, 0
    %p69 = por %p67, %p68
    %s71 = sadd.s32 %s70, 1
    %p74 = scmp.eq.s32.totalorder %s15, 1
    %p75 = scmp.ne.s32.totalorder %s70, %s72
    %p76 = scmp.eq.s32.totalorder %s15, 0
    %p77 = por %p75, %p76
    %p78 = scmp.ne.s32.totalorder %s70, %s72
    %p79 = scmp.eq.s32.totalorder %s20, 1
    %p80 = por %p78, %p79
    %p81 = scmp.ne.s32.totalorder %s72, %s73
    %p82 = scmp.eq.s32.totalorder %s20, 0
    %p83 = por %p81, %p82
    %p84 = scmp.ne.s32.totalorder %s72, %s73
    %p85 = scmp.eq.s32.totalorder %s21, 1
    %p86 = por %p84, %p85
    %p88 = scmp.ne.s32.totalorder %s73, %s87
    %p89 = scmp.eq.s32.totalorder %s21, 0
    %p90 = por %p88, %p89
    %s92 = sadd.s32 %s91, 1
    %p95 = scmp.eq.s32.totalorder %s15, 1
    %p96 = scmp.ne.s32.totalorder %s91, %s93
    %p97 = scmp.eq.s32.totalorder %s15, 0
    %p98 = por %p96, %p97
    %p99 = scmp.ne.s32.totalorder %s91, %s93
    %p100 = scmp.eq.s32.totalorder %s20, 1
    %p101 = por %p99, %p100
    %p102 = scmp.ne.s32.totalorder %s93, %s94
    %p103 = scmp.eq.s32.totalorder %s20, 0
    %p104 = por %p102, %p103
    %p105 = scmp.ne.s32.totalorder %s93, %s94
    %p106 = scmp.eq.s32.totalorder %s21, 1
    %p107 = por %p105, %p106
    %p109 = scmp.ne.s32.totalorder %s94, %s108
    %p110 = scmp.eq.s32.totalorder %s21, 0
    %p111 = por %p109, %p110
    %s113 = sadd.s32 %s112, 1
    %p116 = scmp.eq.s32.totalorder %s15, 1
    %p117 = scmp.ne.s32.totalorder %s112, %s114
    %p118 = scmp.eq.s32.totalorder %s15, 0
    %p119 = por %p117, %p118
    %p120 = scmp.ne.s32.totalorder %s112, %s114
    %p121 = scmp.eq.s32.totalorder %s20, 1
    %p122 = por %p120, %p121
    %p123 = scmp.ne.s32.totalorder %s114, %s115
    %p124 = scmp.eq.s32.totalorder %s20, 0
    %p125 = por %p123, %p124
    %p126 = scmp.ne.s32.totalorder %s114, %s115
    %p127 = scmp.eq.s32.totalorder %s21, 1
    %p128 = por %p126, %p127
    %p130 = scmp.ne.s32.totalorder %s115, %s129
    %p131 = scmp.eq.s32.totalorder %s21, 0
    %p132 = por %p130, %p131
    %s134 = sadd.s32 %s133, 1
    %p137 = scmp.eq.s32.totalorder %s15, 1
    %p138 = scmp.ne.s32.totalorder %s133, %s135
    %p139 = scmp.eq.s32.totalorder %s15, 0
    %p140 = por %p138, %p139
    %p141 = scmp.ne.s32.totalorder %s133, %s135
    %p142 = scmp.eq.s32.totalorder %s20, 1
    %p143 = por %p141, %p142
    %p144 = scmp.ne.s32.totalorder %s135, %s136
    %p145 = scmp.eq.s32.totalorder %s20, 0
    %p146 = por %p144, %p145
    %p147 = scmp.ne.s32.totalorder %s135, %s136
    %p148 = scmp.eq.s32.totalorder %s21, 1
    %p149 = por %p147, %p148
    %p151 = scmp.ne.s32.totalorder %s136, %s150
    %p152 = scmp.eq.s32.totalorder %s21, 0
    %p153 = por %p151, %p152
    %s155 = sadd.s32 %s154, 1
    %p158 = scmp.eq.s32.totalorder %s15, 1
    %p159 = scmp.ne.s32.totalorder %s154, %s156
    %p160 = scmp.eq.s32.totalorder %s15, 0
    %p161 = por %p159, %p160
    %p162 = scmp.ne.s32.totalorder %s154, %s156
    %p163 = scmp.eq.s32.totalorder %s20, 1
    %p164 = por %p162, %p163
    %p165 = scmp.ne.s32.totalorder %s156, %s157
    %p166 = scmp.eq.s32.totalorder %s20, 0
    %p167 = por %p165, %p166
    %p168 = scmp.ne.s32.totalorder %s156, %s157
    %p169 = scmp.eq.s32.totalorder %s21, 1
    %p170 = por %p168, %p169
    %p172 = scmp.ne.s32.totalorder %s157, %s171
    %p173 = scmp.eq.s32.totalorder %s21, 0
    %p174 = por %p172, %p173
    %s175 = ssub.s32 %s15, %s22
    %p176 = scmp.eq.s32.totalorder %s175, 0
    %s178 = sadd.s32 %s177, 1
    %s179 = scalar_select %p176, %s177, %s178
    %p182 = pneg %p176
    %p183 = scmp.eq.s32.totalorder %s15, 1
    %p184 = por %p182, %p183
    %p185 = scmp.ne.s32.totalorder %s177, %s180
    %p186 = scmp.eq.s32.totalorder %s15, 0
    %p187 = por %p185, %p186
    %p188 = scmp.ne.s32.totalorder %s177, %s180
    %p189 = scmp.eq.s32.totalorder %s20, 1
    %p190 = por %p188, %p189
    %p191 = scmp.ne.s32.totalorder %s180, %s181
    %p192 = scmp.eq.s32.totalorder %s20, 0
    %p193 = por %p191, %p192
    %p194 = scmp.ne.s32.totalorder %s180, %s181
    %p195 = scmp.eq.s32.totalorder %s21, 1
    %p196 = por %p194, %p195
    %p198 = scmp.ne.s32.totalorder %s181, %s197
    %p199 = scmp.eq.s32.totalorder %s21, 0
    %p200 = por %p198, %p199
    %s201 = ssub.s32 %s15, %s22
    %p202 = scmp.eq.s32.totalorder %s201, 0
    %s204 = sadd.s32 %s203, 1
    %s205 = scalar_select %p202, %s203, %s204
    %p208 = pneg %p202
    %p209 = scmp.eq.s32.totalorder %s15, 1
    %p210 = por %p208, %p209
    %p211 = scmp.ne.s32.totalorder %s203, %s206
    %p212 = scmp.eq.s32.totalorder %s15, 0
    %p213 = por %p211, %p212
    %p214 = scmp.ne.s32.totalorder %s203, %s206
    %p215 = scmp.eq.s32.totalorder %s20, 1
    %p216 = por %p214, %p215
    %p217 = scmp.ne.s32.totalorder %s206, %s207
    %p218 = scmp.eq.s32.totalorder %s20, 0
    %p219 = por %p217, %p218
    %p220 = scmp.ne.s32.totalorder %s206, %s207
    %p221 = scmp.eq.s32.totalorder %s21, 1
    %p222 = por %p220, %p221
    %p224 = scmp.ne.s32.totalorder %s207, %s223
    %p225 = scmp.eq.s32.totalorder %s21, 0
    %p226 = por %p224, %p225
    %p227 = scmp.le.s32.totalorder 1, %s15
    %p228 = scmp.lt.s32.totalorder %s15, 3
    %p229 = pnand %p227, %p228
    %p230 = pneg %p229
    // Predicated region
    $region9: #{multi_wavelet_transform.13} parent=5 // pred_check
      _
    $region10: #{multi_wavelet_transform.13} parent=5 // pred_check_branch
      %232 = sbr.rel (%p229) target = $region12
    $region11: #{multi_wavelet_transform.13} parent=5 // pred_region
      %s233 = ssub.s32 %s15, 1
      // Predicated region
      $region13: #{multi_wavelet_transform.13} parent=11 // pred_check
        %p234 = pneg %p62
      $region14: #{multi_wavelet_transform.13} parent=11 // pred_check_branch
        %236 = sbr.rel (%p234) target = $region16
      $region15: #{multi_wavelet_transform.13} parent=11 // pred_region
        _
      $region16: #{multi_wavelet_transform.13} parent=11 // pred_fallthru
        _
      // Predicated region
      $region17: #{multi_wavelet_transform.13} parent=11 // pred_check
        %p237 = pneg %p83
      $region18: #{multi_wavelet_transform.13} parent=11 // pred_check_branch
        %239 = sbr.rel (%p237) target = $region20
      $region19: #{multi_wavelet_transform.13} parent=11 // pred_region
        _
      $region20: #{multi_wavelet_transform.13} parent=11 // pred_fallthru
        _
      // Predicated region
      $region21: #{multi_wavelet_transform.13} parent=11 // pred_check
        %p240 = pneg %p104
      $region22: #{multi_wavelet_transform.13} parent=11 // pred_check_branch
        %242 = sbr.rel (%p240) target = $region24
      $region23: #{multi_wavelet_transform.13} parent=11 // pred_region
        _
      $region24: #{multi_wavelet_transform.13} parent=11 // pred_fallthru
        _
      // Predicated region
      $region25: #{multi_wavelet_transform.13} parent=11 // pred_check
        %p243 = pneg %p125
      $region26: #{multi_wavelet_transform.13} parent=11 // pred_check_branch
        %245 = sbr.rel (%p243) target = $region28
      $region27: #{multi_wavelet_transform.13} parent=11 // pred_region
        _
      $region28: #{multi_wavelet_transform.13} parent=11 // pred_fallthru
        _
      // Predicated region
      $region29: #{multi_wavelet_transform.13} parent=11 // pred_check
        %p246 = pneg %p146
      $region30: #{multi_wavelet_transform.13} parent=11 // pred_check_branch
        %248 = sbr.rel (%p246) target = $region32
      $region31: #{multi_wavelet_transform.13} parent=11 // pred_region
        _
      $region32: #{multi_wavelet_transform.13} parent=11 // pred_fallthru
        _
      // Predicated region
      $region33: #{multi_wavelet_transform.13} parent=11 // pred_check
        %p249 = pneg %p167
      $region34: #{multi_wavelet_transform.13} parent=11 // pred_check_branch
        %251 = sbr.rel (%p249) target = $region36
      $region35: #{multi_wavelet_transform.13} parent=11 // pred_region
        _
      $region36: #{multi_wavelet_transform.13} parent=11 // pred_fallthru
        _
    $region12: #{multi_wavelet_transform.13} parent=5 // pred_fallthru
      _
    %p252 = scmp.lt.s32.totalorder %s15, 2
    // Predicated region
    $region37: #{multi_wavelet_transform.13} parent=5 // pred_check
      %p253 = pneg %p252
    $region38: #{multi_wavelet_transform.13} parent=5 // pred_check_branch
      %255 = sbr.rel (%p253) target = $region40
    $region39: #{multi_wavelet_transform.13} parent=5 // pred_region
      // Predicated region
      $region41: #{multi_wavelet_transform.13} parent=39 // pred_check
        %p256 = pneg %p35
      $region42: #{multi_wavelet_transform.13} parent=39 // pred_check_branch
        %258 = sbr.rel (%p256) target = $region44
      $region43: #{multi_wavelet_transform.13} parent=39 // pred_region
        %p259 = scmp.lt.s32.totalorder %s15, 1
        %s260 = scalar_select %p259, %s15, 1
        %s261 = smul.addr %s260, 4
        %s262 = scalar_lea.vmem %s0, %s261
      $region44: #{multi_wavelet_transform.13} parent=39 // pred_fallthru
        _
    $region40: #{multi_wavelet_transform.13} parent=5 // pred_fallthru
      _
    %p263 = scmp.le.s32.totalorder 1, %s15
    %p264 = scmp.lt.s32.totalorder %s15, 3
    %p265 = pnand %p263, %p264
    %p266 = pneg %p265
    // Predicated region
    $region45: #{multi_wavelet_transform.13} parent=5 // pred_check
      _
    $region46: #{multi_wavelet_transform.13} parent=5 // pred_check_branch
      %268 = sbr.rel (%p265) target = $region48
    $region47: #{multi_wavelet_transform.13} parent=5 // pred_region
      %s269 = ssub.s32 %s15, 1
      %p270 = scmp.lt.s32.totalorder %s20, 1
      %s271 = scalar_select %p270, %s20, 1
      %s272 = smul.addr %s271, 4
      %s273 = scalar_lea.vmem %s0, %s272
      %p274 = pneg %p41
      %p275 = pneg %p38
      %p276 = pneg %p62
      %p277 = pneg %p59
      %p278 = pneg %p83
      %p279 = pneg %p80
      %p280 = pneg %p104
      %p281 = pneg %p101
      %p282 = pneg %p125
      %p283 = pneg %p122
      %p284 = pneg %p146
      %p285 = pneg %p143
      %p286 = pneg %p167
      %p287 = pneg %p164
      %p288 = pneg %p193
      %p289 = pneg %p190
      %p290 = scmp.lt.s32.totalorder %s20, 1
      %s291 = scalar_select %p290, %s20, 1
      %s292 = smul.addr %s291, 4
      %s293 = scalar_lea.vmem %s7, %s292
      %p294 = pneg %p219
      %p295 = pneg %p216
      %p296 = scmp.lt.s32.totalorder %s20, 1
      %s297 = scalar_select %p296, %s20, 1
      %s298 = smul.addr %s297, 4
      %s299 = scalar_lea.vmem %s8, %s298
      %p300 = scmp.lt.s32.totalorder %s20, 1
      %s301 = scalar_select %p300, %s20, 1
      %s302 = smul.addr %s301, 4
      %s303 = scalar_lea.vmem %s0, %s302
      %p304 = scmp.lt.s32.totalorder %s20, 1
      %s305 = scalar_select %p304, %s20, 1
      %s306 = smul.addr %s305, 4
      %s307 = scalar_lea.vmem %s7, %s306
      %p308 = scmp.lt.s32.totalorder %s20, 1
      %s309 = scalar_select %p308, %s20, 1
      %s310 = smul.addr %s309, 4
      %s311 = scalar_lea.vmem %s8, %s310
      %v312 = vld [vmem:[%s303] sm:$0xf]
      %v313 = vld [vmem:[%s1] sm:$0xff]
      %v314 = vld [vmem:[%s1 + $0x8] sm:$0xff]
      %v315 = vld [vmem:[%s1 + $0x10] sm:$0xff]
      %v316 = vld [vmem:[%s1 + $0x18] sm:$0xff]
      %vm317 = vcmask 261120
      %v319 = vsel %vm317, %v312, 0
      %321 = vmatpush.msra.mxu0 0.0
      %322 = vmatpush.msra.mxu0 0.0
      %323 = vmatpush.msra.mxu0 0.0
      %324 = vmatpush.msra.mxu0 0.0
      %325 = vmatpush.msra.mxu0 0.0
      %326 = vmatpush.msra.mxu0 0.0
      %327 = vmatpush.msra.mxu0 0.0
      %328 = vmatpush.msra.mxu0 0.0
      %329 = vmatpush.msra.mxu0 0.0
      %330 = vmatpush.msra.mxu0 0.0
      %331 = vmatpush.msra.mxu0 0.0
      %332 = vmatpush.msra.mxu0 0.0
      %333 = vmatpush.msra.mxu0 %v316
      %334 = vmatpush.msra.mxu0 %v315
      %335 = vmatpush.msra.mxu0 %v314
      %336 = vmatpush.msra.mxu0 %v313
      %337 = vmatmul.f32.gmra.mxu0 %v319
      %v338 = vpop.f32.mrf.mxu0
      %v339 = vadd.f32 0.0, %v338
      %340 = vdwg.mxu0
      %vm341 = vcmask 257024
      %342 = vst.msk [vmem:[%s311] sm:$0xf] %vm341, %v339
      %v343 = vld [vmem:[%s2] sm:$0x7]
      %vm344 = vcmask 31744
      %v346 = vsel %vm344, %v343, 0
      %vm348 = vcmask 1043456
      %v350 = vsel %vm348, %v339, 0
      %352 = vmatpush.msra.mxu0 0.0
      %353 = vmatpush.msra.mxu0 0.0
      %354 = vmatpush.msra.mxu0 0.0
      %355 = vmatpush.msra.mxu0 0.0
      %356 = vmatpush.msra.mxu0 0.0
      %357 = vmatpush.msra.mxu0 0.0
      %358 = vmatpush.msra.mxu0 0.0
      %359 = vmatpush.msra.mxu0 0.0
      %360 = vmatpush.msra.mxu0 0.0
      %361 = vmatpush.msra.mxu0 0.0
      %362 = vmatpush.msra.mxu0 0.0
      %363 = vmatpush.msra.mxu0 0.0
      %364 = vmatpush.msra.mxu0 0.0
      %365 = vmatpush.msra.mxu0 0.0
      %366 = vmatpush.msra.mxu0 0.0
      %367 = vmatpush.msra.mxu0 %v350
      %368 = vmatmul.f32.gmra.mxu0 %v346
      %v369 = vpop.f32.mrf.mxu0
      %v370 = vadd.f32 0.0, %v369
      %371 = vdwg.mxu0
      %v372 = vld [vmem:[%s3] sm:$0x7]
      %v374 = vsel %vm344, %v372, 0
      %376 = vmatpush.msra.mxu0 0.0
      %377 = vmatpush.msra.mxu0 0.0
      %378 = vmatpush.msra.mxu0 0.0
      %379 = vmatpush.msra.mxu0 0.0
      %380 = vmatpush.msra.mxu0 0.0
      %381 = vmatpush.msra.mxu0 0.0
      %382 = vmatpush.msra.mxu0 0.0
      %383 = vmatpush.msra.mxu0 0.0
      %384 = vmatpush.msra.mxu0 0.0
      %385 = vmatpush.msra.mxu0 0.0
      %386 = vmatpush.msra.mxu0 0.0
      %387 = vmatpush.msra.mxu0 0.0
      %388 = vmatpush.msra.mxu0 0.0
      %389 = vmatpush.msra.mxu0 0.0
      %390 = vmatpush.msra.mxu0 0.0
      %391 = vmatpush.msra.mxu0 %v350
      %392 = vmatmul.f32.gmra.mxu0 %v374
      %v393 = vpop.f32.mrf.mxu0
      %v394 = vadd.f32 0.0, %v393
      %395 = vdwg.mxu0
      %397 = vrot.lane.b32.xlu0 %v394, 32
      %v398 = vpop.permute.xlu0 %397
      %v400 = vsel %vm317, %v370, %v398
      %v401 = vld [vmem:[%s4] sm:$0xff]
      %v402 = vld [vmem:[%s4 + $0x8] sm:$0xff]
      %v403 = vld [vmem:[%s4 + $0x10] sm:$0xff]
      %v404 = vld [vmem:[%s4 + $0x18] sm:$0xff]
      %v405 = vld [vmem:[%s4 + $0x20] sm:$0xff]
      %v406 = vld [vmem:[%s4 + $0x28] sm:$0xff]
      %v407 = vld [vmem:[%s4 + $0x30] sm:$0xff]
      %v408 = vld [vmem:[%s4 + $0x38] sm:$0xff]
      %vm409 = vcmask 523264
      %v411 = vsel %vm409, %v400, 0
      %413 = vmatpush.msra.mxu0 0.0
      %414 = vmatpush.msra.mxu0 0.0
      %415 = vmatpush.msra.mxu0 0.0
      %416 = vmatpush.msra.mxu0 0.0
      %417 = vmatpush.msra.mxu0 0.0
      %418 = vmatpush.msra.mxu0 0.0
      %419 = vmatpush.msra.mxu0 0.0
      %420 = vmatpush.msra.mxu0 0.0
      %421 = vmatpush.msra.mxu0 %v408
      %422 = vmatpush.msra.mxu0 %v407
      %423 = vmatpush.msra.mxu0 %v406
      %424 = vmatpush.msra.mxu0 %v405
      %425 = vmatpush.msra.mxu0 %v404
      %426 = vmatpush.msra.mxu0 %v403
      %427 = vmatpush.msra.mxu0 %v402
      %428 = vmatpush.msra.mxu0 %v401
      %429 = vmatmul.f32.gmra.mxu0 %v411
      %v430 = vpop.f32.mrf.mxu0
      %v431 = vadd.f32 0.0, %v430
      %432 = vdwg.mxu0
      %s433 = scalar_lea.vmem %s4, 64
      %v434 = vld [vmem:[%s433] sm:$0xff]
      %v435 = vld [vmem:[%s433 + $0x8] sm:$0xff]
      %v436 = vld [vmem:[%s433 + $0x10] sm:$0xff]
      %v437 = vld [vmem:[%s433 + $0x18] sm:$0xff]
      %v438 = vld [vmem:[%s433 + $0x20] sm:$0xff]
      %v439 = vld [vmem:[%s433 + $0x28] sm:$0xff]
      %v440 = vld [vmem:[%s433 + $0x30] sm:$0xff]
      %v441 = vld [vmem:[%s433 + $0x38] sm:$0xff]
      %v442 = vrot.slane %v400, 1
      %v443 = vsel %vm409, %v442, 0
      %445 = vmatpush.msra.mxu0 0.0
      %446 = vmatpush.msra.mxu0 0.0
      %447 = vmatpush.msra.mxu0 0.0
      %448 = vmatpush.msra.mxu0 0.0
      %449 = vmatpush.msra.mxu0 0.0
      %450 = vmatpush.msra.mxu0 0.0
      %451 = vmatpush.msra.mxu0 0.0
      %452 = vmatpush.msra.mxu0 0.0
      %453 = vmatpush.msra.mxu0 %v441
      %454 = vmatpush.msra.mxu0 %v440
      %455 = vmatpush.msra.mxu0 %v439
      %456 = vmatpush.msra.mxu0 %v438
      %457 = vmatpush.msra.mxu0 %v437
      %458 = vmatpush.msra.mxu0 %v436
      %459 = vmatpush.msra.mxu0 %v435
      %460 = vmatpush.msra.mxu0 %v434
      %461 = vmatmul.f32.gmra.mxu0 %v443
      %v462 = vpop.f32.mrf.mxu0
      %v463 = vadd.f32 0.0, %v462
      %464 = vdwg.mxu0
      %s465 = scalar_lea.vmem %s4, 128
      %v466 = vld [vmem:[%s465] sm:$0xff]
      %v467 = vld [vmem:[%s465 + $0x8] sm:$0xff]
      %v468 = vld [vmem:[%s465 + $0x10] sm:$0xff]
      %v469 = vld [vmem:[%s465 + $0x18] sm:$0xff]
      %v470 = vld [vmem:[%s465 + $0x20] sm:$0xff]
      %v471 = vld [vmem:[%s465 + $0x28] sm:$0xff]
      %v472 = vld [vmem:[%s465 + $0x30] sm:$0xff]
      %v473 = vld [vmem:[%s465 + $0x38] sm:$0xff]
      %v474 = vrot.slane %v400, 2
      %v475 = vsel %vm409, %v474, 0
      %477 = vmatpush.msra.mxu0 0.0
      %478 = vmatpush.msra.mxu0 0.0
      %479 = vmatpush.msra.mxu0 0.0
      %480 = vmatpush.msra.mxu0 0.0
      %481 = vmatpush.msra.mxu0 0.0
      %482 = vmatpush.msra.mxu0 0.0
      %483 = vmatpush.msra.mxu0 0.0
      %484 = vmatpush.msra.mxu0 0.0
      %485 = vmatpush.msra.mxu0 %v473
      %486 = vmatpush.msra.mxu0 %v472
      %487 = vmatpush.msra.mxu0 %v471
      %488 = vmatpush.msra.mxu0 %v470
      %489 = vmatpush.msra.mxu0 %v469
      %490 = vmatpush.msra.mxu0 %v468
      %491 = vmatpush.msra.mxu0 %v467
      %492 = vmatpush.msra.mxu0 %v466
      %493 = vmatmul.f32.gmra.mxu0 %v475
      %v494 = vpop.f32.mrf.mxu0
      %v495 = vadd.f32 0.0, %v494
      %496 = vdwg.mxu0
      %v498 = vrot.slane %v463, 7
      %v501 = vrot.slane %v495, 6
      %vm503 = vcmask 1040384
      %v504 = vsel %vm503, %v431, %v498
      %vm505 = vcmask 1041408
      %v506 = vsel %vm505, %v504, %v501
      %v507 = vld [vmem:[%s5] sm:$0xf]
      %v508 = vld [vmem:[%s6] sm:$0xf]
      %510 = vrot.lane.b32.xlu0 %v506, 96
      %v511 = vpop.permute.xlu0 %510
      %vm512 = vcmask 23552
      %v514 = vsel %vm512, %v508, 0
      %vm516 = vcmask 1042432
      %v517 = vsel %vm516, %v511, 0
      %519 = vmatpush.msra.mxu0 0.0
      %520 = vmatpush.msra.mxu0 0.0
      %521 = vmatpush.msra.mxu0 0.0
      %522 = vmatpush.msra.mxu0 0.0
      %523 = vmatpush.msra.mxu0 0.0
      %524 = vmatpush.msra.mxu0 0.0
      %525 = vmatpush.msra.mxu0 0.0
      %526 = vmatpush.msra.mxu0 0.0
      %527 = vmatpush.msra.mxu0 0.0
      %528 = vmatpush.msra.mxu0 0.0
      %529 = vmatpush.msra.mxu0 0.0
      %530 = vmatpush.msra.mxu0 0.0
      %531 = vmatpush.msra.mxu0 0.0
      %532 = vmatpush.msra.mxu0 0.0
      %533 = vmatpush.msra.mxu0 0.0
      %534 = vmatpush.msra.mxu0 %v517
      %535 = vmatmul.f32.gmra.mxu0 %v514
      %v536 = vpop.f32.mrf.mxu0
      %v537 = vadd.f32 0.0, %v536
      %538 = vdwg.mxu0
      %v540 = vsel %vm512, %v507, 0
      %v542 = vsel %vm516, %v506, 0
      %544 = vmatpush.msra.mxu0 0.0
      %545 = vmatpush.msra.mxu0 0.0
      %546 = vmatpush.msra.mxu0 0.0
      %547 = vmatpush.msra.mxu0 0.0
      %548 = vmatpush.msra.mxu0 0.0
      %549 = vmatpush.msra.mxu0 0.0
      %550 = vmatpush.msra.mxu0 0.0
      %551 = vmatpush.msra.mxu0 0.0
      %552 = vmatpush.msra.mxu0 0.0
      %553 = vmatpush.msra.mxu0 0.0
      %554 = vmatpush.msra.mxu0 0.0
      %555 = vmatpush.msra.mxu0 0.0
      %556 = vmatpush.msra.mxu0 0.0
      %557 = vmatpush.msra.mxu0 0.0
      %558 = vmatpush.msra.mxu0 0.0
      %559 = vmatpush.msra.mxu0 %v542
      %560 = vmatmul.f32.gmra.mxu0 %v540
      %v561 = vpop.f32.mrf.mxu0
      %v562 = vadd.f32 %v537, %v561
      %563 = vdwg.mxu0
      %564 = vst.msk [vmem:[%s307] sm:$0xf] %vm341, %v562
      %p565 = scmp.lt.s32.totalorder %s20, 1
      %s566 = scalar_select %p565, %s20, 1
      %s567 = smul.addr %s566, 4
      %s568 = scalar_lea.vmem %s7, %s567
      %p569 = scmp.lt.s32.totalorder %s20, 1
      %s570 = scalar_select %p569, %s20, 1
      %s571 = smul.addr %s570, 4
      %s572 = scalar_lea.vmem %s8, %s571
      // Predicated region
      $region49: #{multi_wavelet_transform.13} parent=47 // pred_check
        %p573 = pneg %p190
      $region50: #{multi_wavelet_transform.13} parent=47 // pred_check_branch
        %575 = sbr.rel (%p573) target = $region52
      $region51: #{multi_wavelet_transform.13} parent=47 // pred_region
        _
      $region52: #{multi_wavelet_transform.13} parent=47 // pred_fallthru
        _
      // Predicated region
      $region53: #{multi_wavelet_transform.13} parent=47 // pred_check
        %p576 = pneg %p216
      $region54: #{multi_wavelet_transform.13} parent=47 // pred_check_branch
        %578 = sbr.rel (%p576) target = $region56
      $region55: #{multi_wavelet_transform.13} parent=47 // pred_region
        _
      $region56: #{multi_wavelet_transform.13} parent=47 // pred_fallthru
        _
    $region48: #{multi_wavelet_transform.13} parent=5 // pred_fallthru
      _
    %p579 = scmp.le.s32.totalorder 2, %s15
    // Predicated region
    $region57: #{multi_wavelet_transform.13} parent=5 // pred_check
      %p580 = pneg %p579
    $region58: #{multi_wavelet_transform.13} parent=5 // pred_check_branch
      %582 = sbr.rel (%p580) target = $region60
    $region59: #{multi_wavelet_transform.13} parent=5 // pred_region
      %s583 = ssub.s32 %s15, 2
      // Predicated region
      $region61: #{multi_wavelet_transform.13} parent=59 // pred_check
        %p584 = pneg %p196
      $region62: #{multi_wavelet_transform.13} parent=59 // pred_check_branch
        %586 = sbr.rel (%p584) target = $region64
      $region63: #{multi_wavelet_transform.13} parent=59 // pred_region
        %p587 = scmp.lt.s32.totalorder %s21, 1
        %s588 = scalar_select %p587, %s21, 1
        %s589 = smul.addr %s588, 4
        %s590 = scalar_lea.vmem %s7, %s589
      $region64: #{multi_wavelet_transform.13} parent=59 // pred_fallthru
        _
      // Predicated region
      $region65: #{multi_wavelet_transform.13} parent=59 // pred_check
        %p591 = pneg %p222
      $region66: #{multi_wavelet_transform.13} parent=59 // pred_check_branch
        %593 = sbr.rel (%p591) target = $region68
      $region67: #{multi_wavelet_transform.13} parent=59 // pred_region
        %p594 = scmp.lt.s32.totalorder %s21, 1
        %s595 = scalar_select %p594, %s21, 1
        %s596 = smul.addr %s595, 4
        %s597 = scalar_lea.vmem %s8, %s596
      $region68: #{multi_wavelet_transform.13} parent=59 // pred_fallthru
        _
    $region60: #{multi_wavelet_transform.13} parent=5 // pred_fallthru
      _
  $region6: #{multi_wavelet_transform.13} parent=0 // loop_footer
    %s19 = sadd.s32 1, %s15
  $region7: #{multi_wavelet_transform.13} parent=0 // loop_footer_branch
    %14 = sbr.rel target = $region3
  $region8: #{multi_wavelet_transform.13} parent=0 // loop_exit
    _

// kernel: multi_wavelet_transform.12
$region0: #{multi_wavelet_transform.12}
  #allocation0 [shape = 'u32[]', space=smem, size = 0x4, offset = 0x4, fixed_abs, tag = 'smem constant byte address 0x4 - core index']
  #allocation1 [shape = 'u32[72,128]{1,0:T(1,128)}', space=vmem, size = 0x9000, scoped, tag = 'internal scratch']
  %s0 = inlined_call_operand.vmem [shape: f32[2,8,32], index: 0, kind: input, shape index: {}]
  %s1 = inlined_call_operand.vmem [shape: f32[32,32], index: 1, kind: input, shape index: {}]
  %s2 = inlined_call_operand.vmem [shape: f32[4,8], index: 2, kind: input, shape index: {}]
  %s3 = inlined_call_operand.vmem [shape: f32[4,8], index: 3, kind: input, shape index: {}]
  %s4 = inlined_call_operand.hbm [shape: f32[4,64,64], index: 4, kind: input, shape index: {}]
  %s5 = inlined_call_operand.vmem [shape: f32[8,4], index: 5, kind: input, shape index: {}]
  %s6 = inlined_call_operand.vmem [shape: f32[8,4], index: 6, kind: input, shape index: {}]
  %s7 = inlined_call_operand.vmem [shape: f32[2,8,32], index: 7, kind: output, shape index: {0}]
  %s8 = inlined_call_operand.vmem [shape: f32[2,8,32], index: 8, kind: output, shape index: {1}]
  %9 = xla_tuple %s7, %s8
  %s10 = sld [smem:[#allocation0]]
  $region73: #{multi_wavelet_transform.12} parent=0
    _
  %s12 = ssub.s32 1, %s10
  %s13 = scalar_select 0, %s12, %s10
  $region1: #{multi_wavelet_transform.12} parent=0
    #allocation2 [shape = 'u8[131072]{0}', space=vmem, size = 0x20000, scoped, tag = 'input window, operand 4, single buffered']
    #allocation3 [shape = 's32[2]{0}', space=sflag, size = 0x8, scoped, tag = 'scoped memory for multi_wavelet_transform.12']
    %14 = vsyncpa [#allocation3], 0
    loop: start=0, step=1, limit=4
    $region2: #{multi_wavelet_transform.12} parent=1 // loop_pre_header
      _
    $region3: #{multi_wavelet_transform.12} parent=1 // loop_header
      %s16 = sphi 0, %s20
      %p17 = scmp.ge.s32.totalorder %s16, 4
      %s26 = sphi 0, %s28
      %s29 = sphi 0, %s26
      %s30 = sphi 0, %s29
      %s46 = sphi 0, %s30
      %s50 = sphi 0, %s50
      %s52 = sphi 0, %s50
      %s53 = sphi 0, %s52
      %s67 = sphi 0, %s53
      %s71 = sphi 0, %s71
      %s73 = sphi 0, %s71
      %s74 = sphi 0, %s73
      %s88 = sphi 0, %s74
      %s92 = sphi 0, %s92
      %s94 = sphi 0, %s92
      %s95 = sphi 0, %s94
      %s109 = sphi 0, %s95
      %s113 = sphi 0, %s113
      %s115 = sphi 0, %s113
      %s116 = sphi 0, %s115
      %s130 = sphi 0, %s116
      %s134 = sphi 0, %s134
      %s136 = sphi 0, %s134
      %s137 = sphi 0, %s136
      %s151 = sphi 0, %s137
      %s155 = sphi 0, %s155
      %s157 = sphi 0, %s155
      %s158 = sphi 0, %s157
      %s172 = sphi 0, %s158
      %s178 = sphi 0, %s180
      %s181 = sphi 0, %s178
      %s182 = sphi 0, %s181
      %s198 = sphi 0, %s182
      %s204 = sphi 0, %s206
      %s207 = sphi 0, %s204
      %s208 = sphi 0, %s207
      %s224 = sphi 0, %s208
    $region4: #{multi_wavelet_transform.12} parent=1 // loop_header_branch
      %19 = sbr.rel (%p17) target = $region8
    $region5: #{multi_wavelet_transform.12} parent=1 // loop_body
      %s21 = ssub.s32 %s16, 1
      %s22 = ssub.s32 %s16, 2
      %s23 = sadd.s32 %s16, 1
      %s24 = ssub.s32 %s16, %s23
      %p25 = scmp.eq.s32.totalorder %s24, 0
      %s27 = sadd.s32 %s26, 1
      %s28 = scalar_select %p25, %s26, %s27
      %p31 = pneg %p25
      %p32 = scmp.eq.s32.totalorder %s16, 1
      %p33 = por %p31, %p32
      %p34 = scmp.ne.s32.totalorder %s26, %s29
      %p35 = scmp.eq.s32.totalorder %s16, 0
      %p36 = por %p34, %p35
      %p37 = scmp.ne.s32.totalorder %s26, %s29
      %p38 = scmp.eq.s32.totalorder %s21, 1
      %p39 = por %p37, %p38
      %p40 = scmp.ne.s32.totalorder %s29, %s30
      %p41 = scmp.eq.s32.totalorder %s21, 0
      %p42 = por %p40, %p41
      %p43 = scmp.ne.s32.totalorder %s29, %s30
      %p44 = scmp.eq.s32.totalorder %s22, 1
      %p45 = por %p43, %p44
      %p47 = scmp.ne.s32.totalorder %s30, %s46
      %p48 = scmp.eq.s32.totalorder %s22, 0
      %p49 = por %p47, %p48
      %s51 = sadd.s32 %s50, 1
      %p54 = scmp.eq.s32.totalorder %s16, 1
      %p55 = scmp.ne.s32.totalorder %s50, %s52
      %p56 = scmp.eq.s32.totalorder %s16, 0
      %p57 = por %p55, %p56
      %p58 = scmp.ne.s32.totalorder %s50, %s52
      %p59 = scmp.eq.s32.totalorder %s21, 1
      %p60 = por %p58, %p59
      %p61 = scmp.ne.s32.totalorder %s52, %s53
      %p62 = scmp.eq.s32.totalorder %s21, 0
      %p63 = por %p61, %p62
      %p64 = scmp.ne.s32.totalorder %s52, %s53
      %p65 = scmp.eq.s32.totalorder %s22, 1
      %p66 = por %p64, %p65
      %p68 = scmp.ne.s32.totalorder %s53, %s67
      %p69 = scmp.eq.s32.totalorder %s22, 0
      %p70 = por %p68, %p69
      %s72 = sadd.s32 %s71, 1
      %p75 = scmp.eq.s32.totalorder %s16, 1
      %p76 = scmp.ne.s32.totalorder %s71, %s73
      %p77 = scmp.eq.s32.totalorder %s16, 0
      %p78 = por %p76, %p77
      %p79 = scmp.ne.s32.totalorder %s71, %s73
      %p80 = scmp.eq.s32.totalorder %s21, 1
      %p81 = por %p79, %p80
      %p82 = scmp.ne.s32.totalorder %s73, %s74
      %p83 = scmp.eq.s32.totalorder %s21, 0
      %p84 = por %p82, %p83
      %p85 = scmp.ne.s32.totalorder %s73, %s74
      %p86 = scmp.eq.s32.totalorder %s22, 1
      %p87 = por %p85, %p86
      %p89 = scmp.ne.s32.totalorder %s74, %s88
      %p90 = scmp.eq.s32.totalorder %s22, 0
      %p91 = por %p89, %p90
      %s93 = sadd.s32 %s92, 1
      %p96 = scmp.eq.s32.totalorder %s16, 1
      %p97 = scmp.ne.s32.totalorder %s92, %s94
      %p98 = scmp.eq.s32.totalorder %s16, 0
      %p99 = por %p97, %p98
      %p100 = scmp.ne.s32.totalorder %s92, %s94
      %p101 = scmp.eq.s32.totalorder %s21, 1
      %p102 = por %p100, %p101
      %p103 = scmp.ne.s32.totalorder %s94, %s95
      %p104 = scmp.eq.s32.totalorder %s21, 0
      %p105 = por %p103, %p104
      %p106 = scmp.ne.s32.totalorder %s94, %s95
      %p107 = scmp.eq.s32.totalorder %s22, 1
      %p108 = por %p106, %p107
      %p110 = scmp.ne.s32.totalorder %s95, %s109
      %p111 = scmp.eq.s32.totalorder %s22, 0
      %p112 = por %p110, %p111
      %s114 = sadd.s32 %s113, 1
      %p117 = scmp.eq.s32.totalorder %s16, 1
      %p118 = scmp.ne.s32.totalorder %s113, %s115
      %p119 = scmp.eq.s32.totalorder %s16, 0
      %p120 = por %p118, %p119
      %p121 = scmp.ne.s32.totalorder %s113, %s115
      %p122 = scmp.eq.s32.totalorder %s21, 1
      %p123 = por %p121, %p122
      %p124 = scmp.ne.s32.totalorder %s115, %s116
      %p125 = scmp.eq.s32.totalorder %s21, 0
      %p126 = por %p124, %p125
      %p127 = scmp.ne.s32.totalorder %s115, %s116
      %p128 = scmp.eq.s32.totalorder %s22, 1
      %p129 = por %p127, %p128
      %p131 = scmp.ne.s32.totalorder %s116, %s130
      %p132 = scmp.eq.s32.totalorder %s22, 0
      %p133 = por %p131, %p132
      %s135 = sadd.s32 %s134, 1
      %p138 = scmp.eq.s32.totalorder %s16, 1
      %p139 = scmp.ne.s32.totalorder %s134, %s136
      %p140 = scmp.eq.s32.totalorder %s16, 0
      %p141 = por %p139, %p140
      %p142 = scmp.ne.s32.totalorder %s134, %s136
      %p143 = scmp.eq.s32.totalorder %s21, 1
      %p144 = por %p142, %p143
      %p145 = scmp.ne.s32.totalorder %s136, %s137
      %p146 = scmp.eq.s32.totalorder %s21, 0
      %p147 = por %p145, %p146
      %p148 = scmp.ne.s32.totalorder %s136, %s137
      %p149 = scmp.eq.s32.totalorder %s22, 1
      %p150 = por %p148, %p149
      %p152 = scmp.ne.s32.totalorder %s137, %s151
      %p153 = scmp.eq.s32.totalorder %s22, 0
      %p154 = por %p152, %p153
      %s156 = sadd.s32 %s155, 1
      %p159 = scmp.eq.s32.totalorder %s16, 1
      %p160 = scmp.ne.s32.totalorder %s155, %s157
      %p161 = scmp.eq.s32.totalorder %s16, 0
      %p162 = por %p160, %p161
      %p163 = scmp.ne.s32.totalorder %s155, %s157
      %p164 = scmp.eq.s32.totalorder %s21, 1
      %p165 = por %p163, %p164
      %p166 = scmp.ne.s32.totalorder %s157, %s158
      %p167 = scmp.eq.s32.totalorder %s21, 0
      %p168 = por %p166, %p167
      %p169 = scmp.ne.s32.totalorder %s157, %s158
      %p170 = scmp.eq.s32.totalorder %s22, 1
      %p171 = por %p169, %p170
      %p173 = scmp.ne.s32.totalorder %s158, %s172
      %p174 = scmp.eq.s32.totalorder %s22, 0
      %p175 = por %p173, %p174
      %s176 = ssub.s32 %s16, %s23
      %p177 = scmp.eq.s32.totalorder %s176, 0
      %s179 = sadd.s32 %s178, 1
      %s180 = scalar_select %p177, %s178, %s179
      %p183 = pneg %p177
      %p184 = scmp.eq.s32.totalorder %s16, 1
      %p185 = por %p183, %p184
      %p186 = scmp.ne.s32.totalorder %s178, %s181
      %p187 = scmp.eq.s32.totalorder %s16, 0
      %p188 = por %p186, %p187
      %p189 = scmp.ne.s32.totalorder %s178, %s181
      %p190 = scmp.eq.s32.totalorder %s21, 1
      %p191 = por %p189, %p190
      %p192 = scmp.ne.s32.totalorder %s181, %s182
      %p193 = scmp.eq.s32.totalorder %s21, 0
      %p194 = por %p192, %p193
      %p195 = scmp.ne.s32.totalorder %s181, %s182
      %p196 = scmp.eq.s32.totalorder %s22, 1
      %p197 = por %p195, %p196
      %p199 = scmp.ne.s32.totalorder %s182, %s198
      %p200 = scmp.eq.s32.totalorder %s22, 0
      %p201 = por %p199, %p200
      %s202 = ssub.s32 %s16, %s23
      %p203 = scmp.eq.s32.totalorder %s202, 0
      %s205 = sadd.s32 %s204, 1
      %s206 = scalar_select %p203, %s204, %s205
      %p209 = pneg %p203
      %p210 = scmp.eq.s32.totalorder %s16, 1
      %p211 = por %p209, %p210
      %p212 = scmp.ne.s32.totalorder %s204, %s207
      %p213 = scmp.eq.s32.totalorder %s16, 0
      %p214 = por %p212, %p213
      %p215 = scmp.ne.s32.totalorder %s204, %s207
      %p216 = scmp.eq.s32.totalorder %s21, 1
      %p217 = por %p215, %p216
      %p218 = scmp.ne.s32.totalorder %s207, %s208
      %p219 = scmp.eq.s32.totalorder %s21, 0
      %p220 = por %p218, %p219
      %p221 = scmp.ne.s32.totalorder %s207, %s208
      %p222 = scmp.eq.s32.totalorder %s22, 1
      %p223 = por %p221, %p222
      %p225 = scmp.ne.s32.totalorder %s208, %s224
      %p226 = scmp.eq.s32.totalorder %s22, 0
      %p227 = por %p225, %p226
      %p228 = scmp.le.s32.totalorder 1, %s16
      %p229 = scmp.lt.s32.totalorder %s16, 3
      %p230 = pnand %p228, %p229
      %p231 = pneg %p230
      // Predicated region
      $region9: #{multi_wavelet_transform.12} parent=5 // pred_check
        _
      $region10: #{multi_wavelet_transform.12} parent=5 // pred_check_branch
        %233 = sbr.rel (%p230) target = $region12
      $region11: #{multi_wavelet_transform.12} parent=5 // pred_region
        %s234 = ssub.s32 %s16, 1
        // Predicated region
        $region13: #{multi_wavelet_transform.12} parent=11 // pred_check
          %p235 = pneg %p63
        $region14: #{multi_wavelet_transform.12} parent=11 // pred_check_branch
          %237 = sbr.rel (%p235) target = $region16
        $region15: #{multi_wavelet_transform.12} parent=11 // pred_region
          _
        $region16: #{multi_wavelet_transform.12} parent=11 // pred_fallthru
          _
        // Predicated region
        $region17: #{multi_wavelet_transform.12} parent=11 // pred_check
          %p238 = pneg %p84
        $region18: #{multi_wavelet_transform.12} parent=11 // pred_check_branch
          %240 = sbr.rel (%p238) target = $region20
        $region19: #{multi_wavelet_transform.12} parent=11 // pred_region
          _
        $region20: #{multi_wavelet_transform.12} parent=11 // pred_fallthru
          _
        // Predicated region
        $region21: #{multi_wavelet_transform.12} parent=11 // pred_check
          %p241 = pneg %p105
        $region22: #{multi_wavelet_transform.12} parent=11 // pred_check_branch
          %243 = sbr.rel (%p241) target = $region24
        $region23: #{multi_wavelet_transform.12} parent=11 // pred_region
          _
        $region24: #{multi_wavelet_transform.12} parent=11 // pred_fallthru
          _
        // Predicated region
        $region25: #{multi_wavelet_transform.12} parent=11 // pred_check
          %p244 = pneg %p126
        $region26: #{multi_wavelet_transform.12} parent=11 // pred_check_branch
          %246 = sbr.rel (%p244) target = $region28
        $region27: #{multi_wavelet_transform.12} parent=11 // pred_region
          %248 = vsyncadd [#allocation3], 0
          %s249 = sshll.u32 %s4, 4
          %s250 = int_to_ptr.hbm [resolvable:$true] %s249
          %s251 = sshll.u32 [#allocation2], 4
          %s252 = int_to_ptr.vmem [resolvable:$true] %s251
          %257 = dma.hbm_to_vmem [thread:$0]  %s250, 4096, %s252, [#allocation3], 128, 128, 8
        $region28: #{multi_wavelet_transform.12} parent=11 // pred_fallthru
          _
        // Predicated region
        $region29: #{multi_wavelet_transform.12} parent=11 // pred_check
          %p258 = pneg %p147
        $region30: #{multi_wavelet_transform.12} parent=11 // pred_check_branch
          %260 = sbr.rel (%p258) target = $region32
        $region31: #{multi_wavelet_transform.12} parent=11 // pred_region
          _
        $region32: #{multi_wavelet_transform.12} parent=11 // pred_fallthru
          _
        // Predicated region
        $region33: #{multi_wavelet_transform.12} parent=11 // pred_check
          %p261 = pneg %p168
        $region34: #{multi_wavelet_transform.12} parent=11 // pred_check_branch
          %263 = sbr.rel (%p261) target = $region36
        $region35: #{multi_wavelet_transform.12} parent=11 // pred_region
          _
        $region36: #{multi_wavelet_transform.12} parent=11 // pred_fallthru
          _
      $region12: #{multi_wavelet_transform.12} parent=5 // pred_fallthru
        _
      %p264 = scmp.lt.s32.totalorder %s16, 2
      // Predicated region
      $region37: #{multi_wavelet_transform.12} parent=5 // pred_check
        %p265 = pneg %p264
      $region38: #{multi_wavelet_transform.12} parent=5 // pred_check_branch
        %267 = sbr.rel (%p265) target = $region40
      $region39: #{multi_wavelet_transform.12} parent=5 // pred_region
        // Predicated region
        $region41: #{multi_wavelet_transform.12} parent=39 // pred_check
          %p268 = pneg %p36
        $region42: #{multi_wavelet_transform.12} parent=39 // pred_check_branch
          %270 = sbr.rel (%p268) target = $region44
        $region43: #{multi_wavelet_transform.12} parent=39 // pred_region
          %p271 = scmp.lt.s32.totalorder %s16, 1
          %s272 = scalar_select %p271, %s16, 1
          %s273 = smul.addr %s272, 8
          %s274 = scalar_lea.vmem %s0, %s273
        $region44: #{multi_wavelet_transform.12} parent=39 // pred_fallthru
          _
      $region40: #{multi_wavelet_transform.12} parent=5 // pred_fallthru
        _
      %p275 = scmp.le.s32.totalorder 1, %s16
      %p276 = scmp.lt.s32.totalorder %s16, 3
      %p277 = pnand %p275, %p276
      %p278 = pneg %p277
      // Predicated region
      $region45: #{multi_wavelet_transform.12} parent=5 // pred_check
        _
      $region46: #{multi_wavelet_transform.12} parent=5 // pred_check_branch
        %280 = sbr.rel (%p277) target = $region48
      $region47: #{multi_wavelet_transform.12} parent=5 // pred_region
        %s281 = ssub.s32 %s16, 1
        // Predicated region
        $region49: #{multi_wavelet_transform.12} parent=47 // pred_check
          %p282 = pneg %p126
        $region50: #{multi_wavelet_transform.12} parent=47 // pred_check_branch
          %284 = sbr.rel (%p282) target = $region52
        $region51: #{multi_wavelet_transform.12} parent=47 // pred_region
          %286 = dma.done [#allocation3], 4096
        $region52: #{multi_wavelet_transform.12} parent=47 // pred_fallthru
          _
        %p287 = scmp.lt.s32.totalorder %s21, 1
        %s288 = scalar_select %p287, %s21, 1
        %s289 = smul.addr %s288, 8
        %s290 = scalar_lea.vmem %s0, %s289
        %p291 = pneg %p42
        %p292 = pneg %p39
        %p293 = pneg %p63
        %p294 = pneg %p60
        %p295 = pneg %p84
        %p296 = pneg %p81
        %p297 = pneg %p105
        %p298 = pneg %p102
        %p299 = pneg %p126
        %p300 = pneg %p123
        %p301 = pneg %p147
        %p302 = pneg %p144
        %p303 = pneg %p168
        %p304 = pneg %p165
        %p305 = pneg %p194
        %p306 = pneg %p191
        %p307 = scmp.lt.s32.totalorder %s21, 1
        %s308 = scalar_select %p307, %s21, 1
        %s309 = smul.addr %s308, 8
        %s310 = scalar_lea.vmem %s7, %s309
        %p311 = pneg %p220
        %p312 = pneg %p217
        %p313 = scmp.lt.s32.totalorder %s21, 1
        %s314 = scalar_select %p313, %s21, 1
        %s315 = smul.addr %s314, 8
        %s316 = scalar_lea.vmem %s8, %s315
        %p317 = scmp.lt.s32.totalorder %s21, 1
        %s318 = scalar_select %p317, %s21, 1
        %s319 = smul.addr %s318, 8
        %s320 = scalar_lea.vmem %s0, %s319
        %p321 = scmp.lt.s32.totalorder %s21, 1
        %s322 = scalar_select %p321, %s21, 1
        %s323 = smul.addr %s322, 8
        %s324 = scalar_lea.vmem %s7, %s323
        %p325 = scmp.lt.s32.totalorder %s21, 1
        %s326 = scalar_select %p325, %s21, 1
        %s327 = smul.addr %s326, 8
        %s328 = scalar_lea.vmem %s8, %s327
        %v329 = vld [vmem:[%s320] sm:$0xff]
        %v330 = vld [vmem:[%s1] sm:$0xff]
        %v331 = vld [vmem:[%s1 + $0x8] sm:$0xff]
        %v332 = vld [vmem:[%s1 + $0x10] sm:$0xff]
        %v333 = vld [vmem:[%s1 + $0x18] sm:$0xff]
        %vm334 = vcmask 261120
        %v336 = vsel %vm334, %v329, 0
        %338 = vmatpush.msra.mxu0 0.0
        %339 = vmatpush.msra.mxu0 0.0
        %340 = vmatpush.msra.mxu0 0.0
        %341 = vmatpush.msra.mxu0 0.0
        %342 = vmatpush.msra.mxu0 0.0
        %343 = vmatpush.msra.mxu0 0.0
        %344 = vmatpush.msra.mxu0 0.0
        %345 = vmatpush.msra.mxu0 0.0
        %346 = vmatpush.msra.mxu0 0.0
        %347 = vmatpush.msra.mxu0 0.0
        %348 = vmatpush.msra.mxu0 0.0
        %349 = vmatpush.msra.mxu0 0.0
        %350 = vmatpush.msra.mxu0 %v333
        %351 = vmatpush.msra.mxu0 %v332
        %352 = vmatpush.msra.mxu0 %v331
        %353 = vmatpush.msra.mxu0 %v330
        %354 = vmatmul.f32.gmra.mxu0 %v336
        %v355 = vpop.f32.mrf.mxu0
        %v356 = vadd.f32 0.0, %v355
        %357 = vdwg.mxu0
        %358 = vst.msk [vmem:[%s328] sm:$0xff] %vm334, %v356
        %v359 = vld [vmem:[%s2] sm:$0xf]
        %vm360 = vcmask 64512
        %v362 = vsel %vm360, %v359, 0
        %364 = vmatpush.msra.mxu0 0.0
        %365 = vmatpush.msra.mxu0 0.0
        %366 = vmatpush.msra.mxu0 0.0
        %367 = vmatpush.msra.mxu0 0.0
        %368 = vmatpush.msra.mxu0 0.0
        %369 = vmatpush.msra.mxu0 0.0
        %370 = vmatpush.msra.mxu0 0.0
        %371 = vmatpush.msra.mxu0 0.0
        %372 = vmatpush.msra.mxu0 0.0
        %373 = vmatpush.msra.mxu0 0.0
        %374 = vmatpush.msra.mxu0 0.0
        %375 = vmatpush.msra.mxu0 0.0
        %376 = vmatpush.msra.mxu0 0.0
        %377 = vmatpush.msra.mxu0 0.0
        %378 = vmatpush.msra.mxu0 0.0
        %379 = vmatpush.msra.mxu0 %v356
        %380 = vmatmul.f32.gmra.mxu0 %v362
        %v381 = vpop.f32.mrf.mxu0
        %v382 = vadd.f32 0.0, %v381
        %383 = vdwg.mxu0
        %v384 = vld [vmem:[%s3] sm:$0xf]
        %v386 = vsel %vm360, %v384, 0
        %388 = vmatpush.msra.mxu0 0.0
        %389 = vmatpush.msra.mxu0 0.0
        %390 = vmatpush.msra.mxu0 0.0
        %391 = vmatpush.msra.mxu0 0.0
        %392 = vmatpush.msra.mxu0 0.0
        %393 = vmatpush.msra.mxu0 0.0
        %394 = vmatpush.msra.mxu0 0.0
        %395 = vmatpush.msra.mxu0 0.0
        %396 = vmatpush.msra.mxu0 0.0
        %397 = vmatpush.msra.mxu0 0.0
        %398 = vmatpush.msra.mxu0 0.0
        %399 = vmatpush.msra.mxu0 0.0
        %400 = vmatpush.msra.mxu0 0.0
        %401 = vmatpush.msra.mxu0 0.0
        %402 = vmatpush.msra.mxu0 0.0
        %403 = vmatpush.msra.mxu0 %v356
        %404 = vmatmul.f32.gmra.mxu0 %v386
        %v405 = vpop.f32.mrf.mxu0
        %v406 = vadd.f32 0.0, %v405
        %407 = vdwg.mxu0
        %409 = vrot.lane.b32.xlu0 %v406, 32
        %v410 = vpop.permute.xlu0 %409
        %v412 = vsel %vm334, %v382, %v410
        %v413 = vld [vmem:[#allocation2] sm:$0xff]
        %v414 = vld [vmem:[#allocation2 + $0x8] sm:$0xff]
        %v415 = vld [vmem:[#allocation2 + $0x10] sm:$0xff]
        %v416 = vld [vmem:[#allocation2 + $0x18] sm:$0xff]
        %v417 = vld [vmem:[#allocation2 + $0x20] sm:$0xff]
        %v418 = vld [vmem:[#allocation2 + $0x28] sm:$0xff]
        %v419 = vld [vmem:[#allocation2 + $0x30] sm:$0xff]
        %v420 = vld [vmem:[#allocation2 + $0x38] sm:$0xff]
        %vm421 = vcmask 523264
        %v423 = vsel %vm421, %v412, 0
        %425 = vmatpush.msra.mxu0 0.0
        %426 = vmatpush.msra.mxu0 0.0
        %427 = vmatpush.msra.mxu0 0.0
        %428 = vmatpush.msra.mxu0 0.0
        %429 = vmatpush.msra.mxu0 0.0
        %430 = vmatpush.msra.mxu0 0.0
        %431 = vmatpush.msra.mxu0 0.0
        %432 = vmatpush.msra.mxu0 0.0
        %433 = vmatpush.msra.mxu0 %v420
        %434 = vmatpush.msra.mxu0 %v419
        %435 = vmatpush.msra.mxu0 %v418
        %436 = vmatpush.msra.mxu0 %v417
        %437 = vmatpush.msra.mxu0 %v416
        %438 = vmatpush.msra.mxu0 %v415
        %439 = vmatpush.msra.mxu0 %v414
        %440 = vmatpush.msra.mxu0 %v413
        %441 = vmatmul.f32.gmra.mxu0 %v423
        %v442 = vpop.f32.mrf.mxu0
        %v443 = vadd.f32 0.0, %v442
        %444 = vdwg.mxu0
        %s445 = scalar_lea.vmem [#allocation2], 64
        %v446 = vld [vmem:[%s445] sm:$0xff]
        %v447 = vld [vmem:[%s445 + $0x8] sm:$0xff]
        %v448 = vld [vmem:[%s445 + $0x10] sm:$0xff]
        %v449 = vld [vmem:[%s445 + $0x18] sm:$0xff]
        %v450 = vld [vmem:[%s445 + $0x20] sm:$0xff]
        %v451 = vld [vmem:[%s445 + $0x28] sm:$0xff]
        %v452 = vld [vmem:[%s445 + $0x30] sm:$0xff]
        %v453 = vld [vmem:[%s445 + $0x38] sm:$0xff]
        %v454 = vrot.slane %v412, 1
        %v455 = vsel %vm421, %v454, 0
        %457 = vmatpush.msra.mxu0 0.0
        %458 = vmatpush.msra.mxu0 0.0
        %459 = vmatpush.msra.mxu0 0.0
        %460 = vmatpush.msra.mxu0 0.0
        %461 = vmatpush.msra.mxu0 0.0
        %462 = vmatpush.msra.mxu0 0.0
        %463 = vmatpush.msra.mxu0 0.0
        %464 = vmatpush.msra.mxu0 0.0
        %465 = vmatpush.msra.mxu0 %v453
        %466 = vmatpush.msra.mxu0 %v452
        %467 = vmatpush.msra.mxu0 %v451
        %468 = vmatpush.msra.mxu0 %v450
        %469 = vmatpush.msra.mxu0 %v449
        %470 = vmatpush.msra.mxu0 %v448
        %471 = vmatpush.msra.mxu0 %v447
        %472 = vmatpush.msra.mxu0 %v446
        %473 = vmatmul.f32.gmra.mxu0 %v455
        %v474 = vpop.f32.mrf.mxu0
        %v475 = vadd.f32 0.0, %v474
        %476 = vdwg.mxu0
        %s477 = scalar_lea.vmem [#allocation2], 128
        %v478 = vld [vmem:[%s477] sm:$0xff]
        %v479 = vld [vmem:[%s477 + $0x8] sm:$0xff]
        %v480 = vld [vmem:[%s477 + $0x10] sm:$0xff]
        %v481 = vld [vmem:[%s477 + $0x18] sm:$0xff]
        %v482 = vld [vmem:[%s477 + $0x20] sm:$0xff]
        %v483 = vld [vmem:[%s477 + $0x28] sm:$0xff]
        %v484 = vld [vmem:[%s477 + $0x30] sm:$0xff]
        %v485 = vld [vmem:[%s477 + $0x38] sm:$0xff]
        %v486 = vrot.slane %v412, 2
        %v487 = vsel %vm421, %v486, 0
        %489 = vmatpush.msra.mxu0 0.0
        %490 = vmatpush.msra.mxu0 0.0
        %491 = vmatpush.msra.mxu0 0.0
        %492 = vmatpush.msra.mxu0 0.0
        %493 = vmatpush.msra.mxu0 0.0
        %494 = vmatpush.msra.mxu0 0.0
        %495 = vmatpush.msra.mxu0 0.0
        %496 = vmatpush.msra.mxu0 0.0
        %497 = vmatpush.msra.mxu0 %v485
        %498 = vmatpush.msra.mxu0 %v484
        %499 = vmatpush.msra.mxu0 %v483
        %500 = vmatpush.msra.mxu0 %v482
        %501 = vmatpush.msra.mxu0 %v481
        %502 = vmatpush.msra.mxu0 %v480
        %503 = vmatpush.msra.mxu0 %v479
        %504 = vmatpush.msra.mxu0 %v478
        %505 = vmatmul.f32.gmra.mxu0 %v487
        %v506 = vpop.f32.mrf.mxu0
        %v507 = vadd.f32 0.0, %v506
        %508 = vdwg.mxu0
        %s509 = scalar_lea.vmem [#allocation2], 192
        %v510 = vld [vmem:[%s509] sm:$0xff]
        %v511 = vld [vmem:[%s509 + $0x8] sm:$0xff]
        %v512 = vld [vmem:[%s509 + $0x10] sm:$0xff]
        %v513 = vld [vmem:[%s509 + $0x18] sm:$0xff]
        %v514 = vld [vmem:[%s509 + $0x20] sm:$0xff]
        %v515 = vld [vmem:[%s509 + $0x28] sm:$0xff]
        %v516 = vld [vmem:[%s509 + $0x30] sm:$0xff]
        %v517 = vld [vmem:[%s509 + $0x38] sm:$0xff]
        %v518 = vrot.slane %v412, 3
        %v519 = vsel %vm421, %v518, 0
        %521 = vmatpush.msra.mxu0 0.0
        %522 = vmatpush.msra.mxu0 0.0
        %523 = vmatpush.msra.mxu0 0.0
        %524 = vmatpush.msra.mxu0 0.0
        %525 = vmatpush.msra.mxu0 0.0
        %526 = vmatpush.msra.mxu0 0.0
        %527 = vmatpush.msra.mxu0 0.0
        %528 = vmatpush.msra.mxu0 0.0
        %529 = vmatpush.msra.mxu0 %v517
        %530 = vmatpush.msra.mxu0 %v516
        %531 = vmatpush.msra.mxu0 %v515
        %532 = vmatpush.msra.mxu0 %v514
        %533 = vmatpush.msra.mxu0 %v513
        %534 = vmatpush.msra.mxu0 %v512
        %535 = vmatpush.msra.mxu0 %v511
        %536 = vmatpush.msra.mxu0 %v510
        %537 = vmatmul.f32.gmra.mxu0 %v519
        %v538 = vpop.f32.mrf.mxu0
        %v539 = vadd.f32 0.0, %v538
        %540 = vdwg.mxu0
        %v542 = vrot.slane %v475, 7
        %v545 = vrot.slane %v507, 6
        %v548 = vrot.slane %v539, 5
        %vm550 = vcmask 1040384
        %v551 = vsel %vm550, %v443, %v542
        %vm552 = vcmask 1041408
        %v553 = vsel %vm552, %v551, %v545
        %vm554 = vcmask 1042432
        %v555 = vsel %vm554, %v553, %v548
        %v556 = vld [vmem:[%s5] sm:$0xff]
        %v557 = vld [vmem:[%s6] sm:$0xff]
        %559 = vrot.lane.b32.xlu0 %v555, 96
        %v560 = vpop.permute.xlu0 %559
        %vm561 = vcmask 31744
        %v563 = vsel %vm561, %v557, 0
        %vm565 = vcmask 1043456
        %v566 = vsel %vm565, %v560, 0
        %568 = vmatpush.msra.mxu0 0.0
        %569 = vmatpush.msra.mxu0 0.0
        %570 = vmatpush.msra.mxu0 0.0
        %571 = vmatpush.msra.mxu0 0.0
        %572 = vmatpush.msra.mxu0 0.0
        %573 = vmatpush.msra.mxu0 0.0
        %574 = vmatpush.msra.mxu0 0.0
        %575 = vmatpush.msra.mxu0 0.0
        %576 = vmatpush.msra.mxu0 0.0
        %577 = vmatpush.msra.mxu0 0.0
        %578 = vmatpush.msra.mxu0 0.0
        %579 = vmatpush.msra.mxu0 0.0
        %580 = vmatpush.msra.mxu0 0.0
        %581 = vmatpush.msra.mxu0 0.0
        %582 = vmatpush.msra.mxu0 0.0
        %583 = vmatpush.msra.mxu0 %v566
        %584 = vmatmul.f32.gmra.mxu0 %v563
        %v585 = vpop.f32.mrf.mxu0
        %v586 = vadd.f32 0.0, %v585
        %587 = vdwg.mxu0
        %v589 = vsel %vm561, %v556, 0
        %v591 = vsel %vm565, %v555, 0
        %593 = vmatpush.msra.mxu0 0.0
        %594 = vmatpush.msra.mxu0 0.0
        %595 = vmatpush.msra.mxu0 0.0
        %596 = vmatpush.msra.mxu0 0.0
        %597 = vmatpush.msra.mxu0 0.0
        %598 = vmatpush.msra.mxu0 0.0
        %599 = vmatpush.msra.mxu0 0.0
        %600 = vmatpush.msra.mxu0 0.0
        %601 = vmatpush.msra.mxu0 0.0
        %602 = vmatpush.msra.mxu0 0.0
        %603 = vmatpush.msra.mxu0 0.0
        %604 = vmatpush.msra.mxu0 0.0
        %605 = vmatpush.msra.mxu0 0.0
        %606 = vmatpush.msra.mxu0 0.0
        %607 = vmatpush.msra.mxu0 0.0
        %608 = vmatpush.msra.mxu0 %v591
        %609 = vmatmul.f32.gmra.mxu0 %v589
        %v610 = vpop.f32.mrf.mxu0
        %v611 = vadd.f32 %v586, %v610
        %612 = vdwg.mxu0
        %613 = vst.msk [vmem:[%s324] sm:$0xff] %vm334, %v611
        %p614 = scmp.lt.s32.totalorder %s21, 1
        %s615 = scalar_select %p614, %s21, 1
        %s616 = smul.addr %s615, 8
        %s617 = scalar_lea.vmem %s7, %s616
        %p618 = scmp.lt.s32.totalorder %s21, 1
        %s619 = scalar_select %p618, %s21, 1
        %s620 = smul.addr %s619, 8
        %s621 = scalar_lea.vmem %s8, %s620
        // Predicated region
        $region53: #{multi_wavelet_transform.12} parent=47 // pred_check
          %p622 = pneg %p191
        $region54: #{multi_wavelet_transform.12} parent=47 // pred_check_branch
          %624 = sbr.rel (%p622) target = $region56
        $region55: #{multi_wavelet_transform.12} parent=47 // pred_region
          _
        $region56: #{multi_wavelet_transform.12} parent=47 // pred_fallthru
          _
        // Predicated region
        $region57: #{multi_wavelet_transform.12} parent=47 // pred_check
          %p625 = pneg %p217
        $region58: #{multi_wavelet_transform.12} parent=47 // pred_check_branch
          %627 = sbr.rel (%p625) target = $region60
        $region59: #{multi_wavelet_transform.12} parent=47 // pred_region
          _
        $region60: #{multi_wavelet_transform.12} parent=47 // pred_fallthru
          _
      $region48: #{multi_wavelet_transform.12} parent=5 // pred_fallthru
        _
      %p628 = scmp.le.s32.totalorder 2, %s16
      // Predicated region
      $region61: #{multi_wavelet_transform.12} parent=5 // pred_check
        %p629 = pneg %p628
      $region62: #{multi_wavelet_transform.12} parent=5 // pred_check_branch
        %631 = sbr.rel (%p629) target = $region64
      $region63: #{multi_wavelet_transform.12} parent=5 // pred_region
        %s632 = ssub.s32 %s16, 2
        // Predicated region
        $region65: #{multi_wavelet_transform.12} parent=63 // pred_check
          %p633 = pneg %p197
        $region66: #{multi_wavelet_transform.12} parent=63 // pred_check_branch
          %635 = sbr.rel (%p633) target = $region68
        $region67: #{multi_wavelet_transform.12} parent=63 // pred_region
          %p636 = scmp.lt.s32.totalorder %s22, 1
          %s637 = scalar_select %p636, %s22, 1
          %s638 = smul.addr %s637, 8
          %s639 = scalar_lea.vmem %s7, %s638
        $region68: #{multi_wavelet_transform.12} parent=63 // pred_fallthru
          _
        // Predicated region
        $region69: #{multi_wavelet_transform.12} parent=63 // pred_check
          %p640 = pneg %p223
        $region70: #{multi_wavelet_transform.12} parent=63 // pred_check_branch
          %642 = sbr.rel (%p640) target = $region72
        $region71: #{multi_wavelet_transform.12} parent=63 // pred_region
          %p643 = scmp.lt.s32.totalorder %s22, 1
          %s644 = scalar_select %p643, %s22, 1
          %s645 = smul.addr %s644, 8
          %s646 = scalar_lea.vmem %s8, %s645
        $region72: #{multi_wavelet_transform.12} parent=63 // pred_fallthru
          _
      $region64: #{multi_wavelet_transform.12} parent=5 // pred_fallthru
        _
    $region6: #{multi_wavelet_transform.12} parent=1 // loop_footer
      %s20 = sadd.s32 1, %s16
    $region7: #{multi_wavelet_transform.12} parent=1 // loop_footer_branch
      %15 = sbr.rel target = $region3
    $region8: #{multi_wavelet_transform.12} parent=1 // loop_exit
      _
    %647 = vsyncpa [#allocation3], 1
    %s648 = scalar_lea.sflag [#allocation3], 1
    %649 = vsyncpa %s648, 1

// kernel: multi_wavelet_transform.14
$region0: #{multi_wavelet_transform.14}
  #allocation0 [shape = 'u32[]', space=smem, size = 0x4, offset = 0x4, fixed_abs, tag = 'smem constant byte address 0x4 - core index']
  #allocation1 [shape = 'u32[72,128]{1,0:T(1,128)}', space=vmem, size = 0x9000, scoped, tag = 'internal scratch']
  %s0 = inlined_call_operand.vmem [shape: f32[2,2,32], index: 0, kind: input, shape index: {}]
  %s1 = inlined_call_operand.vmem [shape: f32[32,32], index: 1, kind: input, shape index: {}]
  %s2 = inlined_call_operand.vmem [shape: f32[2,2], index: 2, kind: input, shape index: {}]
  %s3 = inlined_call_operand.vmem [shape: f32[2,2], index: 3, kind: input, shape index: {}]
  %s4 = inlined_call_operand.vmem [shape: f32[2,64,64], index: 4, kind: input, shape index: {}]
  %s5 = inlined_call_operand.vmem [shape: f32[2,2], index: 5, kind: input, shape index: {}]
  %s6 = inlined_call_operand.vmem [shape: f32[2,2], index: 6, kind: input, shape index: {}]
  %s7 = inlined_call_operand.vmem [shape: f32[2,2,32], index: 7, kind: output, shape index: {0}]
  %s8 = inlined_call_operand.vmem [shape: f32[2,2,32], index: 8, kind: output, shape index: {1}]
  %9 = xla_tuple %s7, %s8
  %s10 = sld [smem:[#allocation0]]
  $region69: #{multi_wavelet_transform.14} parent=0
    _
  %s12 = ssub.s32 1, %s10
  %s13 = scalar_select 0, %s12, %s10
  loop: start=0, step=1, limit=4
  $region2: #{multi_wavelet_transform.14} parent=0 // loop_pre_header
    _
  $region3: #{multi_wavelet_transform.14} parent=0 // loop_header
    %s15 = sphi 0, %s19
    %p16 = scmp.ge.s32.totalorder %s15, 4
    %s25 = sphi 0, %s27
    %s28 = sphi 0, %s25
    %s29 = sphi 0, %s28
    %s45 = sphi 0, %s29
    %s49 = sphi 0, %s49
    %s51 = sphi 0, %s49
    %s52 = sphi 0, %s51
    %s66 = sphi 0, %s52
    %s70 = sphi 0, %s70
    %s72 = sphi 0, %s70
    %s73 = sphi 0, %s72
    %s87 = sphi 0, %s73
    %s91 = sphi 0, %s91
    %s93 = sphi 0, %s91
    %s94 = sphi 0, %s93
    %s108 = sphi 0, %s94
    %s112 = sphi 0, %s112
    %s114 = sphi 0, %s112
    %s115 = sphi 0, %s114
    %s129 = sphi 0, %s115
    %s133 = sphi 0, %s133
    %s135 = sphi 0, %s133
    %s136 = sphi 0, %s135
    %s150 = sphi 0, %s136
    %s154 = sphi 0, %s154
    %s156 = sphi 0, %s154
    %s157 = sphi 0, %s156
    %s171 = sphi 0, %s157
    %s177 = sphi 0, %s179
    %s180 = sphi 0, %s177
    %s181 = sphi 0, %s180
    %s197 = sphi 0, %s181
    %s203 = sphi 0, %s205
    %s206 = sphi 0, %s203
    %s207 = sphi 0, %s206
    %s223 = sphi 0, %s207
  $region4: #{multi_wavelet_transform.14} parent=0 // loop_header_branch
    %18 = sbr.rel (%p16) target = $region8
  $region5: #{multi_wavelet_transform.14} parent=0 // loop_body
    %s20 = ssub.s32 %s15, 1
    %s21 = ssub.s32 %s15, 2
    %s22 = sadd.s32 %s15, 1
    %s23 = ssub.s32 %s15, %s22
    %p24 = scmp.eq.s32.totalorder %s23, 0
    %s26 = sadd.s32 %s25, 1
    %s27 = scalar_select %p24, %s25, %s26
    %p30 = pneg %p24
    %p31 = scmp.eq.s32.totalorder %s15, 1
    %p32 = por %p30, %p31
    %p33 = scmp.ne.s32.totalorder %s25, %s28
    %p34 = scmp.eq.s32.totalorder %s15, 0
    %p35 = por %p33, %p34
    %p36 = scmp.ne.s32.totalorder %s25, %s28
    %p37 = scmp.eq.s32.totalorder %s20, 1
    %p38 = por %p36, %p37
    %p39 = scmp.ne.s32.totalorder %s28, %s29
    %p40 = scmp.eq.s32.totalorder %s20, 0
    %p41 = por %p39, %p40
    %p42 = scmp.ne.s32.totalorder %s28, %s29
    %p43 = scmp.eq.s32.totalorder %s21, 1
    %p44 = por %p42, %p43
    %p46 = scmp.ne.s32.totalorder %s29, %s45
    %p47 = scmp.eq.s32.totalorder %s21, 0
    %p48 = por %p46, %p47
    %s50 = sadd.s32 %s49, 1
    %p53 = scmp.eq.s32.totalorder %s15, 1
    %p54 = scmp.ne.s32.totalorder %s49, %s51
    %p55 = scmp.eq.s32.totalorder %s15, 0
    %p56 = por %p54, %p55
    %p57 = scmp.ne.s32.totalorder %s49, %s51
    %p58 = scmp.eq.s32.totalorder %s20, 1
    %p59 = por %p57, %p58
    %p60 = scmp.ne.s32.totalorder %s51, %s52
    %p61 = scmp.eq.s32.totalorder %s20, 0
    %p62 = por %p60, %p61
    %p63 = scmp.ne.s32.totalorder %s51, %s52
    %p64 = scmp.eq.s32.totalorder %s21, 1
    %p65 = por %p63, %p64
    %p67 = scmp.ne.s32.totalorder %s52, %s66
    %p68 = scmp.eq.s32.totalorder %s21, 0
    %p69 = por %p67, %p68
    %s71 = sadd.s32 %s70, 1
    %p74 = scmp.eq.s32.totalorder %s15, 1
    %p75 = scmp.ne.s32.totalorder %s70, %s72
    %p76 = scmp.eq.s32.totalorder %s15, 0
    %p77 = por %p75, %p76
    %p78 = scmp.ne.s32.totalorder %s70, %s72
    %p79 = scmp.eq.s32.totalorder %s20, 1
    %p80 = por %p78, %p79
    %p81 = scmp.ne.s32.totalorder %s72, %s73
    %p82 = scmp.eq.s32.totalorder %s20, 0
    %p83 = por %p81, %p82
    %p84 = scmp.ne.s32.totalorder %s72, %s73
    %p85 = scmp.eq.s32.totalorder %s21, 1
    %p86 = por %p84, %p85
    %p88 = scmp.ne.s32.totalorder %s73, %s87
    %p89 = scmp.eq.s32.totalorder %s21, 0
    %p90 = por %p88, %p89
    %s92 = sadd.s32 %s91, 1
    %p95 = scmp.eq.s32.totalorder %s15, 1
    %p96 = scmp.ne.s32.totalorder %s91, %s93
    %p97 = scmp.eq.s32.totalorder %s15, 0
    %p98 = por %p96, %p97
    %p99 = scmp.ne.s32.totalorder %s91, %s93
    %p100 = scmp.eq.s32.totalorder %s20, 1
    %p101 = por %p99, %p100
    %p102 = scmp.ne.s32.totalorder %s93, %s94
    %p103 = scmp.eq.s32.totalorder %s20, 0
    %p104 = por %p102, %p103
    %p105 = scmp.ne.s32.totalorder %s93, %s94
    %p106 = scmp.eq.s32.totalorder %s21, 1
    %p107 = por %p105, %p106
    %p109 = scmp.ne.s32.totalorder %s94, %s108
    %p110 = scmp.eq.s32.totalorder %s21, 0
    %p111 = por %p109, %p110
    %s113 = sadd.s32 %s112, 1
    %p116 = scmp.eq.s32.totalorder %s15, 1
    %p117 = scmp.ne.s32.totalorder %s112, %s114
    %p118 = scmp.eq.s32.totalorder %s15, 0
    %p119 = por %p117, %p118
    %p120 = scmp.ne.s32.totalorder %s112, %s114
    %p121 = scmp.eq.s32.totalorder %s20, 1
    %p122 = por %p120, %p121
    %p123 = scmp.ne.s32.totalorder %s114, %s115
    %p124 = scmp.eq.s32.totalorder %s20, 0
    %p125 = por %p123, %p124
    %p126 = scmp.ne.s32.totalorder %s114, %s115
    %p127 = scmp.eq.s32.totalorder %s21, 1
    %p128 = por %p126, %p127
    %p130 = scmp.ne.s32.totalorder %s115, %s129
    %p131 = scmp.eq.s32.totalorder %s21, 0
    %p132 = por %p130, %p131
    %s134 = sadd.s32 %s133, 1
    %p137 = scmp.eq.s32.totalorder %s15, 1
    %p138 = scmp.ne.s32.totalorder %s133, %s135
    %p139 = scmp.eq.s32.totalorder %s15, 0
    %p140 = por %p138, %p139
    %p141 = scmp.ne.s32.totalorder %s133, %s135
    %p142 = scmp.eq.s32.totalorder %s20, 1
    %p143 = por %p141, %p142
    %p144 = scmp.ne.s32.totalorder %s135, %s136
    %p145 = scmp.eq.s32.totalorder %s20, 0
    %p146 = por %p144, %p145
    %p147 = scmp.ne.s32.totalorder %s135, %s136
    %p148 = scmp.eq.s32.totalorder %s21, 1
    %p149 = por %p147, %p148
    %p151 = scmp.ne.s32.totalorder %s136, %s150
    %p152 = scmp.eq.s32.totalorder %s21, 0
    %p153 = por %p151, %p152
    %s155 = sadd.s32 %s154, 1
    %p158 = scmp.eq.s32.totalorder %s15, 1
    %p159 = scmp.ne.s32.totalorder %s154, %s156
    %p160 = scmp.eq.s32.totalorder %s15, 0
    %p161 = por %p159, %p160
    %p162 = scmp.ne.s32.totalorder %s154, %s156
    %p163 = scmp.eq.s32.totalorder %s20, 1
    %p164 = por %p162, %p163
    %p165 = scmp.ne.s32.totalorder %s156, %s157
    %p166 = scmp.eq.s32.totalorder %s20, 0
    %p167 = por %p165, %p166
    %p168 = scmp.ne.s32.totalorder %s156, %s157
    %p169 = scmp.eq.s32.totalorder %s21, 1
    %p170 = por %p168, %p169
    %p172 = scmp.ne.s32.totalorder %s157, %s171
    %p173 = scmp.eq.s32.totalorder %s21, 0
    %p174 = por %p172, %p173
    %s175 = ssub.s32 %s15, %s22
    %p176 = scmp.eq.s32.totalorder %s175, 0
    %s178 = sadd.s32 %s177, 1
    %s179 = scalar_select %p176, %s177, %s178
    %p182 = pneg %p176
    %p183 = scmp.eq.s32.totalorder %s15, 1
    %p184 = por %p182, %p183
    %p185 = scmp.ne.s32.totalorder %s177, %s180
    %p186 = scmp.eq.s32.totalorder %s15, 0
    %p187 = por %p185, %p186
    %p188 = scmp.ne.s32.totalorder %s177, %s180
    %p189 = scmp.eq.s32.totalorder %s20, 1
    %p190 = por %p188, %p189
    %p191 = scmp.ne.s32.totalorder %s180, %s181
    %p192 = scmp.eq.s32.totalorder %s20, 0
    %p193 = por %p191, %p192
    %p194 = scmp.ne.s32.totalorder %s180, %s181
    %p195 = scmp.eq.s32.totalorder %s21, 1
    %p196 = por %p194, %p195
    %p198 = scmp.ne.s32.totalorder %s181, %s197
    %p199 = scmp.eq.s32.totalorder %s21, 0
    %p200 = por %p198, %p199
    %s201 = ssub.s32 %s15, %s22
    %p202 = scmp.eq.s32.totalorder %s201, 0
    %s204 = sadd.s32 %s203, 1
    %s205 = scalar_select %p202, %s203, %s204
    %p208 = pneg %p202
    %p209 = scmp.eq.s32.totalorder %s15, 1
    %p210 = por %p208, %p209
    %p211 = scmp.ne.s32.totalorder %s203, %s206
    %p212 = scmp.eq.s32.totalorder %s15, 0
    %p213 = por %p211, %p212
    %p214 = scmp.ne.s32.totalorder %s203, %s206
    %p215 = scmp.eq.s32.totalorder %s20, 1
    %p216 = por %p214, %p215
    %p217 = scmp.ne.s32.totalorder %s206, %s207
    %p218 = scmp.eq.s32.totalorder %s20, 0
    %p219 = por %p217, %p218
    %p220 = scmp.ne.s32.totalorder %s206, %s207
    %p221 = scmp.eq.s32.totalorder %s21, 1
    %p222 = por %p220, %p221
    %p224 = scmp.ne.s32.totalorder %s207, %s223
    %p225 = scmp.eq.s32.totalorder %s21, 0
    %p226 = por %p224, %p225
    %p227 = scmp.le.s32.totalorder 1, %s15
    %p228 = scmp.lt.s32.totalorder %s15, 3
    %p229 = pnand %p227, %p228
    %p230 = pneg %p229
    // Predicated region
    $region9: #{multi_wavelet_transform.14} parent=5 // pred_check
      _
    $region10: #{multi_wavelet_transform.14} parent=5 // pred_check_branch
      %232 = sbr.rel (%p229) target = $region12
    $region11: #{multi_wavelet_transform.14} parent=5 // pred_region
      %s233 = ssub.s32 %s15, 1
      // Predicated region
      $region13: #{multi_wavelet_transform.14} parent=11 // pred_check
        %p234 = pneg %p62
      $region14: #{multi_wavelet_transform.14} parent=11 // pred_check_branch
        %236 = sbr.rel (%p234) target = $region16
      $region15: #{multi_wavelet_transform.14} parent=11 // pred_region
        _
      $region16: #{multi_wavelet_transform.14} parent=11 // pred_fallthru
        _
      // Predicated region
      $region17: #{multi_wavelet_transform.14} parent=11 // pred_check
        %p237 = pneg %p83
      $region18: #{multi_wavelet_transform.14} parent=11 // pred_check_branch
        %239 = sbr.rel (%p237) target = $region20
      $region19: #{multi_wavelet_transform.14} parent=11 // pred_region
        _
      $region20: #{multi_wavelet_transform.14} parent=11 // pred_fallthru
        _
      // Predicated region
      $region21: #{multi_wavelet_transform.14} parent=11 // pred_check
        %p240 = pneg %p104
      $region22: #{multi_wavelet_transform.14} parent=11 // pred_check_branch
        %242 = sbr.rel (%p240) target = $region24
      $region23: #{multi_wavelet_transform.14} parent=11 // pred_region
        _
      $region24: #{multi_wavelet_transform.14} parent=11 // pred_fallthru
        _
      // Predicated region
      $region25: #{multi_wavelet_transform.14} parent=11 // pred_check
        %p243 = pneg %p125
      $region26: #{multi_wavelet_transform.14} parent=11 // pred_check_branch
        %245 = sbr.rel (%p243) target = $region28
      $region27: #{multi_wavelet_transform.14} parent=11 // pred_region
        _
      $region28: #{multi_wavelet_transform.14} parent=11 // pred_fallthru
        _
      // Predicated region
      $region29: #{multi_wavelet_transform.14} parent=11 // pred_check
        %p246 = pneg %p146
      $region30: #{multi_wavelet_transform.14} parent=11 // pred_check_branch
        %248 = sbr.rel (%p246) target = $region32
      $region31: #{multi_wavelet_transform.14} parent=11 // pred_region
        _
      $region32: #{multi_wavelet_transform.14} parent=11 // pred_fallthru
        _
      // Predicated region
      $region33: #{multi_wavelet_transform.14} parent=11 // pred_check
        %p249 = pneg %p167
      $region34: #{multi_wavelet_transform.14} parent=11 // pred_check_branch
        %251 = sbr.rel (%p249) target = $region36
      $region35: #{multi_wavelet_transform.14} parent=11 // pred_region
        _
      $region36: #{multi_wavelet_transform.14} parent=11 // pred_fallthru
        _
    $region12: #{multi_wavelet_transform.14} parent=5 // pred_fallthru
      _
    %p252 = scmp.lt.s32.totalorder %s15, 2
    // Predicated region
    $region37: #{multi_wavelet_transform.14} parent=5 // pred_check
      %p253 = pneg %p252
    $region38: #{multi_wavelet_transform.14} parent=5 // pred_check_branch
      %255 = sbr.rel (%p253) target = $region40
    $region39: #{multi_wavelet_transform.14} parent=5 // pred_region
      // Predicated region
      $region41: #{multi_wavelet_transform.14} parent=39 // pred_check
        %p256 = pneg %p35
      $region42: #{multi_wavelet_transform.14} parent=39 // pred_check_branch
        %258 = sbr.rel (%p256) target = $region44
      $region43: #{multi_wavelet_transform.14} parent=39 // pred_region
        %p259 = scmp.lt.s32.totalorder %s15, 1
        %s260 = scalar_select %p259, %s15, 1
        %s261 = smul.addr %s260, 2
        %s262 = scalar_lea.vmem %s0, %s261
      $region44: #{multi_wavelet_transform.14} parent=39 // pred_fallthru
        _
    $region40: #{multi_wavelet_transform.14} parent=5 // pred_fallthru
      _
    %p263 = scmp.le.s32.totalorder 1, %s15
    %p264 = scmp.lt.s32.totalorder %s15, 3
    %p265 = pnand %p263, %p264
    %p266 = pneg %p265
    // Predicated region
    $region45: #{multi_wavelet_transform.14} parent=5 // pred_check
      _
    $region46: #{multi_wavelet_transform.14} parent=5 // pred_check_branch
      %268 = sbr.rel (%p265) target = $region48
    $region47: #{multi_wavelet_transform.14} parent=5 // pred_region
      %s269 = ssub.s32 %s15, 1
      %p270 = scmp.lt.s32.totalorder %s20, 1
      %s271 = scalar_select %p270, %s20, 1
      %s272 = smul.addr %s271, 2
      %s273 = scalar_lea.vmem %s0, %s272
      %p274 = pneg %p41
      %p275 = pneg %p38
      %p276 = pneg %p62
      %p277 = pneg %p59
      %p278 = pneg %p83
      %p279 = pneg %p80
      %p280 = pneg %p104
      %p281 = pneg %p101
      %p282 = pneg %p125
      %p283 = pneg %p122
      %p284 = pneg %p146
      %p285 = pneg %p143
      %p286 = pneg %p167
      %p287 = pneg %p164
      %p288 = pneg %p193
      %p289 = pneg %p190
      %p290 = scmp.lt.s32.totalorder %s20, 1
      %s291 = scalar_select %p290, %s20, 1
      %s292 = smul.addr %s291, 2
      %s293 = scalar_lea.vmem %s7, %s292
      %p294 = pneg %p219
      %p295 = pneg %p216
      %p296 = scmp.lt.s32.totalorder %s20, 1
      %s297 = scalar_select %p296, %s20, 1
      %s298 = smul.addr %s297, 2
      %s299 = scalar_lea.vmem %s8, %s298
      %p300 = scmp.lt.s32.totalorder %s20, 1
      %s301 = scalar_select %p300, %s20, 1
      %s302 = smul.addr %s301, 2
      %s303 = scalar_lea.vmem %s0, %s302
      %p304 = scmp.lt.s32.totalorder %s20, 1
      %s305 = scalar_select %p304, %s20, 1
      %s306 = smul.addr %s305, 2
      %s307 = scalar_lea.vmem %s7, %s306
      %p308 = scmp.lt.s32.totalorder %s20, 1
      %s309 = scalar_select %p308, %s20, 1
      %s310 = smul.addr %s309, 2
      %s311 = scalar_lea.vmem %s8, %s310
      %v312 = vld [vmem:[%s303] sm:$0x3]
      %v313 = vld [vmem:[%s1] sm:$0xff]
      %v314 = vld [vmem:[%s1 + $0x8] sm:$0xff]
      %v315 = vld [vmem:[%s1 + $0x10] sm:$0xff]
      %v316 = vld [vmem:[%s1 + $0x18] sm:$0xff]
      %vm317 = vcmask 261120
      %v319 = vsel %vm317, %v312, 0
      %321 = vmatpush.msra.mxu0 0.0
      %322 = vmatpush.msra.mxu0 0.0
      %323 = vmatpush.msra.mxu0 0.0
      %324 = vmatpush.msra.mxu0 0.0
      %325 = vmatpush.msra.mxu0 0.0
      %326 = vmatpush.msra.mxu0 0.0
      %327 = vmatpush.msra.mxu0 0.0
      %328 = vmatpush.msra.mxu0 0.0
      %329 = vmatpush.msra.mxu0 0.0
      %330 = vmatpush.msra.mxu0 0.0
      %331 = vmatpush.msra.mxu0 0.0
      %332 = vmatpush.msra.mxu0 0.0
      %333 = vmatpush.msra.mxu0 %v316
      %334 = vmatpush.msra.mxu0 %v315
      %335 = vmatpush.msra.mxu0 %v314
      %336 = vmatpush.msra.mxu0 %v313
      %337 = vmatmul.f32.gmra.mxu0 %v319
      %v338 = vpop.f32.mrf.mxu0
      %v339 = vadd.f32 0.0, %v338
      %340 = vdwg.mxu0
      %vm341 = vcmask 254976
      %342 = vst.msk [vmem:[%s311] sm:$0x3] %vm341, %v339
      %v343 = vld [vmem:[%s2] sm:$0x3]
      %vm344 = vcmask 15360
      %v346 = vsel %vm344, %v343, 0
      %vm348 = vcmask 1041408
      %v350 = vsel %vm348, %v339, 0
      %352 = vmatpush.msra.mxu0 0.0
      %353 = vmatpush.msra.mxu0 0.0
      %354 = vmatpush.msra.mxu0 0.0
      %355 = vmatpush.msra.mxu0 0.0
      %356 = vmatpush.msra.mxu0 0.0
      %357 = vmatpush.msra.mxu0 0.0
      %358 = vmatpush.msra.mxu0 0.0
      %359 = vmatpush.msra.mxu0 0.0
      %360 = vmatpush.msra.mxu0 0.0
      %361 = vmatpush.msra.mxu0 0.0
      %362 = vmatpush.msra.mxu0 0.0
      %363 = vmatpush.msra.mxu0 0.0
      %364 = vmatpush.msra.mxu0 0.0
      %365 = vmatpush.msra.mxu0 0.0
      %366 = vmatpush.msra.mxu0 0.0
      %367 = vmatpush.msra.mxu0 %v350
      %368 = vmatmul.f32.gmra.mxu0 %v346
      %v369 = vpop.f32.mrf.mxu0
      %v370 = vadd.f32 0.0, %v369
      %371 = vdwg.mxu0
      %v372 = vld [vmem:[%s3] sm:$0x3]
      %v374 = vsel %vm344, %v372, 0
      %376 = vmatpush.msra.mxu0 0.0
      %377 = vmatpush.msra.mxu0 0.0
      %378 = vmatpush.msra.mxu0 0.0
      %379 = vmatpush.msra.mxu0 0.0
      %380 = vmatpush.msra.mxu0 0.0
      %381 = vmatpush.msra.mxu0 0.0
      %382 = vmatpush.msra.mxu0 0.0
      %383 = vmatpush.msra.mxu0 0.0
      %384 = vmatpush.msra.mxu0 0.0
      %385 = vmatpush.msra.mxu0 0.0
      %386 = vmatpush.msra.mxu0 0.0
      %387 = vmatpush.msra.mxu0 0.0
      %388 = vmatpush.msra.mxu0 0.0
      %389 = vmatpush.msra.mxu0 0.0
      %390 = vmatpush.msra.mxu0 0.0
      %391 = vmatpush.msra.mxu0 %v350
      %392 = vmatmul.f32.gmra.mxu0 %v374
      %v393 = vpop.f32.mrf.mxu0
      %v394 = vadd.f32 0.0, %v393
      %395 = vdwg.mxu0
      %397 = vrot.lane.b32.xlu0 %v394, 32
      %v398 = vpop.permute.xlu0 %397
      %v400 = vsel %vm317, %v370, %v398
      %v401 = vld [vmem:[%s4] sm:$0xff]
      %v402 = vld [vmem:[%s4 + $0x8] sm:$0xff]
      %v403 = vld [vmem:[%s4 + $0x10] sm:$0xff]
      %v404 = vld [vmem:[%s4 + $0x18] sm:$0xff]
      %v405 = vld [vmem:[%s4 + $0x20] sm:$0xff]
      %v406 = vld [vmem:[%s4 + $0x28] sm:$0xff]
      %v407 = vld [vmem:[%s4 + $0x30] sm:$0xff]
      %v408 = vld [vmem:[%s4 + $0x38] sm:$0xff]
      %vm409 = vcmask 523264
      %v411 = vsel %vm409, %v400, 0
      %413 = vmatpush.msra.mxu0 0.0
      %414 = vmatpush.msra.mxu0 0.0
      %415 = vmatpush.msra.mxu0 0.0
      %416 = vmatpush.msra.mxu0 0.0
      %417 = vmatpush.msra.mxu0 0.0
      %418 = vmatpush.msra.mxu0 0.0
      %419 = vmatpush.msra.mxu0 0.0
      %420 = vmatpush.msra.mxu0 0.0
      %421 = vmatpush.msra.mxu0 %v408
      %422 = vmatpush.msra.mxu0 %v407
      %423 = vmatpush.msra.mxu0 %v406
      %424 = vmatpush.msra.mxu0 %v405
      %425 = vmatpush.msra.mxu0 %v404
      %426 = vmatpush.msra.mxu0 %v403
      %427 = vmatpush.msra.mxu0 %v402
      %428 = vmatpush.msra.mxu0 %v401
      %429 = vmatmul.f32.gmra.mxu0 %v411
      %v430 = vpop.f32.mrf.mxu0
      %v431 = vadd.f32 0.0, %v430
      %432 = vdwg.mxu0
      %s433 = scalar_lea.vmem %s4, 64
      %v434 = vld [vmem:[%s433] sm:$0xff]
      %v435 = vld [vmem:[%s433 + $0x8] sm:$0xff]
      %v436 = vld [vmem:[%s433 + $0x10] sm:$0xff]
      %v437 = vld [vmem:[%s433 + $0x18] sm:$0xff]
      %v438 = vld [vmem:[%s433 + $0x20] sm:$0xff]
      %v439 = vld [vmem:[%s433 + $0x28] sm:$0xff]
      %v440 = vld [vmem:[%s433 + $0x30] sm:$0xff]
      %v441 = vld [vmem:[%s433 + $0x38] sm:$0xff]
      %v442 = vrot.slane %v400, 1
      %v443 = vsel %vm409, %v442, 0
      %445 = vmatpush.msra.mxu0 0.0
      %446 = vmatpush.msra.mxu0 0.0
      %447 = vmatpush.msra.mxu0 0.0
      %448 = vmatpush.msra.mxu0 0.0
      %449 = vmatpush.msra.mxu0 0.0
      %450 = vmatpush.msra.mxu0 0.0
      %451 = vmatpush.msra.mxu0 0.0
      %452 = vmatpush.msra.mxu0 0.0
      %453 = vmatpush.msra.mxu0 %v441
      %454 = vmatpush.msra.mxu0 %v440
      %455 = vmatpush.msra.mxu0 %v439
      %456 = vmatpush.msra.mxu0 %v438
      %457 = vmatpush.msra.mxu0 %v437
      %458 = vmatpush.msra.mxu0 %v436
      %459 = vmatpush.msra.mxu0 %v435
      %460 = vmatpush.msra.mxu0 %v434
      %461 = vmatmul.f32.gmra.mxu0 %v443
      %v462 = vpop.f32.mrf.mxu0
      %v463 = vadd.f32 0.0, %v462
      %464 = vdwg.mxu0
      %v466 = vrot.slane %v463, 7
      %vm468 = vcmask 1040384
      %v469 = vsel %vm468, %v431, %v466
      %v470 = vld [vmem:[%s5] sm:$0x3]
      %v471 = vld [vmem:[%s6] sm:$0x3]
      %473 = vrot.lane.b32.xlu0 %v469, 96
      %v474 = vpop.permute.xlu0 %473
      %v476 = vsel %vm344, %v471, 0
      %v478 = vsel %vm348, %v474, 0
      %480 = vmatpush.msra.mxu0 0.0
      %481 = vmatpush.msra.mxu0 0.0
      %482 = vmatpush.msra.mxu0 0.0
      %483 = vmatpush.msra.mxu0 0.0
      %484 = vmatpush.msra.mxu0 0.0
      %485 = vmatpush.msra.mxu0 0.0
      %486 = vmatpush.msra.mxu0 0.0
      %487 = vmatpush.msra.mxu0 0.0
      %488 = vmatpush.msra.mxu0 0.0
      %489 = vmatpush.msra.mxu0 0.0
      %490 = vmatpush.msra.mxu0 0.0
      %491 = vmatpush.msra.mxu0 0.0
      %492 = vmatpush.msra.mxu0 0.0
      %493 = vmatpush.msra.mxu0 0.0
      %494 = vmatpush.msra.mxu0 0.0
      %495 = vmatpush.msra.mxu0 %v478
      %496 = vmatmul.f32.gmra.mxu0 %v476
      %v497 = vpop.f32.mrf.mxu0
      %v498 = vadd.f32 0.0, %v497
      %499 = vdwg.mxu0
      %v501 = vsel %vm344, %v470, 0
      %v503 = vsel %vm348, %v469, 0
      %505 = vmatpush.msra.mxu0 0.0
      %506 = vmatpush.msra.mxu0 0.0
      %507 = vmatpush.msra.mxu0 0.0
      %508 = vmatpush.msra.mxu0 0.0
      %509 = vmatpush.msra.mxu0 0.0
      %510 = vmatpush.msra.mxu0 0.0
      %511 = vmatpush.msra.mxu0 0.0
      %512 = vmatpush.msra.mxu0 0.0
      %513 = vmatpush.msra.mxu0 0.0
      %514 = vmatpush.msra.mxu0 0.0
      %515 = vmatpush.msra.mxu0 0.0
      %516 = vmatpush.msra.mxu0 0.0
      %517 = vmatpush.msra.mxu0 0.0
      %518 = vmatpush.msra.mxu0 0.0
      %519 = vmatpush.msra.mxu0 0.0
      %520 = vmatpush.msra.mxu0 %v503
      %521 = vmatmul.f32.gmra.mxu0 %v501
      %v522 = vpop.f32.mrf.mxu0
      %v523 = vadd.f32 %v498, %v522
      %524 = vdwg.mxu0
      %525 = vst.msk [vmem:[%s307] sm:$0x3] %vm341, %v523
      %p526 = scmp.lt.s32.totalorder %s20, 1
      %s527 = scalar_select %p526, %s20, 1
      %s528 = smul.addr %s527, 2
      %s529 = scalar_lea.vmem %s7, %s528
      %p530 = scmp.lt.s32.totalorder %s20, 1
      %s531 = scalar_select %p530, %s20, 1
      %s532 = smul.addr %s531, 2
      %s533 = scalar_lea.vmem %s8, %s532
      // Predicated region
      $region49: #{multi_wavelet_transform.14} parent=47 // pred_check
        %p534 = pneg %p190
      $region50: #{multi_wavelet_transform.14} parent=47 // pred_check_branch
        %536 = sbr.rel (%p534) target = $region52
      $region51: #{multi_wavelet_transform.14} parent=47 // pred_region
        _
      $region52: #{multi_wavelet_transform.14} parent=47 // pred_fallthru
        _
      // Predicated region
      $region53: #{multi_wavelet_transform.14} parent=47 // pred_check
        %p537 = pneg %p216
      $region54: #{multi_wavelet_transform.14} parent=47 // pred_check_branch
        %539 = sbr.rel (%p537) target = $region56
      $region55: #{multi_wavelet_transform.14} parent=47 // pred_region
        _
      $region56: #{multi_wavelet_transform.14} parent=47 // pred_fallthru
        _
    $region48: #{multi_wavelet_transform.14} parent=5 // pred_fallthru
      _
    %p540 = scmp.le.s32.totalorder 2, %s15
    // Predicated region
    $region57: #{multi_wavelet_transform.14} parent=5 // pred_check
      %p541 = pneg %p540
    $region58: #{multi_wavelet_transform.14} parent=5 // pred_check_branch
      %543 = sbr.rel (%p541) target = $region60
    $region59: #{multi_wavelet_transform.14} parent=5 // pred_region
      %s544 = ssub.s32 %s15, 2
      // Predicated region
      $region61: #{multi_wavelet_transform.14} parent=59 // pred_check
        %p545 = pneg %p196
      $region62: #{multi_wavelet_transform.14} parent=59 // pred_check_branch
        %547 = sbr.rel (%p545) target = $region64
      $region63: #{multi_wavelet_transform.14} parent=59 // pred_region
        %p548 = scmp.lt.s32.totalorder %s21, 1
        %s549 = scalar_select %p548, %s21, 1
        %s550 = smul.addr %s549, 2
        %s551 = scalar_lea.vmem %s7, %s550
      $region64: #{multi_wavelet_transform.14} parent=59 // pred_fallthru
        _
      // Predicated region
      $region65: #{multi_wavelet_transform.14} parent=59 // pred_check
        %p552 = pneg %p222
      $region66: #{multi_wavelet_transform.14} parent=59 // pred_check_branch
        %554 = sbr.rel (%p552) target = $region68
      $region67: #{multi_wavelet_transform.14} parent=59 // pred_region
        %p555 = scmp.lt.s32.totalorder %s21, 1
        %s556 = scalar_select %p555, %s21, 1
        %s557 = smul.addr %s556, 2
        %s558 = scalar_lea.vmem %s8, %s557
      $region68: #{multi_wavelet_transform.14} parent=59 // pred_fallthru
        _
    $region60: #{multi_wavelet_transform.14} parent=5 // pred_fallthru
      _
  $region6: #{multi_wavelet_transform.14} parent=0 // loop_footer
    %s19 = sadd.s32 1, %s15
  $region7: #{multi_wavelet_transform.14} parent=0 // loop_footer_branch
    %14 = sbr.rel target = $region3
  $region8: #{multi_wavelet_transform.14} parent=0 // loop_exit
    _

// kernel: multi_wavelet_transform.15
$region0: #{multi_wavelet_transform.15}
  #allocation0 [shape = 'u32[]', space=smem, size = 0x4, offset = 0x4, fixed_abs, tag = 'smem constant byte address 0x4 - core index']
  #allocation1 [shape = 'u32[72,128]{1,0:T(1,128)}', space=vmem, size = 0x9000, scoped, tag = 'internal scratch']
  #allocation2 [shape = 'f32[1,1]{1,0:T(1,128)S(1)}', space=vmem, size = 0x200, scoped, tag = 'scoped memory for multi_wavelet_transform.15']
  #allocation3 [shape = 'f32[1,1]{1,0:T(1,128)S(1)}', space=vmem, size = 0x200, scoped, tag = 'scoped memory for multi_wavelet_transform.15']
  #allocation4 [shape = 'f32[1,1]{1,0:T(1,128)S(1)}', space=vmem, size = 0x200, scoped, tag = 'scoped memory for multi_wavelet_transform.15']
  #allocation5 [shape = 'f32[1,1]{1,0:T(1,128)S(1)}', space=vmem, size = 0x200, scoped, tag = 'scoped memory for multi_wavelet_transform.15']
  %s0 = inlined_call_operand.vmem [shape: f32[2,1,32], index: 0, kind: input, shape index: {}]
  %s1 = inlined_call_operand.vmem [shape: f32[32,32], index: 1, kind: input, shape index: {}]
  %s2 = inlined_call_operand.<no memory space> [shape: f32[1,1], index: 2, kind: input, shape index: {}, may-alias: {2,5}]
  %s3 = inlined_call_operand.<no memory space> [shape: f32[1,1], index: 3, kind: input, shape index: {}, may-alias: {3,6}]
  %s4 = inlined_call_operand.vmem [shape: f32[1,64,64], index: 4, kind: input, shape index: {}]
  %s5 = inlined_call_operand.<no memory space> [shape: f32[1,1], index: 5, kind: input, shape index: {}, may-alias: {2,5}]
  %s6 = inlined_call_operand.<no memory space> [shape: f32[1,1], index: 6, kind: input, shape index: {}, may-alias: {3,6}]
  %s7 = inlined_call_operand.vmem [shape: f32[2,1,32], index: 7, kind: output, shape index: {0}]
  %s8 = inlined_call_operand.vmem [shape: f32[2,1,32], index: 8, kind: output, shape index: {1}]
  %9 = xla_tuple %s7, %s8
  %s10 = sld [smem:[#allocation0]]
  $region69: #{multi_wavelet_transform.15} parent=0
    _
  %s12 = ssub.s32 1, %s10
  %s13 = scalar_select 0, %s12, %s10
  %v14 = vstv %s2
  %15 = vst [vmem:[#allocation2] sm:$0x1] %v14
  %v16 = vstv %s3
  %17 = vst [vmem:[#allocation3] sm:$0x1] %v16
  %v18 = vstv %s5
  %19 = vst [vmem:[#allocation4] sm:$0x1] %v18
  %v20 = vstv %s6
  %21 = vst [vmem:[#allocation5] sm:$0x1] %v20
  loop: start=0, step=1, limit=4
  $region2: #{multi_wavelet_transform.15} parent=0 // loop_pre_header
    _
  $region3: #{multi_wavelet_transform.15} parent=0 // loop_header
    %s23 = sphi 0, %s27
    %p24 = scmp.ge.s32.totalorder %s23, 4
    %s33 = sphi 0, %s35
    %s36 = sphi 0, %s33
    %s37 = sphi 0, %s36
    %s53 = sphi 0, %s37
    %s57 = sphi 0, %s57
    %s59 = sphi 0, %s57
    %s60 = sphi 0, %s59
    %s74 = sphi 0, %s60
    %s78 = sphi 0, %s78
    %s80 = sphi 0, %s78
    %s81 = sphi 0, %s80
    %s95 = sphi 0, %s81
    %s99 = sphi 0, %s99
    %s101 = sphi 0, %s99
    %s102 = sphi 0, %s101
    %s116 = sphi 0, %s102
    %s120 = sphi 0, %s120
    %s122 = sphi 0, %s120
    %s123 = sphi 0, %s122
    %s137 = sphi 0, %s123
    %s141 = sphi 0, %s141
    %s143 = sphi 0, %s141
    %s144 = sphi 0, %s143
    %s158 = sphi 0, %s144
    %s162 = sphi 0, %s162
    %s164 = sphi 0, %s162
    %s165 = sphi 0, %s164
    %s179 = sphi 0, %s165
    %s185 = sphi 0, %s187
    %s188 = sphi 0, %s185
    %s189 = sphi 0, %s188
    %s205 = sphi 0, %s189
    %s211 = sphi 0, %s213
    %s214 = sphi 0, %s211
    %s215 = sphi 0, %s214
    %s231 = sphi 0, %s215
  $region4: #{multi_wavelet_transform.15} parent=0 // loop_header_branch
    %26 = sbr.rel (%p24) target = $region8
  $region5: #{multi_wavelet_transform.15} parent=0 // loop_body
    %s28 = ssub.s32 %s23, 1
    %s29 = ssub.s32 %s23, 2
    %s30 = sadd.s32 %s23, 1
    %s31 = ssub.s32 %s23, %s30
    %p32 = scmp.eq.s32.totalorder %s31, 0
    %s34 = sadd.s32 %s33, 1
    %s35 = scalar_select %p32, %s33, %s34
    %p38 = pneg %p32
    %p39 = scmp.eq.s32.totalorder %s23, 1
    %p40 = por %p38, %p39
    %p41 = scmp.ne.s32.totalorder %s33, %s36
    %p42 = scmp.eq.s32.totalorder %s23, 0
    %p43 = por %p41, %p42
    %p44 = scmp.ne.s32.totalorder %s33, %s36
    %p45 = scmp.eq.s32.totalorder %s28, 1
    %p46 = por %p44, %p45
    %p47 = scmp.ne.s32.totalorder %s36, %s37
    %p48 = scmp.eq.s32.totalorder %s28, 0
    %p49 = por %p47, %p48
    %p50 = scmp.ne.s32.totalorder %s36, %s37
    %p51 = scmp.eq.s32.totalorder %s29, 1
    %p52 = por %p50, %p51
    %p54 = scmp.ne.s32.totalorder %s37, %s53
    %p55 = scmp.eq.s32.totalorder %s29, 0
    %p56 = por %p54, %p55
    %s58 = sadd.s32 %s57, 1
    %p61 = scmp.eq.s32.totalorder %s23, 1
    %p62 = scmp.ne.s32.totalorder %s57, %s59
    %p63 = scmp.eq.s32.totalorder %s23, 0
    %p64 = por %p62, %p63
    %p65 = scmp.ne.s32.totalorder %s57, %s59
    %p66 = scmp.eq.s32.totalorder %s28, 1
    %p67 = por %p65, %p66
    %p68 = scmp.ne.s32.totalorder %s59, %s60
    %p69 = scmp.eq.s32.totalorder %s28, 0
    %p70 = por %p68, %p69
    %p71 = scmp.ne.s32.totalorder %s59, %s60
    %p72 = scmp.eq.s32.totalorder %s29, 1
    %p73 = por %p71, %p72
    %p75 = scmp.ne.s32.totalorder %s60, %s74
    %p76 = scmp.eq.s32.totalorder %s29, 0
    %p77 = por %p75, %p76
    %s79 = sadd.s32 %s78, 1
    %p82 = scmp.eq.s32.totalorder %s23, 1
    %p83 = scmp.ne.s32.totalorder %s78, %s80
    %p84 = scmp.eq.s32.totalorder %s23, 0
    %p85 = por %p83, %p84
    %p86 = scmp.ne.s32.totalorder %s78, %s80
    %p87 = scmp.eq.s32.totalorder %s28, 1
    %p88 = por %p86, %p87
    %p89 = scmp.ne.s32.totalorder %s80, %s81
    %p90 = scmp.eq.s32.totalorder %s28, 0
    %p91 = por %p89, %p90
    %p92 = scmp.ne.s32.totalorder %s80, %s81
    %p93 = scmp.eq.s32.totalorder %s29, 1
    %p94 = por %p92, %p93
    %p96 = scmp.ne.s32.totalorder %s81, %s95
    %p97 = scmp.eq.s32.totalorder %s29, 0
    %p98 = por %p96, %p97
    %s100 = sadd.s32 %s99, 1
    %p103 = scmp.eq.s32.totalorder %s23, 1
    %p104 = scmp.ne.s32.totalorder %s99, %s101
    %p105 = scmp.eq.s32.totalorder %s23, 0
    %p106 = por %p104, %p105
    %p107 = scmp.ne.s32.totalorder %s99, %s101
    %p108 = scmp.eq.s32.totalorder %s28, 1
    %p109 = por %p107, %p108
    %p110 = scmp.ne.s32.totalorder %s101, %s102
    %p111 = scmp.eq.s32.totalorder %s28, 0
    %p112 = por %p110, %p111
    %p113 = scmp.ne.s32.totalorder %s101, %s102
    %p114 = scmp.eq.s32.totalorder %s29, 1
    %p115 = por %p113, %p114
    %p117 = scmp.ne.s32.totalorder %s102, %s116
    %p118 = scmp.eq.s32.totalorder %s29, 0
    %p119 = por %p117, %p118
    %s121 = sadd.s32 %s120, 1
    %p124 = scmp.eq.s32.totalorder %s23, 1
    %p125 = scmp.ne.s32.totalorder %s120, %s122
    %p126 = scmp.eq.s32.totalorder %s23, 0
    %p127 = por %p125, %p126
    %p128 = scmp.ne.s32.totalorder %s120, %s122
    %p129 = scmp.eq.s32.totalorder %s28, 1
    %p130 = por %p128, %p129
    %p131 = scmp.ne.s32.totalorder %s122, %s123
    %p132 = scmp.eq.s32.totalorder %s28, 0
    %p133 = por %p131, %p132
    %p134 = scmp.ne.s32.totalorder %s122, %s123
    %p135 = scmp.eq.s32.totalorder %s29, 1
    %p136 = por %p134, %p135
    %p138 = scmp.ne.s32.totalorder %s123, %s137
    %p139 = scmp.eq.s32.totalorder %s29, 0
    %p140 = por %p138, %p139
    %s142 = sadd.s32 %s141, 1
    %p145 = scmp.eq.s32.totalorder %s23, 1
    %p146 = scmp.ne.s32.totalorder %s141, %s143
    %p147 = scmp.eq.s32.totalorder %s23, 0
    %p148 = por %p146, %p147
    %p149 = scmp.ne.s32.totalorder %s141, %s143
    %p150 = scmp.eq.s32.totalorder %s28, 1
    %p151 = por %p149, %p150
    %p152 = scmp.ne.s32.totalorder %s143, %s144
    %p153 = scmp.eq.s32.totalorder %s28, 0
    %p154 = por %p152, %p153
    %p155 = scmp.ne.s32.totalorder %s143, %s144
    %p156 = scmp.eq.s32.totalorder %s29, 1
    %p157 = por %p155, %p156
    %p159 = scmp.ne.s32.totalorder %s144, %s158
    %p160 = scmp.eq.s32.totalorder %s29, 0
    %p161 = por %p159, %p160
    %s163 = sadd.s32 %s162, 1
    %p166 = scmp.eq.s32.totalorder %s23, 1
    %p167 = scmp.ne.s32.totalorder %s162, %s164
    %p168 = scmp.eq.s32.totalorder %s23, 0
    %p169 = por %p167, %p168
    %p170 = scmp.ne.s32.totalorder %s162, %s164
    %p171 = scmp.eq.s32.totalorder %s28, 1
    %p172 = por %p170, %p171
    %p173 = scmp.ne.s32.totalorder %s164, %s165
    %p174 = scmp.eq.s32.totalorder %s28, 0
    %p175 = por %p173, %p174
    %p176 = scmp.ne.s32.totalorder %s164, %s165
    %p177 = scmp.eq.s32.totalorder %s29, 1
    %p178 = por %p176, %p177
    %p180 = scmp.ne.s32.totalorder %s165, %s179
    %p181 = scmp.eq.s32.totalorder %s29, 0
    %p182 = por %p180, %p181
    %s183 = ssub.s32 %s23, %s30
    %p184 = scmp.eq.s32.totalorder %s183, 0
    %s186 = sadd.s32 %s185, 1
    %s187 = scalar_select %p184, %s185, %s186
    %p190 = pneg %p184
    %p191 = scmp.eq.s32.totalorder %s23, 1
    %p192 = por %p190, %p191
    %p193 = scmp.ne.s32.totalorder %s185, %s188
    %p194 = scmp.eq.s32.totalorder %s23, 0
    %p195 = por %p193, %p194
    %p196 = scmp.ne.s32.totalorder %s185, %s188
    %p197 = scmp.eq.s32.totalorder %s28, 1
    %p198 = por %p196, %p197
    %p199 = scmp.ne.s32.totalorder %s188, %s189
    %p200 = scmp.eq.s32.totalorder %s28, 0
    %p201 = por %p199, %p200
    %p202 = scmp.ne.s32.totalorder %s188, %s189
    %p203 = scmp.eq.s32.totalorder %s29, 1
    %p204 = por %p202, %p203
    %p206 = scmp.ne.s32.totalorder %s189, %s205
    %p207 = scmp.eq.s32.totalorder %s29, 0
    %p208 = por %p206, %p207
    %s209 = ssub.s32 %s23, %s30
    %p210 = scmp.eq.s32.totalorder %s209, 0
    %s212 = sadd.s32 %s211, 1
    %s213 = scalar_select %p210, %s211, %s212
    %p216 = pneg %p210
    %p217 = scmp.eq.s32.totalorder %s23, 1
    %p218 = por %p216, %p217
    %p219 = scmp.ne.s32.totalorder %s211, %s214
    %p220 = scmp.eq.s32.totalorder %s23, 0
    %p221 = por %p219, %p220
    %p222 = scmp.ne.s32.totalorder %s211, %s214
    %p223 = scmp.eq.s32.totalorder %s28, 1
    %p224 = por %p222, %p223
    %p225 = scmp.ne.s32.totalorder %s214, %s215
    %p226 = scmp.eq.s32.totalorder %s28, 0
    %p227 = por %p225, %p226
    %p228 = scmp.ne.s32.totalorder %s214, %s215
    %p229 = scmp.eq.s32.totalorder %s29, 1
    %p230 = por %p228, %p229
    %p232 = scmp.ne.s32.totalorder %s215, %s231
    %p233 = scmp.eq.s32.totalorder %s29, 0
    %p234 = por %p232, %p233
    %p235 = scmp.le.s32.totalorder 1, %s23
    %p236 = scmp.lt.s32.totalorder %s23, 3
    %p237 = pnand %p235, %p236
    %p238 = pneg %p237
    // Predicated region
    $region9: #{multi_wavelet_transform.15} parent=5 // pred_check
      _
    $region10: #{multi_wavelet_transform.15} parent=5 // pred_check_branch
      %240 = sbr.rel (%p237) target = $region12
    $region11: #{multi_wavelet_transform.15} parent=5 // pred_region
      %s241 = ssub.s32 %s23, 1
      // Predicated region
      $region13: #{multi_wavelet_transform.15} parent=11 // pred_check
        %p242 = pneg %p70
      $region14: #{multi_wavelet_transform.15} parent=11 // pred_check_branch
        %244 = sbr.rel (%p242) target = $region16
      $region15: #{multi_wavelet_transform.15} parent=11 // pred_region
        _
      $region16: #{multi_wavelet_transform.15} parent=11 // pred_fallthru
        _
      // Predicated region
      $region17: #{multi_wavelet_transform.15} parent=11 // pred_check
        %p245 = pneg %p91
      $region18: #{multi_wavelet_transform.15} parent=11 // pred_check_branch
        %247 = sbr.rel (%p245) target = $region20
      $region19: #{multi_wavelet_transform.15} parent=11 // pred_region
        _
      $region20: #{multi_wavelet_transform.15} parent=11 // pred_fallthru
        _
      // Predicated region
      $region21: #{multi_wavelet_transform.15} parent=11 // pred_check
        %p248 = pneg %p112
      $region22: #{multi_wavelet_transform.15} parent=11 // pred_check_branch
        %250 = sbr.rel (%p248) target = $region24
      $region23: #{multi_wavelet_transform.15} parent=11 // pred_region
        _
      $region24: #{multi_wavelet_transform.15} parent=11 // pred_fallthru
        _
      // Predicated region
      $region25: #{multi_wavelet_transform.15} parent=11 // pred_check
        %p251 = pneg %p133
      $region26: #{multi_wavelet_transform.15} parent=11 // pred_check_branch
        %253 = sbr.rel (%p251) target = $region28
      $region27: #{multi_wavelet_transform.15} parent=11 // pred_region
        _
      $region28: #{multi_wavelet_transform.15} parent=11 // pred_fallthru
        _
      // Predicated region
      $region29: #{multi_wavelet_transform.15} parent=11 // pred_check
        %p254 = pneg %p154
      $region30: #{multi_wavelet_transform.15} parent=11 // pred_check_branch
        %256 = sbr.rel (%p254) target = $region32
      $region31: #{multi_wavelet_transform.15} parent=11 // pred_region
        _
      $region32: #{multi_wavelet_transform.15} parent=11 // pred_fallthru
        _
      // Predicated region
      $region33: #{multi_wavelet_transform.15} parent=11 // pred_check
        %p257 = pneg %p175
      $region34: #{multi_wavelet_transform.15} parent=11 // pred_check_branch
        %259 = sbr.rel (%p257) target = $region36
      $region35: #{multi_wavelet_transform.15} parent=11 // pred_region
        _
      $region36: #{multi_wavelet_transform.15} parent=11 // pred_fallthru
        _
    $region12: #{multi_wavelet_transform.15} parent=5 // pred_fallthru
      _
    %p260 = scmp.lt.s32.totalorder %s23, 2
    // Predicated region
    $region37: #{multi_wavelet_transform.15} parent=5 // pred_check
      %p261 = pneg %p260
    $region38: #{multi_wavelet_transform.15} parent=5 // pred_check_branch
      %263 = sbr.rel (%p261) target = $region40
    $region39: #{multi_wavelet_transform.15} parent=5 // pred_region
      // Predicated region
      $region41: #{multi_wavelet_transform.15} parent=39 // pred_check
        %p264 = pneg %p43
      $region42: #{multi_wavelet_transform.15} parent=39 // pred_check_branch
        %266 = sbr.rel (%p264) target = $region44
      $region43: #{multi_wavelet_transform.15} parent=39 // pred_region
        %p267 = scmp.lt.s32.totalorder %s23, 1
        %s268 = scalar_select %p267, %s23, 1
        %s269 = scalar_lea.vmem %s0, %s268
      $region44: #{multi_wavelet_transform.15} parent=39 // pred_fallthru
        _
    $region40: #{multi_wavelet_transform.15} parent=5 // pred_fallthru
      _
    %p270 = scmp.le.s32.totalorder 1, %s23
    %p271 = scmp.lt.s32.totalorder %s23, 3
    %p272 = pnand %p270, %p271
    %p273 = pneg %p272
    // Predicated region
    $region45: #{multi_wavelet_transform.15} parent=5 // pred_check
      _
    $region46: #{multi_wavelet_transform.15} parent=5 // pred_check_branch
      %275 = sbr.rel (%p272) target = $region48
    $region47: #{multi_wavelet_transform.15} parent=5 // pred_region
      %s276 = ssub.s32 %s23, 1
      %p277 = scmp.lt.s32.totalorder %s28, 1
      %s278 = scalar_select %p277, %s28, 1
      %s279 = scalar_lea.vmem %s0, %s278
      %p280 = pneg %p49
      %p281 = pneg %p46
      %p282 = pneg %p70
      %p283 = pneg %p67
      %p284 = pneg %p91
      %p285 = pneg %p88
      %p286 = pneg %p112
      %p287 = pneg %p109
      %p288 = pneg %p133
      %p289 = pneg %p130
      %p290 = pneg %p154
      %p291 = pneg %p151
      %p292 = pneg %p175
      %p293 = pneg %p172
      %p294 = pneg %p201
      %p295 = pneg %p198
      %p296 = scmp.lt.s32.totalorder %s28, 1
      %s297 = scalar_select %p296, %s28, 1
      %s298 = scalar_lea.vmem %s7, %s297
      %p299 = pneg %p227
      %p300 = pneg %p224
      %p301 = scmp.lt.s32.totalorder %s28, 1
      %s302 = scalar_select %p301, %s28, 1
      %s303 = scalar_lea.vmem %s8, %s302
      %p304 = scmp.lt.s32.totalorder %s28, 1
      %s305 = scalar_select %p304, %s28, 1
      %s306 = scalar_lea.vmem %s0, %s305
      %p307 = scmp.lt.s32.totalorder %s28, 1
      %s308 = scalar_select %p307, %s28, 1
      %s309 = scalar_lea.vmem %s7, %s308
      %p310 = scmp.lt.s32.totalorder %s28, 1
      %s311 = scalar_select %p310, %s28, 1
      %s312 = scalar_lea.vmem %s8, %s311
      %v313 = vld [vmem:[%s306] sm:$0x1]
      %v314 = vld [vmem:[%s1] sm:$0xff]
      %v315 = vld [vmem:[%s1 + $0x8] sm:$0xff]
      %v316 = vld [vmem:[%s1 + $0x10] sm:$0xff]
      %v317 = vld [vmem:[%s1 + $0x18] sm:$0xff]
      %vm318 = vcmask 261120
      %v320 = vsel %vm318, %v313, 0
      %322 = vmatpush.msra.mxu0 0.0
      %323 = vmatpush.msra.mxu0 0.0
      %324 = vmatpush.msra.mxu0 0.0
      %325 = vmatpush.msra.mxu0 0.0
      %326 = vmatpush.msra.mxu0 0.0
      %327 = vmatpush.msra.mxu0 0.0
      %328 = vmatpush.msra.mxu0 0.0
      %329 = vmatpush.msra.mxu0 0.0
      %330 = vmatpush.msra.mxu0 0.0
      %331 = vmatpush.msra.mxu0 0.0
      %332 = vmatpush.msra.mxu0 0.0
      %333 = vmatpush.msra.mxu0 0.0
      %334 = vmatpush.msra.mxu0 %v317
      %335 = vmatpush.msra.mxu0 %v316
      %336 = vmatpush.msra.mxu0 %v315
      %337 = vmatpush.msra.mxu0 %v314
      %338 = vmatmul.f32.gmra.mxu0 %v320
      %v339 = vpop.f32.mrf.mxu0
      %v340 = vadd.f32 0.0, %v339
      %341 = vdwg.mxu0
      %vm342 = vcmask 253952
      %343 = vst.msk [vmem:[%s312] sm:$0x1] %vm342, %v340
      %v344 = vld [vmem:[#allocation2] sm:$0x1]
      %vm345 = vcmask 7168
      %v347 = vsel %vm345, %v344, 0
      %vm349 = vcmask 1040384
      %v351 = vsel %vm349, %v340, 0
      %353 = vmatpush.msra.mxu0 0.0
      %354 = vmatpush.msra.mxu0 0.0
      %355 = vmatpush.msra.mxu0 0.0
      %356 = vmatpush.msra.mxu0 0.0
      %357 = vmatpush.msra.mxu0 0.0
      %358 = vmatpush.msra.mxu0 0.0
      %359 = vmatpush.msra.mxu0 0.0
      %360 = vmatpush.msra.mxu0 0.0
      %361 = vmatpush.msra.mxu0 0.0
      %362 = vmatpush.msra.mxu0 0.0
      %363 = vmatpush.msra.mxu0 0.0
      %364 = vmatpush.msra.mxu0 0.0
      %365 = vmatpush.msra.mxu0 0.0
      %366 = vmatpush.msra.mxu0 0.0
      %367 = vmatpush.msra.mxu0 0.0
      %368 = vmatpush.msra.mxu0 %v351
      %369 = vmatmul.f32.gmra.mxu0 %v347
      %v370 = vpop.f32.mrf.mxu0
      %v371 = vadd.f32 0.0, %v370
      %372 = vdwg.mxu0
      %v373 = vld [vmem:[#allocation3] sm:$0x1]
      %v375 = vsel %vm345, %v373, 0
      %377 = vmatpush.msra.mxu0 0.0
      %378 = vmatpush.msra.mxu0 0.0
      %379 = vmatpush.msra.mxu0 0.0
      %380 = vmatpush.msra.mxu0 0.0
      %381 = vmatpush.msra.mxu0 0.0
      %382 = vmatpush.msra.mxu0 0.0
      %383 = vmatpush.msra.mxu0 0.0
      %384 = vmatpush.msra.mxu0 0.0
      %385 = vmatpush.msra.mxu0 0.0
      %386 = vmatpush.msra.mxu0 0.0
      %387 = vmatpush.msra.mxu0 0.0
      %388 = vmatpush.msra.mxu0 0.0
      %389 = vmatpush.msra.mxu0 0.0
      %390 = vmatpush.msra.mxu0 0.0
      %391 = vmatpush.msra.mxu0 0.0
      %392 = vmatpush.msra.mxu0 %v351
      %393 = vmatmul.f32.gmra.mxu0 %v375
      %v394 = vpop.f32.mrf.mxu0
      %v395 = vadd.f32 0.0, %v394
      %396 = vdwg.mxu0
      %398 = vrot.lane.b32.xlu0 %v395, 32
      %v399 = vpop.permute.xlu0 %398
      %v401 = vsel %vm318, %v371, %v399
      %v402 = vld [vmem:[%s4] sm:$0xff]
      %v403 = vld [vmem:[%s4 + $0x8] sm:$0xff]
      %v404 = vld [vmem:[%s4 + $0x10] sm:$0xff]
      %v405 = vld [vmem:[%s4 + $0x18] sm:$0xff]
      %v406 = vld [vmem:[%s4 + $0x20] sm:$0xff]
      %v407 = vld [vmem:[%s4 + $0x28] sm:$0xff]
      %v408 = vld [vmem:[%s4 + $0x30] sm:$0xff]
      %v409 = vld [vmem:[%s4 + $0x38] sm:$0xff]
      %vm410 = vcmask 523264
      %v412 = vsel %vm410, %v401, 0
      %414 = vmatpush.msra.mxu0 0.0
      %415 = vmatpush.msra.mxu0 0.0
      %416 = vmatpush.msra.mxu0 0.0
      %417 = vmatpush.msra.mxu0 0.0
      %418 = vmatpush.msra.mxu0 0.0
      %419 = vmatpush.msra.mxu0 0.0
      %420 = vmatpush.msra.mxu0 0.0
      %421 = vmatpush.msra.mxu0 0.0
      %422 = vmatpush.msra.mxu0 %v409
      %423 = vmatpush.msra.mxu0 %v408
      %424 = vmatpush.msra.mxu0 %v407
      %425 = vmatpush.msra.mxu0 %v406
      %426 = vmatpush.msra.mxu0 %v405
      %427 = vmatpush.msra.mxu0 %v404
      %428 = vmatpush.msra.mxu0 %v403
      %429 = vmatpush.msra.mxu0 %v402
      %430 = vmatmul.f32.gmra.mxu0 %v412
      %v431 = vpop.f32.mrf.mxu0
      %v432 = vadd.f32 0.0, %v431
      %433 = vdwg.mxu0
      %v434 = vld [vmem:[#allocation4] sm:$0x1]
      %v435 = vld [vmem:[#allocation5] sm:$0x1]
      %437 = vrot.lane.b32.xlu0 %v432, 96
      %v438 = vpop.permute.xlu0 %437
      %v440 = vsel %vm345, %v435, 0
      %v442 = vsel %vm349, %v438, 0
      %444 = vmatpush.msra.mxu0 0.0
      %445 = vmatpush.msra.mxu0 0.0
      %446 = vmatpush.msra.mxu0 0.0
      %447 = vmatpush.msra.mxu0 0.0
      %448 = vmatpush.msra.mxu0 0.0
      %449 = vmatpush.msra.mxu0 0.0
      %450 = vmatpush.msra.mxu0 0.0
      %451 = vmatpush.msra.mxu0 0.0
      %452 = vmatpush.msra.mxu0 0.0
      %453 = vmatpush.msra.mxu0 0.0
      %454 = vmatpush.msra.mxu0 0.0
      %455 = vmatpush.msra.mxu0 0.0
      %456 = vmatpush.msra.mxu0 0.0
      %457 = vmatpush.msra.mxu0 0.0
      %458 = vmatpush.msra.mxu0 0.0
      %459 = vmatpush.msra.mxu0 %v442
      %460 = vmatmul.f32.gmra.mxu0 %v440
      %v461 = vpop.f32.mrf.mxu0
      %v462 = vadd.f32 0.0, %v461
      %463 = vdwg.mxu0
      %v465 = vsel %vm345, %v434, 0
      %v467 = vsel %vm349, %v432, 0
      %469 = vmatpush.msra.mxu0 0.0
      %470 = vmatpush.msra.mxu0 0.0
      %471 = vmatpush.msra.mxu0 0.0
      %472 = vmatpush.msra.mxu0 0.0
      %473 = vmatpush.msra.mxu0 0.0
      %474 = vmatpush.msra.mxu0 0.0
      %475 = vmatpush.msra.mxu0 0.0
      %476 = vmatpush.msra.mxu0 0.0
      %477 = vmatpush.msra.mxu0 0.0
      %478 = vmatpush.msra.mxu0 0.0
      %479 = vmatpush.msra.mxu0 0.0
      %480 = vmatpush.msra.mxu0 0.0
      %481 = vmatpush.msra.mxu0 0.0
      %482 = vmatpush.msra.mxu0 0.0
      %483 = vmatpush.msra.mxu0 0.0
      %484 = vmatpush.msra.mxu0 %v467
      %485 = vmatmul.f32.gmra.mxu0 %v465
      %v486 = vpop.f32.mrf.mxu0
      %v487 = vadd.f32 %v462, %v486
      %488 = vdwg.mxu0
      %489 = vst.msk [vmem:[%s309] sm:$0x1] %vm342, %v487
      %p490 = scmp.lt.s32.totalorder %s28, 1
      %s491 = scalar_select %p490, %s28, 1
      %s492 = scalar_lea.vmem %s7, %s491
      %p493 = scmp.lt.s32.totalorder %s28, 1
      %s494 = scalar_select %p493, %s28, 1
      %s495 = scalar_lea.vmem %s8, %s494
      // Predicated region
      $region49: #{multi_wavelet_transform.15} parent=47 // pred_check
        %p496 = pneg %p198
      $region50: #{multi_wavelet_transform.15} parent=47 // pred_check_branch
        %498 = sbr.rel (%p496) target = $region52
      $region51: #{multi_wavelet_transform.15} parent=47 // pred_region
        _
      $region52: #{multi_wavelet_transform.15} parent=47 // pred_fallthru
        _
      // Predicated region
      $region53: #{multi_wavelet_transform.15} parent=47 // pred_check
        %p499 = pneg %p224
      $region54: #{multi_wavelet_transform.15} parent=47 // pred_check_branch
        %501 = sbr.rel (%p499) target = $region56
      $region55: #{multi_wavelet_transform.15} parent=47 // pred_region
        _
      $region56: #{multi_wavelet_transform.15} parent=47 // pred_fallthru
        _
    $region48: #{multi_wavelet_transform.15} parent=5 // pred_fallthru
      _
    %p502 = scmp.le.s32.totalorder 2, %s23
    // Predicated region
    $region57: #{multi_wavelet_transform.15} parent=5 // pred_check
      %p503 = pneg %p502
    $region58: #{multi_wavelet_transform.15} parent=5 // pred_check_branch
      %505 = sbr.rel (%p503) target = $region60
    $region59: #{multi_wavelet_transform.15} parent=5 // pred_region
      %s506 = ssub.s32 %s23, 2
      // Predicated region
      $region61: #{multi_wavelet_transform.15} parent=59 // pred_check
        %p507 = pneg %p204
      $region62: #{multi_wavelet_transform.15} parent=59 // pred_check_branch
        %509 = sbr.rel (%p507) target = $region64
      $region63: #{multi_wavelet_transform.15} parent=59 // pred_region
        %p510 = scmp.lt.s32.totalorder %s29, 1
        %s511 = scalar_select %p510, %s29, 1
        %s512 = scalar_lea.vmem %s7, %s511
      $region64: #{multi_wavelet_transform.15} parent=59 // pred_fallthru
        _
      // Predicated region
      $region65: #{multi_wavelet_transform.15} parent=59 // pred_check
        %p513 = pneg %p230
      $region66: #{multi_wavelet_transform.15} parent=59 // pred_check_branch
        %515 = sbr.rel (%p513) target = $region68
      $region67: #{multi_wavelet_transform.15} parent=59 // pred_region
        %p516 = scmp.lt.s32.totalorder %s29, 1
        %s517 = scalar_select %p516, %s29, 1
        %s518 = scalar_lea.vmem %s8, %s517
      $region68: #{multi_wavelet_transform.15} parent=59 // pred_fallthru
        _
    $region60: #{multi_wavelet_transform.15} parent=5 // pred_fallthru
      _
  $region6: #{multi_wavelet_transform.15} parent=0 // loop_footer
    %s27 = sadd.s32 1, %s23
  $region7: #{multi_wavelet_transform.15} parent=0 // loop_footer_branch
    %22 = sbr.rel target = $region3
  $region8: #{multi_wavelet_transform.15} parent=0 // loop_exit
    _

// kernel: multi_wavelet_transform.17
$region0: #{multi_wavelet_transform.17}
  #allocation0 [shape = 'u32[]', space=smem, size = 0x4, offset = 0x4, fixed_abs, tag = 'smem constant byte address 0x4 - core index']
  #allocation1 [shape = 'u32[72,128]{1,0:T(1,128)}', space=vmem, size = 0x9000, scoped, tag = 'internal scratch']
  %s0 = inlined_call_operand.vmem [shape: f32[2,1,16], index: 0, kind: input, shape index: {}]
  %s1 = inlined_call_operand.vmem [shape: f32[2,1,16], index: 1, kind: input, shape index: {}]
  %s2 = inlined_call_operand.vmem [shape: f32[2,1,16], index: 2, kind: input, shape index: {}]
  %s3 = inlined_call_operand.vmem [shape: f32[32,32], index: 3, kind: input, shape index: {}]
  %s4 = inlined_call_operand.vmem [shape: f32[2,1,32], index: 4, kind: output, shape index: {}]
  %s5 = sld [smem:[#allocation0]]
  $region49: #{multi_wavelet_transform.17} parent=0
    _
  %s7 = ssub.s32 1, %s5
  %s8 = scalar_select 0, %s7, %s5
  loop: start=0, step=1, limit=4
  $region2: #{multi_wavelet_transform.17} parent=0 // loop_pre_header
    _
  $region3: #{multi_wavelet_transform.17} parent=0 // loop_header
    %s10 = sphi 0, %s14
    %p11 = scmp.ge.s32.totalorder %s10, 4
    %s20 = sphi 0, %s22
    %s23 = sphi 0, %s20
    %s24 = sphi 0, %s23
    %s40 = sphi 0, %s24
    %s46 = sphi 0, %s48
    %s49 = sphi 0, %s46
    %s50 = sphi 0, %s49
    %s66 = sphi 0, %s50
    %s72 = sphi 0, %s74
    %s75 = sphi 0, %s72
    %s76 = sphi 0, %s75
    %s92 = sphi 0, %s76
    %s96 = sphi 0, %s96
    %s98 = sphi 0, %s96
    %s99 = sphi 0, %s98
    %s113 = sphi 0, %s99
    %s119 = sphi 0, %s121
    %s122 = sphi 0, %s119
    %s123 = sphi 0, %s122
    %s139 = sphi 0, %s123
  $region4: #{multi_wavelet_transform.17} parent=0 // loop_header_branch
    %13 = sbr.rel (%p11) target = $region8
  $region5: #{multi_wavelet_transform.17} parent=0 // loop_body
    %s15 = ssub.s32 %s10, 1
    %s16 = ssub.s32 %s10, 2
    %s17 = sadd.s32 %s10, 1
    %s18 = ssub.s32 %s10, %s17
    %p19 = scmp.eq.s32.totalorder %s18, 0
    %s21 = sadd.s32 %s20, 1
    %s22 = scalar_select %p19, %s20, %s21
    %p25 = pneg %p19
    %p26 = scmp.eq.s32.totalorder %s10, 1
    %p27 = por %p25, %p26
    %p28 = scmp.ne.s32.totalorder %s20, %s23
    %p29 = scmp.eq.s32.totalorder %s10, 0
    %p30 = por %p28, %p29
    %p31 = scmp.ne.s32.totalorder %s20, %s23
    %p32 = scmp.eq.s32.totalorder %s15, 1
    %p33 = por %p31, %p32
    %p34 = scmp.ne.s32.totalorder %s23, %s24
    %p35 = scmp.eq.s32.totalorder %s15, 0
    %p36 = por %p34, %p35
    %p37 = scmp.ne.s32.totalorder %s23, %s24
    %p38 = scmp.eq.s32.totalorder %s16, 1
    %p39 = por %p37, %p38
    %p41 = scmp.ne.s32.totalorder %s24, %s40
    %p42 = scmp.eq.s32.totalorder %s16, 0
    %p43 = por %p41, %p42
    %s44 = ssub.s32 %s10, %s17
    %p45 = scmp.eq.s32.totalorder %s44, 0
    %s47 = sadd.s32 %s46, 1
    %s48 = scalar_select %p45, %s46, %s47
    %p51 = pneg %p45
    %p52 = scmp.eq.s32.totalorder %s10, 1
    %p53 = por %p51, %p52
    %p54 = scmp.ne.s32.totalorder %s46, %s49
    %p55 = scmp.eq.s32.totalorder %s10, 0
    %p56 = por %p54, %p55
    %p57 = scmp.ne.s32.totalorder %s46, %s49
    %p58 = scmp.eq.s32.totalorder %s15, 1
    %p59 = por %p57, %p58
    %p60 = scmp.ne.s32.totalorder %s49, %s50
    %p61 = scmp.eq.s32.totalorder %s15, 0
    %p62 = por %p60, %p61
    %p63 = scmp.ne.s32.totalorder %s49, %s50
    %p64 = scmp.eq.s32.totalorder %s16, 1
    %p65 = por %p63, %p64
    %p67 = scmp.ne.s32.totalorder %s50, %s66
    %p68 = scmp.eq.s32.totalorder %s16, 0
    %p69 = por %p67, %p68
    %s70 = ssub.s32 %s10, %s17
    %p71 = scmp.eq.s32.totalorder %s70, 0
    %s73 = sadd.s32 %s72, 1
    %s74 = scalar_select %p71, %s72, %s73
    %p77 = pneg %p71
    %p78 = scmp.eq.s32.totalorder %s10, 1
    %p79 = por %p77, %p78
    %p80 = scmp.ne.s32.totalorder %s72, %s75
    %p81 = scmp.eq.s32.totalorder %s10, 0
    %p82 = por %p80, %p81
    %p83 = scmp.ne.s32.totalorder %s72, %s75
    %p84 = scmp.eq.s32.totalorder %s15, 1
    %p85 = por %p83, %p84
    %p86 = scmp.ne.s32.totalorder %s75, %s76
    %p87 = scmp.eq.s32.totalorder %s15, 0
    %p88 = por %p86, %p87
    %p89 = scmp.ne.s32.totalorder %s75, %s76
    %p90 = scmp.eq.s32.totalorder %s16, 1
    %p91 = por %p89, %p90
    %p93 = scmp.ne.s32.totalorder %s76, %s92
    %p94 = scmp.eq.s32.totalorder %s16, 0
    %p95 = por %p93, %p94
    %s97 = sadd.s32 %s96, 1
    %p100 = scmp.eq.s32.totalorder %s10, 1
    %p101 = scmp.ne.s32.totalorder %s96, %s98
    %p102 = scmp.eq.s32.totalorder %s10, 0
    %p103 = por %p101, %p102
    %p104 = scmp.ne.s32.totalorder %s96, %s98
    %p105 = scmp.eq.s32.totalorder %s15, 1
    %p106 = por %p104, %p105
    %p107 = scmp.ne.s32.totalorder %s98, %s99
    %p108 = scmp.eq.s32.totalorder %s15, 0
    %p109 = por %p107, %p108
    %p110 = scmp.ne.s32.totalorder %s98, %s99
    %p111 = scmp.eq.s32.totalorder %s16, 1
    %p112 = por %p110, %p111
    %p114 = scmp.ne.s32.totalorder %s99, %s113
    %p115 = scmp.eq.s32.totalorder %s16, 0
    %p116 = por %p114, %p115
    %s117 = ssub.s32 %s10, %s17
    %p118 = scmp.eq.s32.totalorder %s117, 0
    %s120 = sadd.s32 %s119, 1
    %s121 = scalar_select %p118, %s119, %s120
    %p124 = pneg %p118
    %p125 = scmp.eq.s32.totalorder %s10, 1
    %p126 = por %p124, %p125
    %p127 = scmp.ne.s32.totalorder %s119, %s122
    %p128 = scmp.eq.s32.totalorder %s10, 0
    %p129 = por %p127, %p128
    %p130 = scmp.ne.s32.totalorder %s119, %s122
    %p131 = scmp.eq.s32.totalorder %s15, 1
    %p132 = por %p130, %p131
    %p133 = scmp.ne.s32.totalorder %s122, %s123
    %p134 = scmp.eq.s32.totalorder %s15, 0
    %p135 = por %p133, %p134
    %p136 = scmp.ne.s32.totalorder %s122, %s123
    %p137 = scmp.eq.s32.totalorder %s16, 1
    %p138 = por %p136, %p137
    %p140 = scmp.ne.s32.totalorder %s123, %s139
    %p141 = scmp.eq.s32.totalorder %s16, 0
    %p142 = por %p140, %p141
    %p143 = scmp.le.s32.totalorder 1, %s10
    %p144 = scmp.lt.s32.totalorder %s10, 3
    %p145 = pnand %p143, %p144
    %p146 = pneg %p145
    // Predicated region
    $region9: #{multi_wavelet_transform.17} parent=5 // pred_check
      _
    $region10: #{multi_wavelet_transform.17} parent=5 // pred_check_branch
      %148 = sbr.rel (%p145) target = $region12
    $region11: #{multi_wavelet_transform.17} parent=5 // pred_region
      %s149 = ssub.s32 %s10, 1
      // Predicated region
      $region13: #{multi_wavelet_transform.17} parent=11 // pred_check
        %p150 = pneg %p109
      $region14: #{multi_wavelet_transform.17} parent=11 // pred_check_branch
        %152 = sbr.rel (%p150) target = $region16
      $region15: #{multi_wavelet_transform.17} parent=11 // pred_region
        _
      $region16: #{multi_wavelet_transform.17} parent=11 // pred_fallthru
        _
    $region12: #{multi_wavelet_transform.17} parent=5 // pred_fallthru
      _
    %p153 = scmp.lt.s32.totalorder %s10, 2
    // Predicated region
    $region17: #{multi_wavelet_transform.17} parent=5 // pred_check
      %p154 = pneg %p153
    $region18: #{multi_wavelet_transform.17} parent=5 // pred_check_branch
      %156 = sbr.rel (%p154) target = $region20
    $region19: #{multi_wavelet_transform.17} parent=5 // pred_region
      // Predicated region
      $region21: #{multi_wavelet_transform.17} parent=19 // pred_check
        %p157 = pneg %p30
      $region22: #{multi_wavelet_transform.17} parent=19 // pred_check_branch
        %159 = sbr.rel (%p157) target = $region24
      $region23: #{multi_wavelet_transform.17} parent=19 // pred_region
        %p160 = scmp.lt.s32.totalorder %s10, 1
        %s161 = scalar_select %p160, %s10, 1
        %s162 = scalar_lea.vmem %s0, %s161
      $region24: #{multi_wavelet_transform.17} parent=19 // pred_fallthru
        _
      // Predicated region
      $region25: #{multi_wavelet_transform.17} parent=19 // pred_check
        %p163 = pneg %p56
      $region26: #{multi_wavelet_transform.17} parent=19 // pred_check_branch
        %165 = sbr.rel (%p163) target = $region28
      $region27: #{multi_wavelet_transform.17} parent=19 // pred_region
        %p166 = scmp.lt.s32.totalorder %s10, 1
        %s167 = scalar_select %p166, %s10, 1
        %s168 = scalar_lea.vmem %s1, %s167
      $region28: #{multi_wavelet_transform.17} parent=19 // pred_fallthru
        _
      // Predicated region
      $region29: #{multi_wavelet_transform.17} parent=19 // pred_check
        %p169 = pneg %p82
      $region30: #{multi_wavelet_transform.17} parent=19 // pred_check_branch
        %171 = sbr.rel (%p169) target = $region32
      $region31: #{multi_wavelet_transform.17} parent=19 // pred_region
        %p172 = scmp.lt.s32.totalorder %s10, 1
        %s173 = scalar_select %p172, %s10, 1
        %s174 = scalar_lea.vmem %s2, %s173
      $region32: #{multi_wavelet_transform.17} parent=19 // pred_fallthru
        _
    $region20: #{multi_wavelet_transform.17} parent=5 // pred_fallthru
      _
    %p175 = scmp.le.s32.totalorder 1, %s10
    %p176 = scmp.lt.s32.totalorder %s10, 3
    %p177 = pnand %p175, %p176
    %p178 = pneg %p177
    // Predicated region
    $region33: #{multi_wavelet_transform.17} parent=5 // pred_check
      _
    $region34: #{multi_wavelet_transform.17} parent=5 // pred_check_branch
      %180 = sbr.rel (%p177) target = $region36
    $region35: #{multi_wavelet_transform.17} parent=5 // pred_region
      %s181 = ssub.s32 %s10, 1
      %p182 = scmp.lt.s32.totalorder %s15, 1
      %s183 = scalar_select %p182, %s15, 1
      %s184 = scalar_lea.vmem %s0, %s183
      %p185 = pneg %p36
      %p186 = pneg %p33
      %p187 = scmp.lt.s32.totalorder %s15, 1
      %s188 = scalar_select %p187, %s15, 1
      %s189 = scalar_lea.vmem %s1, %s188
      %p190 = pneg %p62
      %p191 = pneg %p59
      %p192 = scmp.lt.s32.totalorder %s15, 1
      %s193 = scalar_select %p192, %s15, 1
      %s194 = scalar_lea.vmem %s2, %s193
      %p195 = pneg %p88
      %p196 = pneg %p85
      %p197 = pneg %p109
      %p198 = pneg %p106
      %p199 = pneg %p135
      %p200 = pneg %p132
      %p201 = scmp.lt.s32.totalorder %s15, 1
      %s202 = scalar_select %p201, %s15, 1
      %s203 = scalar_lea.vmem %s4, %s202
      %p204 = scmp.lt.s32.totalorder %s15, 1
      %s205 = scalar_select %p204, %s15, 1
      %s206 = scalar_lea.vmem %s0, %s205
      %p207 = scmp.lt.s32.totalorder %s15, 1
      %s208 = scalar_select %p207, %s15, 1
      %s209 = scalar_lea.vmem %s1, %s208
      %p210 = scmp.lt.s32.totalorder %s15, 1
      %s211 = scalar_select %p210, %s15, 1
      %s212 = scalar_lea.vmem %s2, %s211
      %p213 = scmp.lt.s32.totalorder %s15, 1
      %s214 = scalar_select %p213, %s15, 1
      %s215 = scalar_lea.vmem %s4, %s214
      %v216 = vld [vmem:[%s206] sm:$0x1]
      %v217 = vld [vmem:[%s209] sm:$0x1]
      %v218 = vadd.f32 %v216, %v217
      %v219 = vld [vmem:[%s212] sm:$0x1]
      %v221 = vperm.slane %v219, 0
      %222 = vrot.lane.b32.xlu0 %v221, 16
      %v223 = vpop.permute.xlu0 %222
      %vm225 = vcmask 130048
      %v226 = vsel %vm225, %v218, %v223
      %v227 = vld [vmem:[%s3] sm:$0xff]
      %v228 = vld [vmem:[%s3 + $0x8] sm:$0xff]
      %v229 = vld [vmem:[%s3 + $0x10] sm:$0xff]
      %v230 = vld [vmem:[%s3 + $0x18] sm:$0xff]
      %vm231 = vcmask 261120
      %v233 = vsel %vm231, %v226, 0
      %235 = vmatpush.msra.mxu0 0.0
      %236 = vmatpush.msra.mxu0 0.0
      %237 = vmatpush.msra.mxu0 0.0
      %238 = vmatpush.msra.mxu0 0.0
      %239 = vmatpush.msra.mxu0 0.0
      %240 = vmatpush.msra.mxu0 0.0
      %241 = vmatpush.msra.mxu0 0.0
      %242 = vmatpush.msra.mxu0 0.0
      %243 = vmatpush.msra.mxu0 0.0
      %244 = vmatpush.msra.mxu0 0.0
      %245 = vmatpush.msra.mxu0 0.0
      %246 = vmatpush.msra.mxu0 0.0
      %247 = vmatpush.msra.mxu0 %v230
      %248 = vmatpush.msra.mxu0 %v229
      %249 = vmatpush.msra.mxu0 %v228
      %250 = vmatpush.msra.mxu0 %v227
      %251 = vmatmul.f32.gmra.mxu0 %v233
      %v252 = vpop.f32.mrf.mxu0
      %v253 = vadd.f32 0.0, %v252
      %254 = vdwg.mxu0
      %vm255 = vcmask 253952
      %256 = vst.msk [vmem:[%s215] sm:$0x1] %vm255, %v253
      %p257 = scmp.lt.s32.totalorder %s15, 1
      %s258 = scalar_select %p257, %s15, 1
      %s259 = scalar_lea.vmem %s4, %s258
      // Predicated region
      $region37: #{multi_wavelet_transform.17} parent=35 // pred_check
        %p260 = pneg %p132
      $region38: #{multi_wavelet_transform.17} parent=35 // pred_check_branch
        %262 = sbr.rel (%p260) target = $region40
      $region39: #{multi_wavelet_transform.17} parent=35 // pred_region
        _
      $region40: #{multi_wavelet_transform.17} parent=35 // pred_fallthru
        _
    $region36: #{multi_wavelet_transform.17} parent=5 // pred_fallthru
      _
    %p263 = scmp.le.s32.totalorder 2, %s10
    // Predicated region
    $region41: #{multi_wavelet_transform.17} parent=5 // pred_check
      %p264 = pneg %p263
    $region42: #{multi_wavelet_transform.17} parent=5 // pred_check_branch
      %266 = sbr.rel (%p264) target = $region44
    $region43: #{multi_wavelet_transform.17} parent=5 // pred_region
      %s267 = ssub.s32 %s10, 2
      // Predicated region
      $region45: #{multi_wavelet_transform.17} parent=43 // pred_check
        %p268 = pneg %p138
      $region46: #{multi_wavelet_transform.17} parent=43 // pred_check_branch
        %270 = sbr.rel (%p268) target = $region48
      $region47: #{multi_wavelet_transform.17} parent=43 // pred_region
        %p271 = scmp.lt.s32.totalorder %s16, 1
        %s272 = scalar_select %p271, %s16, 1
        %s273 = scalar_lea.vmem %s4, %s272
      $region48: #{multi_wavelet_transform.17} parent=43 // pred_fallthru
        _
    $region44: #{multi_wavelet_transform.17} parent=5 // pred_fallthru
      _
  $region6: #{multi_wavelet_transform.17} parent=0 // loop_footer
    %s14 = sadd.s32 1, %s10
  $region7: #{multi_wavelet_transform.17} parent=0 // loop_footer_branch
    %9 = sbr.rel target = $region3
  $region8: #{multi_wavelet_transform.17} parent=0 // loop_exit
    _

// kernel: multi_wavelet_transform.16
$region0: #{multi_wavelet_transform.16}
  #allocation0 [shape = 'u32[]', space=smem, size = 0x4, offset = 0x4, fixed_abs, tag = 'smem constant byte address 0x4 - core index']
  #allocation1 [shape = 'u32[72,128]{1,0:T(1,128)}', space=vmem, size = 0x9000, scoped, tag = 'internal scratch']
  %s0 = inlined_call_operand.vmem [shape: f32[2,16], index: 0, kind: input, shape index: {}]
  %s1 = inlined_call_operand.vmem [shape: f32[16,16], index: 1, kind: input, shape index: {}]
  %s2 = inlined_call_operand.vmem [shape: f32[1,16], index: 2, kind: input, shape index: {}]
  %s3 = inlined_call_operand.vmem [shape: f32[2,16], index: 3, kind: output, shape index: {}]
  %s4 = sld [smem:[#allocation0]]
  $region22: #{multi_wavelet_transform.16} parent=0
    _
  %s6 = ssub.s32 1, %s4
  %s7 = scalar_select 0, %s6, %s4
  // Predicated region
  $region2: #{multi_wavelet_transform.16} parent=0 // pred_check
    _
  $region3: #{multi_wavelet_transform.16} parent=0 // pred_check_branch
    %9 = sbr.rel (0) target = $region5
  $region4: #{multi_wavelet_transform.16} parent=0 // pred_region
    _
  $region5: #{multi_wavelet_transform.16} parent=0 // pred_fallthru
    _
  // Predicated region
  $region6: #{multi_wavelet_transform.16} parent=0 // pred_check
    _
  $region7: #{multi_wavelet_transform.16} parent=0 // pred_check_branch
    %11 = sbr.rel (0) target = $region9
  $region8: #{multi_wavelet_transform.16} parent=0 // pred_region
    _
  $region9: #{multi_wavelet_transform.16} parent=0 // pred_fallthru
    _
  // Predicated region
  $region10: #{multi_wavelet_transform.16} parent=0 // pred_check
    _
  $region11: #{multi_wavelet_transform.16} parent=0 // pred_check_branch
    %13 = sbr.rel (0) target = $region13
  $region12: #{multi_wavelet_transform.16} parent=0 // pred_region
    _
  $region13: #{multi_wavelet_transform.16} parent=0 // pred_fallthru
    _
  %v14 = vld [vmem:[%s0] sm:$0x3]
  %v15 = vld [vmem:[%s1] sm:$0xff]
  %v16 = vld [vmem:[%s1 + $0x8] sm:$0xff]
  %v17 = vld [vmem:[%s2] sm:$0x1]
  %v19 = vperm.slane %v17, 0
  %vm21 = vcmask 130048
  %v23 = vsel %vm21, %v14, 0
  %25 = vmatpush.msra.mxu0 0.0
  %26 = vmatpush.msra.mxu0 0.0
  %27 = vmatpush.msra.mxu0 0.0
  %28 = vmatpush.msra.mxu0 0.0
  %29 = vmatpush.msra.mxu0 0.0
  %30 = vmatpush.msra.mxu0 0.0
  %31 = vmatpush.msra.mxu0 0.0
  %32 = vmatpush.msra.mxu0 0.0
  %33 = vmatpush.msra.mxu0 0.0
  %34 = vmatpush.msra.mxu0 0.0
  %35 = vmatpush.msra.mxu0 0.0
  %36 = vmatpush.msra.mxu0 0.0
  %37 = vmatpush.msra.mxu0 0.0
  %38 = vmatpush.msra.mxu0 0.0
  %39 = vmatpush.msra.mxu0 %v16
  %40 = vmatpush.msra.mxu0 %v15
  %41 = vmatmul.f32.gmra.mxu0 %v23
  %v42 = vpop.f32.mrf.mxu0
  %v43 = vadd.f32 %v19, %v42
  %44 = vdwg.mxu0
  %vm45 = vcmask 123904
  %46 = vst.msk [vmem:[%s3] sm:$0x3] %vm45, %v43
  // Predicated region
  $region14: #{multi_wavelet_transform.16} parent=0 // pred_check
    _
  $region15: #{multi_wavelet_transform.16} parent=0 // pred_check_branch
    %48 = sbr.rel (0) target = $region17
  $region16: #{multi_wavelet_transform.16} parent=0 // pred_region
    _
  $region17: #{multi_wavelet_transform.16} parent=0 // pred_fallthru
    _
  // Predicated region
  $region18: #{multi_wavelet_transform.16} parent=0 // pred_check
    _
  $region19: #{multi_wavelet_transform.16} parent=0 // pred_check_branch
    %50 = sbr.rel (0) target = $region21
  $region20: #{multi_wavelet_transform.16} parent=0 // pred_region
    _
  $region21: #{multi_wavelet_transform.16} parent=0 // pred_fallthru
    _

// kernel: multi_wavelet_transform.18
$region0: #{multi_wavelet_transform.18}
  #allocation0 [shape = 'u32[]', space=smem, size = 0x4, offset = 0x4, fixed_abs, tag = 'smem constant byte address 0x4 - core index']
  #allocation1 [shape = 'u32[72,128]{1,0:T(1,128)}', space=vmem, size = 0x9000, scoped, tag = 'internal scratch']
  %s0 = inlined_call_operand.vmem [shape: f32[2,2,16], index: 0, kind: input, shape index: {}]
  %s1 = inlined_call_operand.vmem [shape: f32[2,2,16], index: 1, kind: input, shape index: {}]
  %s2 = inlined_call_operand.vmem [shape: f32[2,2,16], index: 2, kind: input, shape index: {}]
  %s3 = inlined_call_operand.vmem [shape: f32[32,32], index: 3, kind: input, shape index: {}]
  %s4 = inlined_call_operand.vmem [shape: f32[2,2,32], index: 4, kind: output, shape index: {}]
  %s5 = sld [smem:[#allocation0]]
  $region49: #{multi_wavelet_transform.18} parent=0
    _
  %s7 = ssub.s32 1, %s5
  %s8 = scalar_select 0, %s7, %s5
  loop: start=0, step=1, limit=4
  $region2: #{multi_wavelet_transform.18} parent=0 // loop_pre_header
    _
  $region3: #{multi_wavelet_transform.18} parent=0 // loop_header
    %s10 = sphi 0, %s14
    %p11 = scmp.ge.s32.totalorder %s10, 4
    %s20 = sphi 0, %s22
    %s23 = sphi 0, %s20
    %s24 = sphi 0, %s23
    %s40 = sphi 0, %s24
    %s46 = sphi 0, %s48
    %s49 = sphi 0, %s46
    %s50 = sphi 0, %s49
    %s66 = sphi 0, %s50
    %s72 = sphi 0, %s74
    %s75 = sphi 0, %s72
    %s76 = sphi 0, %s75
    %s92 = sphi 0, %s76
    %s96 = sphi 0, %s96
    %s98 = sphi 0, %s96
    %s99 = sphi 0, %s98
    %s113 = sphi 0, %s99
    %s119 = sphi 0, %s121
    %s122 = sphi 0, %s119
    %s123 = sphi 0, %s122
    %s139 = sphi 0, %s123
  $region4: #{multi_wavelet_transform.18} parent=0 // loop_header_branch
    %13 = sbr.rel (%p11) target = $region8
  $region5: #{multi_wavelet_transform.18} parent=0 // loop_body
    %s15 = ssub.s32 %s10, 1
    %s16 = ssub.s32 %s10, 2
    %s17 = sadd.s32 %s10, 1
    %s18 = ssub.s32 %s10, %s17
    %p19 = scmp.eq.s32.totalorder %s18, 0
    %s21 = sadd.s32 %s20, 1
    %s22 = scalar_select %p19, %s20, %s21
    %p25 = pneg %p19
    %p26 = scmp.eq.s32.totalorder %s10, 1
    %p27 = por %p25, %p26
    %p28 = scmp.ne.s32.totalorder %s20, %s23
    %p29 = scmp.eq.s32.totalorder %s10, 0
    %p30 = por %p28, %p29
    %p31 = scmp.ne.s32.totalorder %s20, %s23
    %p32 = scmp.eq.s32.totalorder %s15, 1
    %p33 = por %p31, %p32
    %p34 = scmp.ne.s32.totalorder %s23, %s24
    %p35 = scmp.eq.s32.totalorder %s15, 0
    %p36 = por %p34, %p35
    %p37 = scmp.ne.s32.totalorder %s23, %s24
    %p38 = scmp.eq.s32.totalorder %s16, 1
    %p39 = por %p37, %p38
    %p41 = scmp.ne.s32.totalorder %s24, %s40
    %p42 = scmp.eq.s32.totalorder %s16, 0
    %p43 = por %p41, %p42
    %s44 = ssub.s32 %s10, %s17
    %p45 = scmp.eq.s32.totalorder %s44, 0
    %s47 = sadd.s32 %s46, 1
    %s48 = scalar_select %p45, %s46, %s47
    %p51 = pneg %p45
    %p52 = scmp.eq.s32.totalorder %s10, 1
    %p53 = por %p51, %p52
    %p54 = scmp.ne.s32.totalorder %s46, %s49
    %p55 = scmp.eq.s32.totalorder %s10, 0
    %p56 = por %p54, %p55
    %p57 = scmp.ne.s32.totalorder %s46, %s49
    %p58 = scmp.eq.s32.totalorder %s15, 1
    %p59 = por %p57, %p58
    %p60 = scmp.ne.s32.totalorder %s49, %s50
    %p61 = scmp.eq.s32.totalorder %s15, 0
    %p62 = por %p60, %p61
    %p63 = scmp.ne.s32.totalorder %s49, %s50
    %p64 = scmp.eq.s32.totalorder %s16, 1
    %p65 = por %p63, %p64
    %p67 = scmp.ne.s32.totalorder %s50, %s66
    %p68 = scmp.eq.s32.totalorder %s16, 0
    %p69 = por %p67, %p68
    %s70 = ssub.s32 %s10, %s17
    %p71 = scmp.eq.s32.totalorder %s70, 0
    %s73 = sadd.s32 %s72, 1
    %s74 = scalar_select %p71, %s72, %s73
    %p77 = pneg %p71
    %p78 = scmp.eq.s32.totalorder %s10, 1
    %p79 = por %p77, %p78
    %p80 = scmp.ne.s32.totalorder %s72, %s75
    %p81 = scmp.eq.s32.totalorder %s10, 0
    %p82 = por %p80, %p81
    %p83 = scmp.ne.s32.totalorder %s72, %s75
    %p84 = scmp.eq.s32.totalorder %s15, 1
    %p85 = por %p83, %p84
    %p86 = scmp.ne.s32.totalorder %s75, %s76
    %p87 = scmp.eq.s32.totalorder %s15, 0
    %p88 = por %p86, %p87
    %p89 = scmp.ne.s32.totalorder %s75, %s76
    %p90 = scmp.eq.s32.totalorder %s16, 1
    %p91 = por %p89, %p90
    %p93 = scmp.ne.s32.totalorder %s76, %s92
    %p94 = scmp.eq.s32.totalorder %s16, 0
    %p95 = por %p93, %p94
    %s97 = sadd.s32 %s96, 1
    %p100 = scmp.eq.s32.totalorder %s10, 1
    %p101 = scmp.ne.s32.totalorder %s96, %s98
    %p102 = scmp.eq.s32.totalorder %s10, 0
    %p103 = por %p101, %p102
    %p104 = scmp.ne.s32.totalorder %s96, %s98
    %p105 = scmp.eq.s32.totalorder %s15, 1
    %p106 = por %p104, %p105
    %p107 = scmp.ne.s32.totalorder %s98, %s99
    %p108 = scmp.eq.s32.totalorder %s15, 0
    %p109 = por %p107, %p108
    %p110 = scmp.ne.s32.totalorder %s98, %s99
    %p111 = scmp.eq.s32.totalorder %s16, 1
    %p112 = por %p110, %p111
    %p114 = scmp.ne.s32.totalorder %s99, %s113
    %p115 = scmp.eq.s32.totalorder %s16, 0
    %p116 = por %p114, %p115
    %s117 = ssub.s32 %s10, %s17
    %p118 = scmp.eq.s32.totalorder %s117, 0
    %s120 = sadd.s32 %s119, 1
    %s121 = scalar_select %p118, %s119, %s120
    %p124 = pneg %p118
    %p125 = scmp.eq.s32.totalorder %s10, 1
    %p126 = por %p124, %p125
    %p127 = scmp.ne.s32.totalorder %s119, %s122
    %p128 = scmp.eq.s32.totalorder %s10, 0
    %p129 = por %p127, %p128
    %p130 = scmp.ne.s32.totalorder %s119, %s122
    %p131 = scmp.eq.s32.totalorder %s15, 1
    %p132 = por %p130, %p131
    %p133 = scmp.ne.s32.totalorder %s122, %s123
    %p134 = scmp.eq.s32.totalorder %s15, 0
    %p135 = por %p133, %p134
    %p136 = scmp.ne.s32.totalorder %s122, %s123
    %p137 = scmp.eq.s32.totalorder %s16, 1
    %p138 = por %p136, %p137
    %p140 = scmp.ne.s32.totalorder %s123, %s139
    %p141 = scmp.eq.s32.totalorder %s16, 0
    %p142 = por %p140, %p141
    %p143 = scmp.le.s32.totalorder 1, %s10
    %p144 = scmp.lt.s32.totalorder %s10, 3
    %p145 = pnand %p143, %p144
    %p146 = pneg %p145
    // Predicated region
    $region9: #{multi_wavelet_transform.18} parent=5 // pred_check
      _
    $region10: #{multi_wavelet_transform.18} parent=5 // pred_check_branch
      %148 = sbr.rel (%p145) target = $region12
    $region11: #{multi_wavelet_transform.18} parent=5 // pred_region
      %s149 = ssub.s32 %s10, 1
      // Predicated region
      $region13: #{multi_wavelet_transform.18} parent=11 // pred_check
        %p150 = pneg %p109
      $region14: #{multi_wavelet_transform.18} parent=11 // pred_check_branch
        %152 = sbr.rel (%p150) target = $region16
      $region15: #{multi_wavelet_transform.18} parent=11 // pred_region
        _
      $region16: #{multi_wavelet_transform.18} parent=11 // pred_fallthru
        _
    $region12: #{multi_wavelet_transform.18} parent=5 // pred_fallthru
      _
    %p153 = scmp.lt.s32.totalorder %s10, 2
    // Predicated region
    $region17: #{multi_wavelet_transform.18} parent=5 // pred_check
      %p154 = pneg %p153
    $region18: #{multi_wavelet_transform.18} parent=5 // pred_check_branch
      %156 = sbr.rel (%p154) target = $region20
    $region19: #{multi_wavelet_transform.18} parent=5 // pred_region
      // Predicated region
      $region21: #{multi_wavelet_transform.18} parent=19 // pred_check
        %p157 = pneg %p30
      $region22: #{multi_wavelet_transform.18} parent=19 // pred_check_branch
        %159 = sbr.rel (%p157) target = $region24
      $region23: #{multi_wavelet_transform.18} parent=19 // pred_region
        %p160 = scmp.lt.s32.totalorder %s10, 1
        %s161 = scalar_select %p160, %s10, 1
        %s162 = smul.addr %s161, 2
        %s163 = scalar_lea.vmem %s0, %s162
      $region24: #{multi_wavelet_transform.18} parent=19 // pred_fallthru
        _
      // Predicated region
      $region25: #{multi_wavelet_transform.18} parent=19 // pred_check
        %p164 = pneg %p56
      $region26: #{multi_wavelet_transform.18} parent=19 // pred_check_branch
        %166 = sbr.rel (%p164) target = $region28
      $region27: #{multi_wavelet_transform.18} parent=19 // pred_region
        %p167 = scmp.lt.s32.totalorder %s10, 1
        %s168 = scalar_select %p167, %s10, 1
        %s169 = smul.addr %s168, 2
        %s170 = scalar_lea.vmem %s1, %s169
      $region28: #{multi_wavelet_transform.18} parent=19 // pred_fallthru
        _
      // Predicated region
      $region29: #{multi_wavelet_transform.18} parent=19 // pred_check
        %p171 = pneg %p82
      $region30: #{multi_wavelet_transform.18} parent=19 // pred_check_branch
        %173 = sbr.rel (%p171) target = $region32
      $region31: #{multi_wavelet_transform.18} parent=19 // pred_region
        %p174 = scmp.lt.s32.totalorder %s10, 1
        %s175 = scalar_select %p174, %s10, 1
        %s176 = smul.addr %s175, 2
        %s177 = scalar_lea.vmem %s2, %s176
      $region32: #{multi_wavelet_transform.18} parent=19 // pred_fallthru
        _
    $region20: #{multi_wavelet_transform.18} parent=5 // pred_fallthru
      _
    %p178 = scmp.le.s32.totalorder 1, %s10
    %p179 = scmp.lt.s32.totalorder %s10, 3
    %p180 = pnand %p178, %p179
    %p181 = pneg %p180
    // Predicated region
    $region33: #{multi_wavelet_transform.18} parent=5 // pred_check
      _
    $region34: #{multi_wavelet_transform.18} parent=5 // pred_check_branch
      %183 = sbr.rel (%p180) target = $region36
    $region35: #{multi_wavelet_transform.18} parent=5 // pred_region
      %s184 = ssub.s32 %s10, 1
      %p185 = scmp.lt.s32.totalorder %s15, 1
      %s186 = scalar_select %p185, %s15, 1
      %s187 = smul.addr %s186, 2
      %s188 = scalar_lea.vmem %s0, %s187
      %p189 = pneg %p36
      %p190 = pneg %p33
      %p191 = scmp.lt.s32.totalorder %s15, 1
      %s192 = scalar_select %p191, %s15, 1
      %s193 = smul.addr %s192, 2
      %s194 = scalar_lea.vmem %s1, %s193
      %p195 = pneg %p62
      %p196 = pneg %p59
      %p197 = scmp.lt.s32.totalorder %s15, 1
      %s198 = scalar_select %p197, %s15, 1
      %s199 = smul.addr %s198, 2
      %s200 = scalar_lea.vmem %s2, %s199
      %p201 = pneg %p88
      %p202 = pneg %p85
      %p203 = pneg %p109
      %p204 = pneg %p106
      %p205 = pneg %p135
      %p206 = pneg %p132
      %p207 = scmp.lt.s32.totalorder %s15, 1
      %s208 = scalar_select %p207, %s15, 1
      %s209 = smul.addr %s208, 2
      %s210 = scalar_lea.vmem %s4, %s209
      %p211 = scmp.lt.s32.totalorder %s15, 1
      %s212 = scalar_select %p211, %s15, 1
      %s213 = smul.addr %s212, 2
      %s214 = scalar_lea.vmem %s0, %s213
      %p215 = scmp.lt.s32.totalorder %s15, 1
      %s216 = scalar_select %p215, %s15, 1
      %s217 = smul.addr %s216, 2
      %s218 = scalar_lea.vmem %s1, %s217
      %p219 = scmp.lt.s32.totalorder %s15, 1
      %s220 = scalar_select %p219, %s15, 1
      %s221 = smul.addr %s220, 2
      %s222 = scalar_lea.vmem %s2, %s221
      %p223 = scmp.lt.s32.totalorder %s15, 1
      %s224 = scalar_select %p223, %s15, 1
      %s225 = smul.addr %s224, 2
      %s226 = scalar_lea.vmem %s4, %s225
      %v227 = vld [vmem:[%s214] sm:$0x3]
      %v228 = vld [vmem:[%s218] sm:$0x3]
      %v229 = vadd.f32 %v227, %v228
      %v230 = vld [vmem:[%s222] sm:$0x3]
      %232 = vrot.lane.b32.xlu0 %v230, 16
      %v233 = vpop.permute.xlu0 %232
      %vm235 = vcmask 130048
      %v236 = vsel %vm235, %v229, %v233
      %v237 = vld [vmem:[%s3] sm:$0xff]
      %v238 = vld [vmem:[%s3 + $0x8] sm:$0xff]
      %v239 = vld [vmem:[%s3 + $0x10] sm:$0xff]
      %v240 = vld [vmem:[%s3 + $0x18] sm:$0xff]
      %vm241 = vcmask 261120
      %v243 = vsel %vm241, %v236, 0
      %245 = vmatpush.msra.mxu0 0.0
      %246 = vmatpush.msra.mxu0 0.0
      %247 = vmatpush.msra.mxu0 0.0
      %248 = vmatpush.msra.mxu0 0.0
      %249 = vmatpush.msra.mxu0 0.0
      %250 = vmatpush.msra.mxu0 0.0
      %251 = vmatpush.msra.mxu0 0.0
      %252 = vmatpush.msra.mxu0 0.0
      %253 = vmatpush.msra.mxu0 0.0
      %254 = vmatpush.msra.mxu0 0.0
      %255 = vmatpush.msra.mxu0 0.0
      %256 = vmatpush.msra.mxu0 0.0
      %257 = vmatpush.msra.mxu0 %v240
      %258 = vmatpush.msra.mxu0 %v239
      %259 = vmatpush.msra.mxu0 %v238
      %260 = vmatpush.msra.mxu0 %v237
      %261 = vmatmul.f32.gmra.mxu0 %v243
      %v262 = vpop.f32.mrf.mxu0
      %v263 = vadd.f32 0.0, %v262
      %264 = vdwg.mxu0
      %vm265 = vcmask 254976
      %266 = vst.msk [vmem:[%s226] sm:$0x3] %vm265, %v263
      %p267 = scmp.lt.s32.totalorder %s15, 1
      %s268 = scalar_select %p267, %s15, 1
      %s269 = smul.addr %s268, 2
      %s270 = scalar_lea.vmem %s4, %s269
      // Predicated region
      $region37: #{multi_wavelet_transform.18} parent=35 // pred_check
        %p271 = pneg %p132
      $region38: #{multi_wavelet_transform.18} parent=35 // pred_check_branch
        %273 = sbr.rel (%p271) target = $region40
      $region39: #{multi_wavelet_transform.18} parent=35 // pred_region
        _
      $region40: #{multi_wavelet_transform.18} parent=35 // pred_fallthru
        _
    $region36: #{multi_wavelet_transform.18} parent=5 // pred_fallthru
      _
    %p274 = scmp.le.s32.totalorder 2, %s10
    // Predicated region
    $region41: #{multi_wavelet_transform.18} parent=5 // pred_check
      %p275 = pneg %p274
    $region42: #{multi_wavelet_transform.18} parent=5 // pred_check_branch
      %277 = sbr.rel (%p275) target = $region44
    $region43: #{multi_wavelet_transform.18} parent=5 // pred_region
      %s278 = ssub.s32 %s10, 2
      // Predicated region
      $region45: #{multi_wavelet_transform.18} parent=43 // pred_check
        %p279 = pneg %p138
      $region46: #{multi_wavelet_transform.18} parent=43 // pred_check_branch
        %281 = sbr.rel (%p279) target = $region48
      $region47: #{multi_wavelet_transform.18} parent=43 // pred_region
        %p282 = scmp.lt.s32.totalorder %s16, 1
        %s283 = scalar_select %p282, %s16, 1
        %s284 = smul.addr %s283, 2
        %s285 = scalar_lea.vmem %s4, %s284
      $region48: #{multi_wavelet_transform.18} parent=43 // pred_fallthru
        _
    $region44: #{multi_wavelet_transform.18} parent=5 // pred_fallthru
      _
  $region6: #{multi_wavelet_transform.18} parent=0 // loop_footer
    %s14 = sadd.s32 1, %s10
  $region7: #{multi_wavelet_transform.18} parent=0 // loop_footer_branch
    %9 = sbr.rel target = $region3
  $region8: #{multi_wavelet_transform.18} parent=0 // loop_exit
    _

// kernel: multi_wavelet_transform.19
$region0: #{multi_wavelet_transform.19}
  #allocation0 [shape = 'u32[]', space=smem, size = 0x4, offset = 0x4, fixed_abs, tag = 'smem constant byte address 0x4 - core index']
  #allocation1 [shape = 'u32[72,128]{1,0:T(1,128)}', space=vmem, size = 0x9000, scoped, tag = 'internal scratch']
  %s0 = inlined_call_operand.vmem [shape: f32[2,4,16], index: 0, kind: input, shape index: {}]
  %s1 = inlined_call_operand.vmem [shape: f32[2,4,16], index: 1, kind: input, shape index: {}]
  %s2 = inlined_call_operand.vmem [shape: f32[2,4,16], index: 2, kind: input, shape index: {}]
  %s3 = inlined_call_operand.vmem [shape: f32[32,32], index: 3, kind: input, shape index: {}]
  %s4 = inlined_call_operand.vmem [shape: f32[2,4,32], index: 4, kind: output, shape index: {}]
  %s5 = sld [smem:[#allocation0]]
  $region49: #{multi_wavelet_transform.19} parent=0
    _
  %s7 = ssub.s32 1, %s5
  %s8 = scalar_select 0, %s7, %s5
  loop: start=0, step=1, limit=4
  $region2: #{multi_wavelet_transform.19} parent=0 // loop_pre_header
    _
  $region3: #{multi_wavelet_transform.19} parent=0 // loop_header
    %s10 = sphi 0, %s14
    %p11 = scmp.ge.s32.totalorder %s10, 4
    %s20 = sphi 0, %s22
    %s23 = sphi 0, %s20
    %s24 = sphi 0, %s23
    %s40 = sphi 0, %s24
    %s46 = sphi 0, %s48
    %s49 = sphi 0, %s46
    %s50 = sphi 0, %s49
    %s66 = sphi 0, %s50
    %s72 = sphi 0, %s74
    %s75 = sphi 0, %s72
    %s76 = sphi 0, %s75
    %s92 = sphi 0, %s76
    %s96 = sphi 0, %s96
    %s98 = sphi 0, %s96
    %s99 = sphi 0, %s98
    %s113 = sphi 0, %s99
    %s119 = sphi 0, %s121
    %s122 = sphi 0, %s119
    %s123 = sphi 0, %s122
    %s139 = sphi 0, %s123
  $region4: #{multi_wavelet_transform.19} parent=0 // loop_header_branch
    %13 = sbr.rel (%p11) target = $region8
  $region5: #{multi_wavelet_transform.19} parent=0 // loop_body
    %s15 = ssub.s32 %s10, 1
    %s16 = ssub.s32 %s10, 2
    %s17 = sadd.s32 %s10, 1
    %s18 = ssub.s32 %s10, %s17
    %p19 = scmp.eq.s32.totalorder %s18, 0
    %s21 = sadd.s32 %s20, 1
    %s22 = scalar_select %p19, %s20, %s21
    %p25 = pneg %p19
    %p26 = scmp.eq.s32.totalorder %s10, 1
    %p27 = por %p25, %p26
    %p28 = scmp.ne.s32.totalorder %s20, %s23
    %p29 = scmp.eq.s32.totalorder %s10, 0
    %p30 = por %p28, %p29
    %p31 = scmp.ne.s32.totalorder %s20, %s23
    %p32 = scmp.eq.s32.totalorder %s15, 1
    %p33 = por %p31, %p32
    %p34 = scmp.ne.s32.totalorder %s23, %s24
    %p35 = scmp.eq.s32.totalorder %s15, 0
    %p36 = por %p34, %p35
    %p37 = scmp.ne.s32.totalorder %s23, %s24
    %p38 = scmp.eq.s32.totalorder %s16, 1
    %p39 = por %p37, %p38
    %p41 = scmp.ne.s32.totalorder %s24, %s40
    %p42 = scmp.eq.s32.totalorder %s16, 0
    %p43 = por %p41, %p42
    %s44 = ssub.s32 %s10, %s17
    %p45 = scmp.eq.s32.totalorder %s44, 0
    %s47 = sadd.s32 %s46, 1
    %s48 = scalar_select %p45, %s46, %s47
    %p51 = pneg %p45
    %p52 = scmp.eq.s32.totalorder %s10, 1
    %p53 = por %p51, %p52
    %p54 = scmp.ne.s32.totalorder %s46, %s49
    %p55 = scmp.eq.s32.totalorder %s10, 0
    %p56 = por %p54, %p55
    %p57 = scmp.ne.s32.totalorder %s46, %s49
    %p58 = scmp.eq.s32.totalorder %s15, 1
    %p59 = por %p57, %p58
    %p60 = scmp.ne.s32.totalorder %s49, %s50
    %p61 = scmp.eq.s32.totalorder %s15, 0
    %p62 = por %p60, %p61
    %p63 = scmp.ne.s32.totalorder %s49, %s50
    %p64 = scmp.eq.s32.totalorder %s16, 1
    %p65 = por %p63, %p64
    %p67 = scmp.ne.s32.totalorder %s50, %s66
    %p68 = scmp.eq.s32.totalorder %s16, 0
    %p69 = por %p67, %p68
    %s70 = ssub.s32 %s10, %s17
    %p71 = scmp.eq.s32.totalorder %s70, 0
    %s73 = sadd.s32 %s72, 1
    %s74 = scalar_select %p71, %s72, %s73
    %p77 = pneg %p71
    %p78 = scmp.eq.s32.totalorder %s10, 1
    %p79 = por %p77, %p78
    %p80 = scmp.ne.s32.totalorder %s72, %s75
    %p81 = scmp.eq.s32.totalorder %s10, 0
    %p82 = por %p80, %p81
    %p83 = scmp.ne.s32.totalorder %s72, %s75
    %p84 = scmp.eq.s32.totalorder %s15, 1
    %p85 = por %p83, %p84
    %p86 = scmp.ne.s32.totalorder %s75, %s76
    %p87 = scmp.eq.s32.totalorder %s15, 0
    %p88 = por %p86, %p87
    %p89 = scmp.ne.s32.totalorder %s75, %s76
    %p90 = scmp.eq.s32.totalorder %s16, 1
    %p91 = por %p89, %p90
    %p93 = scmp.ne.s32.totalorder %s76, %s92
    %p94 = scmp.eq.s32.totalorder %s16, 0
    %p95 = por %p93, %p94
    %s97 = sadd.s32 %s96, 1
    %p100 = scmp.eq.s32.totalorder %s10, 1
    %p101 = scmp.ne.s32.totalorder %s96, %s98
    %p102 = scmp.eq.s32.totalorder %s10, 0
    %p103 = por %p101, %p102
    %p104 = scmp.ne.s32.totalorder %s96, %s98
    %p105 = scmp.eq.s32.totalorder %s15, 1
    %p106 = por %p104, %p105
    %p107 = scmp.ne.s32.totalorder %s98, %s99
    %p108 = scmp.eq.s32.totalorder %s15, 0
    %p109 = por %p107, %p108
    %p110 = scmp.ne.s32.totalorder %s98, %s99
    %p111 = scmp.eq.s32.totalorder %s16, 1
    %p112 = por %p110, %p111
    %p114 = scmp.ne.s32.totalorder %s99, %s113
    %p115 = scmp.eq.s32.totalorder %s16, 0
    %p116 = por %p114, %p115
    %s117 = ssub.s32 %s10, %s17
    %p118 = scmp.eq.s32.totalorder %s117, 0
    %s120 = sadd.s32 %s119, 1
    %s121 = scalar_select %p118, %s119, %s120
    %p124 = pneg %p118
    %p125 = scmp.eq.s32.totalorder %s10, 1
    %p126 = por %p124, %p125
    %p127 = scmp.ne.s32.totalorder %s119, %s122
    %p128 = scmp.eq.s32.totalorder %s10, 0
    %p129 = por %p127, %p128
    %p130 = scmp.ne.s32.totalorder %s119, %s122
    %p131 = scmp.eq.s32.totalorder %s15, 1
    %p132 = por %p130, %p131
    %p133 = scmp.ne.s32.totalorder %s122, %s123
    %p134 = scmp.eq.s32.totalorder %s15, 0
    %p135 = por %p133, %p134
    %p136 = scmp.ne.s32.totalorder %s122, %s123
    %p137 = scmp.eq.s32.totalorder %s16, 1
    %p138 = por %p136, %p137
    %p140 = scmp.ne.s32.totalorder %s123, %s139
    %p141 = scmp.eq.s32.totalorder %s16, 0
    %p142 = por %p140, %p141
    %p143 = scmp.le.s32.totalorder 1, %s10
    %p144 = scmp.lt.s32.totalorder %s10, 3
    %p145 = pnand %p143, %p144
    %p146 = pneg %p145
    // Predicated region
    $region9: #{multi_wavelet_transform.19} parent=5 // pred_check
      _
    $region10: #{multi_wavelet_transform.19} parent=5 // pred_check_branch
      %148 = sbr.rel (%p145) target = $region12
    $region11: #{multi_wavelet_transform.19} parent=5 // pred_region
      %s149 = ssub.s32 %s10, 1
      // Predicated region
      $region13: #{multi_wavelet_transform.19} parent=11 // pred_check
        %p150 = pneg %p109
      $region14: #{multi_wavelet_transform.19} parent=11 // pred_check_branch
        %152 = sbr.rel (%p150) target = $region16
      $region15: #{multi_wavelet_transform.19} parent=11 // pred_region
        _
      $region16: #{multi_wavelet_transform.19} parent=11 // pred_fallthru
        _
    $region12: #{multi_wavelet_transform.19} parent=5 // pred_fallthru
      _
    %p153 = scmp.lt.s32.totalorder %s10, 2
    // Predicated region
    $region17: #{multi_wavelet_transform.19} parent=5 // pred_check
      %p154 = pneg %p153
    $region18: #{multi_wavelet_transform.19} parent=5 // pred_check_branch
      %156 = sbr.rel (%p154) target = $region20
    $region19: #{multi_wavelet_transform.19} parent=5 // pred_region
      // Predicated region
      $region21: #{multi_wavelet_transform.19} parent=19 // pred_check
        %p157 = pneg %p30
      $region22: #{multi_wavelet_transform.19} parent=19 // pred_check_branch
        %159 = sbr.rel (%p157) target = $region24
      $region23: #{multi_wavelet_transform.19} parent=19 // pred_region
        %p160 = scmp.lt.s32.totalorder %s10, 1
        %s161 = scalar_select %p160, %s10, 1
        %s162 = smul.addr %s161, 4
        %s163 = scalar_lea.vmem %s0, %s162
      $region24: #{multi_wavelet_transform.19} parent=19 // pred_fallthru
        _
      // Predicated region
      $region25: #{multi_wavelet_transform.19} parent=19 // pred_check
        %p164 = pneg %p56
      $region26: #{multi_wavelet_transform.19} parent=19 // pred_check_branch
        %166 = sbr.rel (%p164) target = $region28
      $region27: #{multi_wavelet_transform.19} parent=19 // pred_region
        %p167 = scmp.lt.s32.totalorder %s10, 1
        %s168 = scalar_select %p167, %s10, 1
        %s169 = smul.addr %s168, 4
        %s170 = scalar_lea.vmem %s1, %s169
      $region28: #{multi_wavelet_transform.19} parent=19 // pred_fallthru
        _
      // Predicated region
      $region29: #{multi_wavelet_transform.19} parent=19 // pred_check
        %p171 = pneg %p82
      $region30: #{multi_wavelet_transform.19} parent=19 // pred_check_branch
        %173 = sbr.rel (%p171) target = $region32
      $region31: #{multi_wavelet_transform.19} parent=19 // pred_region
        %p174 = scmp.lt.s32.totalorder %s10, 1
        %s175 = scalar_select %p174, %s10, 1
        %s176 = smul.addr %s175, 4
        %s177 = scalar_lea.vmem %s2, %s176
      $region32: #{multi_wavelet_transform.19} parent=19 // pred_fallthru
        _
    $region20: #{multi_wavelet_transform.19} parent=5 // pred_fallthru
      _
    %p178 = scmp.le.s32.totalorder 1, %s10
    %p179 = scmp.lt.s32.totalorder %s10, 3
    %p180 = pnand %p178, %p179
    %p181 = pneg %p180
    // Predicated region
    $region33: #{multi_wavelet_transform.19} parent=5 // pred_check
      _
    $region34: #{multi_wavelet_transform.19} parent=5 // pred_check_branch
      %183 = sbr.rel (%p180) target = $region36
    $region35: #{multi_wavelet_transform.19} parent=5 // pred_region
      %s184 = ssub.s32 %s10, 1
      %p185 = scmp.lt.s32.totalorder %s15, 1
      %s186 = scalar_select %p185, %s15, 1
      %s187 = smul.addr %s186, 4
      %s188 = scalar_lea.vmem %s0, %s187
      %p189 = pneg %p36
      %p190 = pneg %p33
      %p191 = scmp.lt.s32.totalorder %s15, 1
      %s192 = scalar_select %p191, %s15, 1
      %s193 = smul.addr %s192, 4
      %s194 = scalar_lea.vmem %s1, %s193
      %p195 = pneg %p62
      %p196 = pneg %p59
      %p197 = scmp.lt.s32.totalorder %s15, 1
      %s198 = scalar_select %p197, %s15, 1
      %s199 = smul.addr %s198, 4
      %s200 = scalar_lea.vmem %s2, %s199
      %p201 = pneg %p88
      %p202 = pneg %p85
      %p203 = pneg %p109
      %p204 = pneg %p106
      %p205 = pneg %p135
      %p206 = pneg %p132
      %p207 = scmp.lt.s32.totalorder %s15, 1
      %s208 = scalar_select %p207, %s15, 1
      %s209 = smul.addr %s208, 4
      %s210 = scalar_lea.vmem %s4, %s209
      %p211 = scmp.lt.s32.totalorder %s15, 1
      %s212 = scalar_select %p211, %s15, 1
      %s213 = smul.addr %s212, 4
      %s214 = scalar_lea.vmem %s0, %s213
      %p215 = scmp.lt.s32.totalorder %s15, 1
      %s216 = scalar_select %p215, %s15, 1
      %s217 = smul.addr %s216, 4
      %s218 = scalar_lea.vmem %s1, %s217
      %p219 = scmp.lt.s32.totalorder %s15, 1
      %s220 = scalar_select %p219, %s15, 1
      %s221 = smul.addr %s220, 4
      %s222 = scalar_lea.vmem %s2, %s221
      %p223 = scmp.lt.s32.totalorder %s15, 1
      %s224 = scalar_select %p223, %s15, 1
      %s225 = smul.addr %s224, 4
      %s226 = scalar_lea.vmem %s4, %s225
      %v227 = vld [vmem:[%s214] sm:$0xf]
      %v228 = vld [vmem:[%s218] sm:$0xf]
      %v229 = vadd.f32 %v227, %v228
      %v230 = vld [vmem:[%s222] sm:$0xf]
      %232 = vrot.lane.b32.xlu0 %v230, 16
      %v233 = vpop.permute.xlu0 %232
      %vm235 = vcmask 130048
      %v236 = vsel %vm235, %v229, %v233
      %v237 = vld [vmem:[%s3] sm:$0xff]
      %v238 = vld [vmem:[%s3 + $0x8] sm:$0xff]
      %v239 = vld [vmem:[%s3 + $0x10] sm:$0xff]
      %v240 = vld [vmem:[%s3 + $0x18] sm:$0xff]
      %vm241 = vcmask 261120
      %v243 = vsel %vm241, %v236, 0
      %245 = vmatpush.msra.mxu0 0.0
      %246 = vmatpush.msra.mxu0 0.0
      %247 = vmatpush.msra.mxu0 0.0
      %248 = vmatpush.msra.mxu0 0.0
      %249 = vmatpush.msra.mxu0 0.0
      %250 = vmatpush.msra.mxu0 0.0
      %251 = vmatpush.msra.mxu0 0.0
      %252 = vmatpush.msra.mxu0 0.0
      %253 = vmatpush.msra.mxu0 0.0
      %254 = vmatpush.msra.mxu0 0.0
      %255 = vmatpush.msra.mxu0 0.0
      %256 = vmatpush.msra.mxu0 0.0
      %257 = vmatpush.msra.mxu0 %v240
      %258 = vmatpush.msra.mxu0 %v239
      %259 = vmatpush.msra.mxu0 %v238
      %260 = vmatpush.msra.mxu0 %v237
      %261 = vmatmul.f32.gmra.mxu0 %v243
      %v262 = vpop.f32.mrf.mxu0
      %v263 = vadd.f32 0.0, %v262
      %264 = vdwg.mxu0
      %vm265 = vcmask 257024
      %266 = vst.msk [vmem:[%s226] sm:$0xf] %vm265, %v263
      %p267 = scmp.lt.s32.totalorder %s15, 1
      %s268 = scalar_select %p267, %s15, 1
      %s269 = smul.addr %s268, 4
      %s270 = scalar_lea.vmem %s4, %s269
      // Predicated region
      $region37: #{multi_wavelet_transform.19} parent=35 // pred_check
        %p271 = pneg %p132
      $region38: #{multi_wavelet_transform.19} parent=35 // pred_check_branch
        %273 = sbr.rel (%p271) target = $region40
      $region39: #{multi_wavelet_transform.19} parent=35 // pred_region
        _
      $region40: #{multi_wavelet_transform.19} parent=35 // pred_fallthru
        _
    $region36: #{multi_wavelet_transform.19} parent=5 // pred_fallthru
      _
    %p274 = scmp.le.s32.totalorder 2, %s10
    // Predicated region
    $region41: #{multi_wavelet_transform.19} parent=5 // pred_check
      %p275 = pneg %p274
    $region42: #{multi_wavelet_transform.19} parent=5 // pred_check_branch
      %277 = sbr.rel (%p275) target = $region44
    $region43: #{multi_wavelet_transform.19} parent=5 // pred_region
      %s278 = ssub.s32 %s10, 2
      // Predicated region
      $region45: #{multi_wavelet_transform.19} parent=43 // pred_check
        %p279 = pneg %p138
      $region46: #{multi_wavelet_transform.19} parent=43 // pred_check_branch
        %281 = sbr.rel (%p279) target = $region48
      $region47: #{multi_wavelet_transform.19} parent=43 // pred_region
        %p282 = scmp.lt.s32.totalorder %s16, 1
        %s283 = scalar_select %p282, %s16, 1
        %s284 = smul.addr %s283, 4
        %s285 = scalar_lea.vmem %s4, %s284
      $region48: #{multi_wavelet_transform.19} parent=43 // pred_fallthru
        _
    $region44: #{multi_wavelet_transform.19} parent=5 // pred_fallthru
      _
  $region6: #{multi_wavelet_transform.19} parent=0 // loop_footer
    %s14 = sadd.s32 1, %s10
  $region7: #{multi_wavelet_transform.19} parent=0 // loop_footer_branch
    %9 = sbr.rel target = $region3
  $region8: #{multi_wavelet_transform.19} parent=0 // loop_exit
    _

// kernel: multi_wavelet_transform.20
$region0: #{multi_wavelet_transform.20}
  #allocation0 [shape = 'u32[]', space=smem, size = 0x4, offset = 0x4, fixed_abs, tag = 'smem constant byte address 0x4 - core index']
  #allocation1 [shape = 'u32[72,128]{1,0:T(1,128)}', space=vmem, size = 0x9000, scoped, tag = 'internal scratch']
  %s0 = inlined_call_operand.vmem [shape: f32[2,8,16], index: 0, kind: input, shape index: {}]
  %s1 = inlined_call_operand.vmem [shape: f32[2,8,16], index: 1, kind: input, shape index: {}]
  %s2 = inlined_call_operand.vmem [shape: f32[2,8,16], index: 2, kind: input, shape index: {}]
  %s3 = inlined_call_operand.vmem [shape: f32[32,32], index: 3, kind: input, shape index: {}]
  %s4 = inlined_call_operand.vmem [shape: f32[2,8,32], index: 4, kind: output, shape index: {}]
  %s5 = sld [smem:[#allocation0]]
  $region49: #{multi_wavelet_transform.20} parent=0
    _
  %s7 = ssub.s32 1, %s5
  %s8 = scalar_select 0, %s7, %s5
  loop: start=0, step=1, limit=4
  $region2: #{multi_wavelet_transform.20} parent=0 // loop_pre_header
    _
  $region3: #{multi_wavelet_transform.20} parent=0 // loop_header
    %s10 = sphi 0, %s14
    %p11 = scmp.ge.s32.totalorder %s10, 4
    %s20 = sphi 0, %s22
    %s23 = sphi 0, %s20
    %s24 = sphi 0, %s23
    %s40 = sphi 0, %s24
    %s46 = sphi 0, %s48
    %s49 = sphi 0, %s46
    %s50 = sphi 0, %s49
    %s66 = sphi 0, %s50
    %s72 = sphi 0, %s74
    %s75 = sphi 0, %s72
    %s76 = sphi 0, %s75
    %s92 = sphi 0, %s76
    %s96 = sphi 0, %s96
    %s98 = sphi 0, %s96
    %s99 = sphi 0, %s98
    %s113 = sphi 0, %s99
    %s119 = sphi 0, %s121
    %s122 = sphi 0, %s119
    %s123 = sphi 0, %s122
    %s139 = sphi 0, %s123
  $region4: #{multi_wavelet_transform.20} parent=0 // loop_header_branch
    %13 = sbr.rel (%p11) target = $region8
  $region5: #{multi_wavelet_transform.20} parent=0 // loop_body
    %s15 = ssub.s32 %s10, 1
    %s16 = ssub.s32 %s10, 2
    %s17 = sadd.s32 %s10, 1
    %s18 = ssub.s32 %s10, %s17
    %p19 = scmp.eq.s32.totalorder %s18, 0
    %s21 = sadd.s32 %s20, 1
    %s22 = scalar_select %p19, %s20, %s21
    %p25 = pneg %p19
    %p26 = scmp.eq.s32.totalorder %s10, 1
    %p27 = por %p25, %p26
    %p28 = scmp.ne.s32.totalorder %s20, %s23
    %p29 = scmp.eq.s32.totalorder %s10, 0
    %p30 = por %p28, %p29
    %p31 = scmp.ne.s32.totalorder %s20, %s23
    %p32 = scmp.eq.s32.totalorder %s15, 1
    %p33 = por %p31, %p32
    %p34 = scmp.ne.s32.totalorder %s23, %s24
    %p35 = scmp.eq.s32.totalorder %s15, 0
    %p36 = por %p34, %p35
    %p37 = scmp.ne.s32.totalorder %s23, %s24
    %p38 = scmp.eq.s32.totalorder %s16, 1
    %p39 = por %p37, %p38
    %p41 = scmp.ne.s32.totalorder %s24, %s40
    %p42 = scmp.eq.s32.totalorder %s16, 0
    %p43 = por %p41, %p42
    %s44 = ssub.s32 %s10, %s17
    %p45 = scmp.eq.s32.totalorder %s44, 0
    %s47 = sadd.s32 %s46, 1
    %s48 = scalar_select %p45, %s46, %s47
    %p51 = pneg %p45
    %p52 = scmp.eq.s32.totalorder %s10, 1
    %p53 = por %p51, %p52
    %p54 = scmp.ne.s32.totalorder %s46, %s49
    %p55 = scmp.eq.s32.totalorder %s10, 0
    %p56 = por %p54, %p55
    %p57 = scmp.ne.s32.totalorder %s46, %s49
    %p58 = scmp.eq.s32.totalorder %s15, 1
    %p59 = por %p57, %p58
    %p60 = scmp.ne.s32.totalorder %s49, %s50
    %p61 = scmp.eq.s32.totalorder %s15, 0
    %p62 = por %p60, %p61
    %p63 = scmp.ne.s32.totalorder %s49, %s50
    %p64 = scmp.eq.s32.totalorder %s16, 1
    %p65 = por %p63, %p64
    %p67 = scmp.ne.s32.totalorder %s50, %s66
    %p68 = scmp.eq.s32.totalorder %s16, 0
    %p69 = por %p67, %p68
    %s70 = ssub.s32 %s10, %s17
    %p71 = scmp.eq.s32.totalorder %s70, 0
    %s73 = sadd.s32 %s72, 1
    %s74 = scalar_select %p71, %s72, %s73
    %p77 = pneg %p71
    %p78 = scmp.eq.s32.totalorder %s10, 1
    %p79 = por %p77, %p78
    %p80 = scmp.ne.s32.totalorder %s72, %s75
    %p81 = scmp.eq.s32.totalorder %s10, 0
    %p82 = por %p80, %p81
    %p83 = scmp.ne.s32.totalorder %s72, %s75
    %p84 = scmp.eq.s32.totalorder %s15, 1
    %p85 = por %p83, %p84
    %p86 = scmp.ne.s32.totalorder %s75, %s76
    %p87 = scmp.eq.s32.totalorder %s15, 0
    %p88 = por %p86, %p87
    %p89 = scmp.ne.s32.totalorder %s75, %s76
    %p90 = scmp.eq.s32.totalorder %s16, 1
    %p91 = por %p89, %p90
    %p93 = scmp.ne.s32.totalorder %s76, %s92
    %p94 = scmp.eq.s32.totalorder %s16, 0
    %p95 = por %p93, %p94
    %s97 = sadd.s32 %s96, 1
    %p100 = scmp.eq.s32.totalorder %s10, 1
    %p101 = scmp.ne.s32.totalorder %s96, %s98
    %p102 = scmp.eq.s32.totalorder %s10, 0
    %p103 = por %p101, %p102
    %p104 = scmp.ne.s32.totalorder %s96, %s98
    %p105 = scmp.eq.s32.totalorder %s15, 1
    %p106 = por %p104, %p105
    %p107 = scmp.ne.s32.totalorder %s98, %s99
    %p108 = scmp.eq.s32.totalorder %s15, 0
    %p109 = por %p107, %p108
    %p110 = scmp.ne.s32.totalorder %s98, %s99
    %p111 = scmp.eq.s32.totalorder %s16, 1
    %p112 = por %p110, %p111
    %p114 = scmp.ne.s32.totalorder %s99, %s113
    %p115 = scmp.eq.s32.totalorder %s16, 0
    %p116 = por %p114, %p115
    %s117 = ssub.s32 %s10, %s17
    %p118 = scmp.eq.s32.totalorder %s117, 0
    %s120 = sadd.s32 %s119, 1
    %s121 = scalar_select %p118, %s119, %s120
    %p124 = pneg %p118
    %p125 = scmp.eq.s32.totalorder %s10, 1
    %p126 = por %p124, %p125
    %p127 = scmp.ne.s32.totalorder %s119, %s122
    %p128 = scmp.eq.s32.totalorder %s10, 0
    %p129 = por %p127, %p128
    %p130 = scmp.ne.s32.totalorder %s119, %s122
    %p131 = scmp.eq.s32.totalorder %s15, 1
    %p132 = por %p130, %p131
    %p133 = scmp.ne.s32.totalorder %s122, %s123
    %p134 = scmp.eq.s32.totalorder %s15, 0
    %p135 = por %p133, %p134
    %p136 = scmp.ne.s32.totalorder %s122, %s123
    %p137 = scmp.eq.s32.totalorder %s16, 1
    %p138 = por %p136, %p137
    %p140 = scmp.ne.s32.totalorder %s123, %s139
    %p141 = scmp.eq.s32.totalorder %s16, 0
    %p142 = por %p140, %p141
    %p143 = scmp.le.s32.totalorder 1, %s10
    %p144 = scmp.lt.s32.totalorder %s10, 3
    %p145 = pnand %p143, %p144
    %p146 = pneg %p145
    // Predicated region
    $region9: #{multi_wavelet_transform.20} parent=5 // pred_check
      _
    $region10: #{multi_wavelet_transform.20} parent=5 // pred_check_branch
      %148 = sbr.rel (%p145) target = $region12
    $region11: #{multi_wavelet_transform.20} parent=5 // pred_region
      %s149 = ssub.s32 %s10, 1
      // Predicated region
      $region13: #{multi_wavelet_transform.20} parent=11 // pred_check
        %p150 = pneg %p109
      $region14: #{multi_wavelet_transform.20} parent=11 // pred_check_branch
        %152 = sbr.rel (%p150) target = $region16
      $region15: #{multi_wavelet_transform.20} parent=11 // pred_region
        _
      $region16: #{multi_wavelet_transform.20} parent=11 // pred_fallthru
        _
    $region12: #{multi_wavelet_transform.20} parent=5 // pred_fallthru
      _
    %p153 = scmp.lt.s32.totalorder %s10, 2
    // Predicated region
    $region17: #{multi_wavelet_transform.20} parent=5 // pred_check
      %p154 = pneg %p153
    $region18: #{multi_wavelet_transform.20} parent=5 // pred_check_branch
      %156 = sbr.rel (%p154) target = $region20
    $region19: #{multi_wavelet_transform.20} parent=5 // pred_region
      // Predicated region
      $region21: #{multi_wavelet_transform.20} parent=19 // pred_check
        %p157 = pneg %p30
      $region22: #{multi_wavelet_transform.20} parent=19 // pred_check_branch
        %159 = sbr.rel (%p157) target = $region24
      $region23: #{multi_wavelet_transform.20} parent=19 // pred_region
        %p160 = scmp.lt.s32.totalorder %s10, 1
        %s161 = scalar_select %p160, %s10, 1
        %s162 = smul.addr %s161, 8
        %s163 = scalar_lea.vmem %s0, %s162
      $region24: #{multi_wavelet_transform.20} parent=19 // pred_fallthru
        _
      // Predicated region
      $region25: #{multi_wavelet_transform.20} parent=19 // pred_check
        %p164 = pneg %p56
      $region26: #{multi_wavelet_transform.20} parent=19 // pred_check_branch
        %166 = sbr.rel (%p164) target = $region28
      $region27: #{multi_wavelet_transform.20} parent=19 // pred_region
        %p167 = scmp.lt.s32.totalorder %s10, 1
        %s168 = scalar_select %p167, %s10, 1
        %s169 = smul.addr %s168, 8
        %s170 = scalar_lea.vmem %s1, %s169
      $region28: #{multi_wavelet_transform.20} parent=19 // pred_fallthru
        _
      // Predicated region
      $region29: #{multi_wavelet_transform.20} parent=19 // pred_check
        %p171 = pneg %p82
      $region30: #{multi_wavelet_transform.20} parent=19 // pred_check_branch
        %173 = sbr.rel (%p171) target = $region32
      $region31: #{multi_wavelet_transform.20} parent=19 // pred_region
        %p174 = scmp.lt.s32.totalorder %s10, 1
        %s175 = scalar_select %p174, %s10, 1
        %s176 = smul.addr %s175, 8
        %s177 = scalar_lea.vmem %s2, %s176
      $region32: #{multi_wavelet_transform.20} parent=19 // pred_fallthru
        _
    $region20: #{multi_wavelet_transform.20} parent=5 // pred_fallthru
      _
    %p178 = scmp.le.s32.totalorder 1, %s10
    %p179 = scmp.lt.s32.totalorder %s10, 3
    %p180 = pnand %p178, %p179
    %p181 = pneg %p180
    // Predicated region
    $region33: #{multi_wavelet_transform.20} parent=5 // pred_check
      _
    $region34: #{multi_wavelet_transform.20} parent=5 // pred_check_branch
      %183 = sbr.rel (%p180) target = $region36
    $region35: #{multi_wavelet_transform.20} parent=5 // pred_region
      %s184 = ssub.s32 %s10, 1
      %p185 = scmp.lt.s32.totalorder %s15, 1
      %s186 = scalar_select %p185, %s15, 1
      %s187 = smul.addr %s186, 8
      %s188 = scalar_lea.vmem %s0, %s187
      %p189 = pneg %p36
      %p190 = pneg %p33
      %p191 = scmp.lt.s32.totalorder %s15, 1
      %s192 = scalar_select %p191, %s15, 1
      %s193 = smul.addr %s192, 8
      %s194 = scalar_lea.vmem %s1, %s193
      %p195 = pneg %p62
      %p196 = pneg %p59
      %p197 = scmp.lt.s32.totalorder %s15, 1
      %s198 = scalar_select %p197, %s15, 1
      %s199 = smul.addr %s198, 8
      %s200 = scalar_lea.vmem %s2, %s199
      %p201 = pneg %p88
      %p202 = pneg %p85
      %p203 = pneg %p109
      %p204 = pneg %p106
      %p205 = pneg %p135
      %p206 = pneg %p132
      %p207 = scmp.lt.s32.totalorder %s15, 1
      %s208 = scalar_select %p207, %s15, 1
      %s209 = smul.addr %s208, 8
      %s210 = scalar_lea.vmem %s4, %s209
      %p211 = scmp.lt.s32.totalorder %s15, 1
      %s212 = scalar_select %p211, %s15, 1
      %s213 = smul.addr %s212, 8
      %s214 = scalar_lea.vmem %s0, %s213
      %p215 = scmp.lt.s32.totalorder %s15, 1
      %s216 = scalar_select %p215, %s15, 1
      %s217 = smul.addr %s216, 8
      %s218 = scalar_lea.vmem %s1, %s217
      %p219 = scmp.lt.s32.totalorder %s15, 1
      %s220 = scalar_select %p219, %s15, 1
      %s221 = smul.addr %s220, 8
      %s222 = scalar_lea.vmem %s2, %s221
      %p223 = scmp.lt.s32.totalorder %s15, 1
      %s224 = scalar_select %p223, %s15, 1
      %s225 = smul.addr %s224, 8
      %s226 = scalar_lea.vmem %s4, %s225
      %v227 = vld [vmem:[%s214] sm:$0xff]
      %v228 = vld [vmem:[%s218] sm:$0xff]
      %v229 = vadd.f32 %v227, %v228
      %v230 = vld [vmem:[%s222] sm:$0xff]
      %232 = vrot.lane.b32.xlu0 %v230, 16
      %v233 = vpop.permute.xlu0 %232
      %vm235 = vcmask 130048
      %v236 = vsel %vm235, %v229, %v233
      %v237 = vld [vmem:[%s3] sm:$0xff]
      %v238 = vld [vmem:[%s3 + $0x8] sm:$0xff]
      %v239 = vld [vmem:[%s3 + $0x10] sm:$0xff]
      %v240 = vld [vmem:[%s3 + $0x18] sm:$0xff]
      %vm241 = vcmask 261120
      %v243 = vsel %vm241, %v236, 0
      %245 = vmatpush.msra.mxu0 0.0
      %246 = vmatpush.msra.mxu0 0.0
      %247 = vmatpush.msra.mxu0 0.0
      %248 = vmatpush.msra.mxu0 0.0
      %249 = vmatpush.msra.mxu0 0.0
      %250 = vmatpush.msra.mxu0 0.0
      %251 = vmatpush.msra.mxu0 0.0
      %252 = vmatpush.msra.mxu0 0.0
      %253 = vmatpush.msra.mxu0 0.0
      %254 = vmatpush.msra.mxu0 0.0
      %255 = vmatpush.msra.mxu0 0.0
      %256 = vmatpush.msra.mxu0 0.0
      %257 = vmatpush.msra.mxu0 %v240
      %258 = vmatpush.msra.mxu0 %v239
      %259 = vmatpush.msra.mxu0 %v238
      %260 = vmatpush.msra.mxu0 %v237
      %261 = vmatmul.f32.gmra.mxu0 %v243
      %v262 = vpop.f32.mrf.mxu0
      %v263 = vadd.f32 0.0, %v262
      %264 = vdwg.mxu0
      %265 = vst.msk [vmem:[%s226] sm:$0xff] %vm241, %v263
      %p266 = scmp.lt.s32.totalorder %s15, 1
      %s267 = scalar_select %p266, %s15, 1
      %s268 = smul.addr %s267, 8
      %s269 = scalar_lea.vmem %s4, %s268
      // Predicated region
      $region37: #{multi_wavelet_transform.20} parent=35 // pred_check
        %p270 = pneg %p132
      $region38: #{multi_wavelet_transform.20} parent=35 // pred_check_branch
        %272 = sbr.rel (%p270) target = $region40
      $region39: #{multi_wavelet_transform.20} parent=35 // pred_region
        _
      $region40: #{multi_wavelet_transform.20} parent=35 // pred_fallthru
        _
    $region36: #{multi_wavelet_transform.20} parent=5 // pred_fallthru
      _
    %p273 = scmp.le.s32.totalorder 2, %s10
    // Predicated region
    $region41: #{multi_wavelet_transform.20} parent=5 // pred_check
      %p274 = pneg %p273
    $region42: #{multi_wavelet_transform.20} parent=5 // pred_check_branch
      %276 = sbr.rel (%p274) target = $region44
    $region43: #{multi_wavelet_transform.20} parent=5 // pred_region
      %s277 = ssub.s32 %s10, 2
      // Predicated region
      $region45: #{multi_wavelet_transform.20} parent=43 // pred_check
        %p278 = pneg %p138
      $region46: #{multi_wavelet_transform.20} parent=43 // pred_check_branch
        %280 = sbr.rel (%p278) target = $region48
      $region47: #{multi_wavelet_transform.20} parent=43 // pred_region
        %p281 = scmp.lt.s32.totalorder %s16, 1
        %s282 = scalar_select %p281, %s16, 1
        %s283 = smul.addr %s282, 8
        %s284 = scalar_lea.vmem %s4, %s283
      $region48: #{multi_wavelet_transform.20} parent=43 // pred_fallthru
        _
    $region44: #{multi_wavelet_transform.20} parent=5 // pred_fallthru
      _
  $region6: #{multi_wavelet_transform.20} parent=0 // loop_footer
    %s14 = sadd.s32 1, %s10
  $region7: #{multi_wavelet_transform.20} parent=0 // loop_footer_branch
    %9 = sbr.rel target = $region3
  $region8: #{multi_wavelet_transform.20} parent=0 // loop_exit
    _

// kernel: multi_wavelet_transform.21
$region0: #{multi_wavelet_transform.21}
  #allocation0 [shape = 'u32[]', space=smem, size = 0x4, offset = 0x4, fixed_abs, tag = 'smem constant byte address 0x4 - core index']
  #allocation1 [shape = 'u32[72,128]{1,0:T(1,128)}', space=vmem, size = 0x9000, scoped, tag = 'internal scratch']
  %s0 = inlined_call_operand.vmem [shape: f32[32,16], index: 0, kind: input, shape index: {}]
  %s1 = inlined_call_operand.vmem [shape: f32[16,8], index: 1, kind: input, shape index: {}]
  %s2 = inlined_call_operand.vmem [shape: f32[1,8], index: 2, kind: input, shape index: {}]
  %s3 = inlined_call_operand.vmem [shape: f32[32,8], index: 3, kind: output, shape index: {}]
  %s4 = sld [smem:[#allocation0]]
  $region22: #{multi_wavelet_transform.21} parent=0
    _
  %s6 = ssub.s32 1, %s4
  %s7 = scalar_select 0, %s6, %s4
  // Predicated region
  $region2: #{multi_wavelet_transform.21} parent=0 // pred_check
    _
  $region3: #{multi_wavelet_transform.21} parent=0 // pred_check_branch
    %9 = sbr.rel (0) target = $region5
  $region4: #{multi_wavelet_transform.21} parent=0 // pred_region
    _
  $region5: #{multi_wavelet_transform.21} parent=0 // pred_fallthru
    _
  // Predicated region
  $region6: #{multi_wavelet_transform.21} parent=0 // pred_check
    _
  $region7: #{multi_wavelet_transform.21} parent=0 // pred_check_branch
    %11 = sbr.rel (0) target = $region9
  $region8: #{multi_wavelet_transform.21} parent=0 // pred_region
    _
  $region9: #{multi_wavelet_transform.21} parent=0 // pred_fallthru
    _
  // Predicated region
  $region10: #{multi_wavelet_transform.21} parent=0 // pred_check
    _
  $region11: #{multi_wavelet_transform.21} parent=0 // pred_check_branch
    %13 = sbr.rel (0) target = $region13
  $region12: #{multi_wavelet_transform.21} parent=0 // pred_region
    _
  $region13: #{multi_wavelet_transform.21} parent=0 // pred_fallthru
    _
  %v14 = vld [vmem:[%s0] sm:$0xff]
  %v15 = vld [vmem:[%s0 + $0x8] sm:$0xff]
  %v16 = vld [vmem:[%s0 + $0x10] sm:$0xff]
  %v17 = vld [vmem:[%s0 + $0x18] sm:$0xff]
  %v18 = vld [vmem:[%s1] sm:$0xff]
  %v19 = vld [vmem:[%s1 + $0x8] sm:$0xff]
  %v20 = vld [vmem:[%s2] sm:$0x1]
  %v22 = vperm.slane %v20, 0
  %vm24 = vcmask 130048
  %v26 = vsel %vm24, %v14, 0
  %v29 = vsel %vm24, %v15, 0
  %v32 = vsel %vm24, %v16, 0
  %v35 = vsel %vm24, %v17, 0
  %37 = vmatpush.msra.mxu0 0.0
  %38 = vmatpush.msra.mxu0 0.0
  %39 = vmatpush.msra.mxu0 0.0
  %40 = vmatpush.msra.mxu0 0.0
  %41 = vmatpush.msra.mxu0 0.0
  %42 = vmatpush.msra.mxu0 0.0
  %43 = vmatpush.msra.mxu0 0.0
  %44 = vmatpush.msra.mxu0 0.0
  %45 = vmatpush.msra.mxu0 0.0
  %46 = vmatpush.msra.mxu0 0.0
  %47 = vmatpush.msra.mxu0 0.0
  %48 = vmatpush.msra.mxu0 0.0
  %49 = vmatpush.msra.mxu0 0.0
  %50 = vmatpush.msra.mxu0 0.0
  %51 = vmatpush.msra.mxu0 %v19
  %52 = vmatpush.msra.mxu0 %v18
  %53 = vmatmul.f32.gmra.mxu0 %v26
  %v54 = vpop.f32.mrf.mxu0
  %v55 = vadd.f32 %v22, %v54
  %56 = vmatmul.f32.gmra.mxu0 %v29
  %v57 = vpop.f32.mrf.mxu0
  %v58 = vadd.f32 %v22, %v57
  %59 = vmatmul.f32.gmra.mxu0 %v32
  %v60 = vpop.f32.mrf.mxu0
  %v61 = vadd.f32 %v22, %v60
  %62 = vmatmul.f32.gmra.mxu0 %v35
  %v63 = vpop.f32.mrf.mxu0
  %v64 = vadd.f32 %v22, %v63
  %65 = vdwg.mxu0
  %vm66 = vcmask 64512
  %67 = vst.msk [vmem:[%s3] sm:$0xff] %vm66, %v55
  %68 = vst.msk [vmem:[%s3 + $0x8] sm:$0xff] %vm66, %v58
  %69 = vst.msk [vmem:[%s3 + $0x10] sm:$0xff] %vm66, %v61
  %70 = vst.msk [vmem:[%s3 + $0x18] sm:$0xff] %vm66, %v64
  // Predicated region
  $region14: #{multi_wavelet_transform.21} parent=0 // pred_check
    _
  $region15: #{multi_wavelet_transform.21} parent=0 // pred_check_branch
    %72 = sbr.rel (0) target = $region17
  $region16: #{multi_wavelet_transform.21} parent=0 // pred_region
    _
  $region17: #{multi_wavelet_transform.21} parent=0 // pred_fallthru
    _
  // Predicated region
  $region18: #{multi_wavelet_transform.21} parent=0 // pred_check
    _
  $region19: #{multi_wavelet_transform.21} parent=0 // pred_check_branch
    %74 = sbr.rel (0) target = $region21
  $region20: #{multi_wavelet_transform.21} parent=0 // pred_region
    _
  $region21: #{multi_wavelet_transform.21} parent=0 // pred_fallthru
    _

</llo_original>
